<compile_context>
chip_gen: v7x
topology: tpu7x:2x2x1
jax: 0.10.0
libtpu: 0.0.40
codegen_flags: <defaults>
</compile_context>

<pallas_src>
import jax
import jax.numpy as jnp
from jax.experimental import pallas as pl
from jax.experimental.pallas import tpu as pltpu

CLAMP_MIN = 0.3
CLAMP_MAX = 0.4


def _fused_conv_clamp_kernel(x_ref, w1_ref, b1_ref, w2_ref, b2_ref, mask_ref,
                             o_ref, xg_ref, v1g_ref):
    """One image: conv1(3->12,3x3,pad1) -> conv2(12->4,3x3,pad1) -> clamp.

    x_ref   : (c_in, H*W)        VMEM  input image, flattened spatial on lanes
    w1_ref  : (c1, c_in*9)       VMEM  conv1 weights, tap index = (ci*3+kh)*3+kw
    b1_ref  : (c1, 1)            VMEM
    w2_ref  : (c2, c1*9)         VMEM
    b2_ref  : (c2, 1)            VMEM
    mask_ref: (2, H*W)           VMEM  column-validity masks for kw=0 / kw=2
    o_ref   : (c2, H*W)          VMEM  clamped output (lane-dense)
    xg_ref  : (c_in, H*W + 2G)   VMEM  guard-banded flat input   (G = W+1)
    v1g_ref : (c1,   H*W + 2G)   VMEM  guard-banded conv1 result
    """
    c_in, hw = x_ref.shape
    c1 = v1g_ref.shape[0]
    c2 = o_ref.shape[0]
    hwg = xg_ref.shape[1]
    g = (hwg - hw) // 2          # guard band length = W + 1
    width = g - 1                # image width W

    # Destination-column validity masks (precomputed in the wrapper):
    #   kw=0 reads column c-1 -> invalid at c == 0
    #   kw=2 reads column c+1 -> invalid at c == W-1
    mask_l = mask_ref[0:1, :]    # (1, hw)
    mask_r = mask_ref[1:2, :]    # (1, hw)

    def conv3x3(src_ref, w_ref, b_ref, n_ci, n_co):
        # Bias folded into the accumulator init.
        acc = b_ref[...] + jnp.zeros((n_co, hw), jnp.float32)
        for ci in range(n_ci):
            for kh in range(3):
                for kw in range(3):
                    off = (kh - 1) * width + (kw - 1)
                    tap = src_ref[ci:ci + 1, g + off:g + off + hw]  # (1, hw)
                    if kw == 0:
                        tap = tap * mask_l
                    elif kw == 2:
                        tap = tap * mask_r
                    t = (ci * 3 + kh) * 3 + kw
                    # (n_co, 1) * (1, hw) -> broadcasted FMA over (n_co, hw)
                    acc = acc + w_ref[:, t:t + 1] * tap
        return acc

    # Stage the input into its guard-banded flat buffer (zeros at both ends;
    # only the tiny guards are cleared, the interior is fully overwritten).
    xg_ref[:, 0:g] = jnp.zeros((c_in, g), jnp.float32)
    xg_ref[:, g + hw:] = jnp.zeros((c_in, g), jnp.float32)
    xg_ref[:, g:g + hw] = x_ref[...]

    # ---------------- conv1: c_in -> c1 ----------------
    acc1 = conv3x3(xg_ref, w1_ref, b1_ref, c_in, c1)

    # Stage conv1 result for conv2's taps (guards = SAME zero padding).
    v1g_ref[:, 0:g] = jnp.zeros((c1, g), jnp.float32)
    v1g_ref[:, g + hw:] = jnp.zeros((c1, g), jnp.float32)
    v1g_ref[:, g:g + hw] = acc1

    # ---------------- conv2: c1 -> c2, fused clamp ----------------
    acc2 = conv3x3(v1g_ref, w2_ref, b2_ref, c1, c2)

    o_ref[...] = jnp.clip(acc2, CLAMP_MIN, CLAMP_MAX).astype(o_ref.dtype)


def model_forward(x_nchw, params):
    """Full Model.forward, NCHW in / NCHW out, single fused Pallas kernel."""
    n, c_in, h, w = x_nchw.shape
    c1 = params["w1"].shape[0]      # 12
    c2 = params["w2"].shape[0]      # 4
    hw = h * w
    g = w + 1
    hwg = hw + 2 * g

    # Free layout plumbing only (reshapes of contiguous NCHW); no HBM pad copy.
    x_flat = x_nchw.astype(jnp.float32).reshape(n, c_in, hw)
    w1m = params["w1"].astype(jnp.float32).reshape(c1, c_in * 9)
    b1v = params["b1"].astype(jnp.float32).reshape(c1, 1)
    w2m = params["w2"].astype(jnp.float32).reshape(c2, c1 * 9)
    b2v = params["b2"].astype(jnp.float32).reshape(c2, 1)

    cols = jnp.arange(hw, dtype=jnp.int32) % w
    masks = jnp.stack([(cols != 0), (cols != w - 1)]).astype(jnp.float32)  # (2, hw)

    out_flat = pl.pallas_call(
        _fused_conv_clamp_kernel,
        out_shape=jax.ShapeDtypeStruct((n, c2, hw), jnp.float32),
        grid=(n,),
        in_specs=[
            pl.BlockSpec((None, c_in, hw), lambda i: (i, 0, 0)),
            pl.BlockSpec((c1, c_in * 9), lambda i: (0, 0)),
            pl.BlockSpec((c1, 1), lambda i: (0, 0)),
            pl.BlockSpec((c2, c1 * 9), lambda i: (0, 0)),
            pl.BlockSpec((c2, 1), lambda i: (0, 0)),
            pl.BlockSpec((2, hw), lambda i: (0, 0)),
        ],
        out_specs=pl.BlockSpec((None, c2, hw), lambda i: (i, 0, 0)),
        scratch_shapes=[
            pltpu.VMEM((c_in, hwg), jnp.float32),
            pltpu.VMEM((c1, hwg), jnp.float32),
        ],
        compiler_params=pltpu.CompilerParams(
            # Independent images: let Mosaic shard the batch across both
            # TensorCores on v7x (no-op on single-TC v5e/v6e).
            dimension_semantics=("parallel",),
            vmem_limit_bytes=32 * 1024 * 1024,
        ),
    )(x_flat, w1m, b1v, w2m, b2v, masks)
    return out_flat.reshape(n, c2, h, w)


def init_params(key):
    k1, k2, k3, k4 = jax.random.split(key, 4)
    return {
        "w1": 0.1 * jax.random.normal(k1, (12, 3, 3, 3), jnp.float32),
        "b1": 0.1 * jax.random.normal(k2, (12,), jnp.float32),
        "w2": 0.1 * jax.random.normal(k3, (4, 12, 3, 3), jnp.float32),
        "b2": 0.1 * jax.random.normal(k4, (4,), jnp.float32),
    }


if __name__ == "__main__":
    key = jax.random.PRNGKey(0)
    kx, kp = jax.random.split(key)

    # Small shapes consistent with the module: in-channels must be 3.
    x = jax.random.normal(kx, (2, 3, 16, 16), jnp.float32)   # NCHW
    params = init_params(kp)

    out = jax.jit(model_forward)(x, params)
    out = jax.block_until_ready(out)

    assert out.shape == (2, 4, 16, 16)
    assert bool(jnp.all(out >= CLAMP_MIN)) and bool(jnp.all(out <= CLAMP_MAX))

    # Reference check against plain-XLA convs.
    def ref(x_nchw, p):
        dn = jax.lax.conv_dimension_numbers(x_nchw.shape, p["w1"].shape,
                                            ("NCHW", "OIHW", "NCHW"))
        v1 = jax.lax.conv_general_dilated(x_nchw, p["w1"], (1, 1), "SAME",
                                          dimension_numbers=dn)
        v1 = v1 + p["b1"][None, :, None, None]
        dn2 = jax.lax.conv_dimension_numbers(v1.shape, p["w2"].shape,
                                             ("NCHW", "OIHW", "NCHW"))
        v2 = jax.lax.conv_general_dilated(v1, p["w2"], (1, 1), "SAME",
                                          dimension_numbers=dn2)
        v2 = v2 + p["b2"][None, :, None, None]
        return jnp.clip(v2, CLAMP_MIN, CLAMP_MAX)

    ref_out = ref(x, params)
    assert bool(jnp.allclose(out, ref_out, atol=1e-4, rtol=1e-4)), \
        float(jnp.max(jnp.abs(out - ref_out)))

    print("KERNEL_OK")
</pallas_src>

<mosaic_0001>
module attributes {stable_mosaic.version = 11 : i64} {
  func.func @_fused_conv_clamp_kernel(%arg0: i32, %arg1: memref<1x3x256xf32, #tpu.memory_space<vmem>>, %arg2: memref<12x27xf32, #tpu.memory_space<vmem>>, %arg3: memref<12x1xf32, #tpu.memory_space<vmem>>, %arg4: memref<4x108xf32, #tpu.memory_space<vmem>>, %arg5: memref<4x1xf32, #tpu.memory_space<vmem>>, %arg6: memref<2x256xf32, #tpu.memory_space<vmem>>, %arg7: memref<1x4x256xf32, #tpu.memory_space<vmem>>, %arg8: memref<3x290xf32, #tpu.memory_space<vmem>>, %arg9: memref<12x290xf32, #tpu.memory_space<vmem>>) attributes {dimension_semantics = [#tpu.dimension_semantics<parallel>], iteration_bounds = array<i64: 2>, scalar_prefetch = 0 : i64, scratch_operands = 2 : i64, tpu.core_type = #tpu.core_type<tc>, window_params = [{transform_indices = @transform_0, window_bounds = array<i64: 1, 3, 256>}, {pipeline_mode = #tpu.pipeline_mode<synchronous>, transform_indices = @transform_1, window_bounds = array<i64: 12, 27>}, {pipeline_mode = #tpu.pipeline_mode<synchronous>, transform_indices = @transform_2, window_bounds = array<i64: 12, 1>}, {pipeline_mode = #tpu.pipeline_mode<synchronous>, transform_indices = @transform_3, window_bounds = array<i64: 4, 108>}, {pipeline_mode = #tpu.pipeline_mode<synchronous>, transform_indices = @transform_4, window_bounds = array<i64: 4, 1>}, {pipeline_mode = #tpu.pipeline_mode<synchronous>, transform_indices = @transform_5, window_bounds = array<i64: 2, 256>}, {transform_indices = @transform_6, window_bounds = array<i64: 1, 4, 256>}]} {
    %c0 = arith.constant 0 : index
    %c0_0 = arith.constant 0 : index
    %0 = vector.load %arg6[%c0, %c0_0] : memref<2x256xf32, #tpu.memory_space<vmem>>, vector<1x256xf32>
    %c1 = arith.constant 1 : index
    %c0_1 = arith.constant 0 : index
    %1 = vector.load %arg6[%c1, %c0_1] : memref<2x256xf32, #tpu.memory_space<vmem>>, vector<1x256xf32>
    %cst = arith.constant 0.000000e+00 : f32
    %2 = vector.broadcast %cst : f32 to vector<3x17xf32>
    %c0_2 = arith.constant 0 : index
    %c0_3 = arith.constant 0 : index
    %3 = vector.load %arg8[%c0_2, %c0_3] : memref<3x290xf32, #tpu.memory_space<vmem>>, vector<3x17xf32>
    tpu.vector_store %arg8[%c0_2, %c0_3], %2 {strides = array<i32>} : memref<3x290xf32, #tpu.memory_space<vmem>>, vector<3x17xf32>,
    %cst_4 = arith.constant 0.000000e+00 : f32
    %4 = vector.broadcast %cst_4 : f32 to vector<3x17xf32>
    %c0_5 = arith.constant 0 : index
    %c273 = arith.constant 273 : index
    %5 = vector.load %arg8[%c0_5, %c273] : memref<3x290xf32, #tpu.memory_space<vmem>>, vector<3x17xf32>
    tpu.vector_store %arg8[%c0_5, %c273], %4 {strides = array<i32>} : memref<3x290xf32, #tpu.memory_space<vmem>>, vector<3x17xf32>,
    %c0_6 = arith.constant 0 : index
    %c0_7 = arith.constant 0 : index
    %c0_8 = arith.constant 0 : index
    %6 = vector.load %arg1[%c0_6, %c0_7, %c0_8] : memref<1x3x256xf32, #tpu.memory_space<vmem>>, vector<1x3x256xf32>
    %7 = vector.shape_cast %6 : vector<1x3x256xf32> to vector<3x256xf32>
    %c0_9 = arith.constant 0 : index
    %c17 = arith.constant 17 : index
    %8 = vector.load %arg8[%c0_9, %c17] : memref<3x290xf32, #tpu.memory_space<vmem>>, vector<3x256xf32>
    tpu.vector_store %arg8[%c0_9, %c17], %7 {strides = array<i32>} : memref<3x290xf32, #tpu.memory_space<vmem>>, vector<3x256xf32>,
    %c0_10 = arith.constant 0 : index
    %c0_11 = arith.constant 0 : index
    %9 = vector.load %arg3[%c0_10, %c0_11] : memref<12x1xf32, #tpu.memory_space<vmem>>, vector<12x1xf32>
    %cst_12 = arith.constant 0.000000e+00 : f32
    %10 = vector.broadcast %cst_12 : f32 to vector<12x256xf32>
    %11 = vector.broadcast %9 : vector<12x1xf32> to vector<12x256xf32>
    %12 = arith.addf %11, %10 : vector<12x256xf32>
    %c0_13 = arith.constant 0 : index
    %c0_14 = arith.constant 0 : index
    %13 = vector.load %arg8[%c0_13, %c0_14] : memref<3x290xf32, #tpu.memory_space<vmem>>, vector<1x256xf32>
    %14 = arith.mulf %13, %0 : vector<1x256xf32>
    %c0_15 = arith.constant 0 : index
    %c0_16 = arith.constant 0 : index
    %15 = vector.load %arg2[%c0_15, %c0_16] : memref<12x27xf32, #tpu.memory_space<vmem>>, vector<12x1xf32>
    %16 = vector.broadcast %15 : vector<12x1xf32> to vector<12x256xf32>
    %17 = vector.broadcast %14 : vector<1x256xf32> to vector<12x256xf32>
    %18 = arith.mulf %16, %17 : vector<12x256xf32>
    %19 = arith.addf %12, %18 : vector<12x256xf32>
    %c0_17 = arith.constant 0 : index
    %c1_18 = arith.constant 1 : index
    %20 = vector.load %arg8[%c0_17, %c1_18] : memref<3x290xf32, #tpu.memory_space<vmem>>, vector<1x256xf32>
    %c0_19 = arith.constant 0 : index
    %c1_20 = arith.constant 1 : index
    %21 = vector.load %arg2[%c0_19, %c1_20] : memref<12x27xf32, #tpu.memory_space<vmem>>, vector<12x1xf32>
    %22 = vector.broadcast %21 : vector<12x1xf32> to vector<12x256xf32>
    %23 = vector.broadcast %20 : vector<1x256xf32> to vector<12x256xf32>
    %24 = arith.mulf %22, %23 : vector<12x256xf32>
    %25 = arith.addf %19, %24 : vector<12x256xf32>
    %c0_21 = arith.constant 0 : index
    %c2 = arith.constant 2 : index
    %26 = vector.load %arg8[%c0_21, %c2] : memref<3x290xf32, #tpu.memory_space<vmem>>, vector<1x256xf32>
    %27 = arith.mulf %26, %1 : vector<1x256xf32>
    %c0_22 = arith.constant 0 : index
    %c2_23 = arith.constant 2 : index
    %28 = vector.load %arg2[%c0_22, %c2_23] : memref<12x27xf32, #tpu.memory_space<vmem>>, vector<12x1xf32>
    %29 = vector.broadcast %28 : vector<12x1xf32> to vector<12x256xf32>
    %30 = vector.broadcast %27 : vector<1x256xf32> to vector<12x256xf32>
    %31 = arith.mulf %29, %30 : vector<12x256xf32>
    %32 = arith.addf %25, %31 : vector<12x256xf32>
    %c0_24 = arith.constant 0 : index
    %c16 = arith.constant 16 : index
    %33 = vector.load %arg8[%c0_24, %c16] : memref<3x290xf32, #tpu.memory_space<vmem>>, vector<1x256xf32>
    %34 = arith.mulf %33, %0 : vector<1x256xf32>
    %c0_25 = arith.constant 0 : index
    %c3 = arith.constant 3 : index
    %35 = vector.load %arg2[%c0_25, %c3] : memref<12x27xf32, #tpu.memory_space<vmem>>, vector<12x1xf32>
    %36 = vector.broadcast %35 : vector<12x1xf32> to vector<12x256xf32>
    %37 = vector.broadcast %34 : vector<1x256xf32> to vector<12x256xf32>
    %38 = arith.mulf %36, %37 : vector<12x256xf32>
    %39 = arith.addf %32, %38 : vector<12x256xf32>
    %c0_26 = arith.constant 0 : index
    %c17_27 = arith.constant 17 : index
    %40 = vector.load %arg8[%c0_26, %c17_27] : memref<3x290xf32, #tpu.memory_space<vmem>>, vector<1x256xf32>
    %c0_28 = arith.constant 0 : index
    %c4 = arith.constant 4 : index
    %41 = vector.load %arg2[%c0_28, %c4] : memref<12x27xf32, #tpu.memory_space<vmem>>, vector<12x1xf32>
    %42 = vector.broadcast %41 : vector<12x1xf32> to vector<12x256xf32>
    %43 = vector.broadcast %40 : vector<1x256xf32> to vector<12x256xf32>
    %44 = arith.mulf %42, %43 : vector<12x256xf32>
    %45 = arith.addf %39, %44 : vector<12x256xf32>
    %c0_29 = arith.constant 0 : index
    %c18 = arith.constant 18 : index
    %46 = vector.load %arg8[%c0_29, %c18] : memref<3x290xf32, #tpu.memory_space<vmem>>, vector<1x256xf32>
    %47 = arith.mulf %46, %1 : vector<1x256xf32>
    %c0_30 = arith.constant 0 : index
    %c5 = arith.constant 5 : index
    %48 = vector.load %arg2[%c0_30, %c5] : memref<12x27xf32, #tpu.memory_space<vmem>>, vector<12x1xf32>
    %49 = vector.broadcast %48 : vector<12x1xf32> to vector<12x256xf32>
    %50 = vector.broadcast %47 : vector<1x256xf32> to vector<12x256xf32>
    %51 = arith.mulf %49, %50 : vector<12x256xf32>
    %52 = arith.addf %45, %51 : vector<12x256xf32>
    %c0_31 = arith.constant 0 : index
    %c32 = arith.constant 32 : index
    %53 = vector.load %arg8[%c0_31, %c32] : memref<3x290xf32, #tpu.memory_space<vmem>>, vector<1x256xf32>
    %54 = arith.mulf %53, %0 : vector<1x256xf32>
    %c0_32 = arith.constant 0 : index
    %c6 = arith.constant 6 : index
    %55 = vector.load %arg2[%c0_32, %c6] : memref<12x27xf32, #tpu.memory_space<vmem>>, vector<12x1xf32>
    %56 = vector.broadcast %55 : vector<12x1xf32> to vector<12x256xf32>
    %57 = vector.broadcast %54 : vector<1x256xf32> to vector<12x256xf32>
    %58 = arith.mulf %56, %57 : vector<12x256xf32>
    %59 = arith.addf %52, %58 : vector<12x256xf32>
    %c0_33 = arith.constant 0 : index
    %c33 = arith.constant 33 : index
    %60 = vector.load %arg8[%c0_33, %c33] : memref<3x290xf32, #tpu.memory_space<vmem>>, vector<1x256xf32>
    %c0_34 = arith.constant 0 : index
    %c7 = arith.constant 7 : index
    %61 = vector.load %arg2[%c0_34, %c7] : memref<12x27xf32, #tpu.memory_space<vmem>>, vector<12x1xf32>
    %62 = vector.broadcast %61 : vector<12x1xf32> to vector<12x256xf32>
    %63 = vector.broadcast %60 : vector<1x256xf32> to vector<12x256xf32>
    %64 = arith.mulf %62, %63 : vector<12x256xf32>
    %65 = arith.addf %59, %64 : vector<12x256xf32>
    %c0_35 = arith.constant 0 : index
    %c34 = arith.constant 34 : index
    %66 = vector.load %arg8[%c0_35, %c34] : memref<3x290xf32, #tpu.memory_space<vmem>>, vector<1x256xf32>
    %67 = arith.mulf %66, %1 : vector<1x256xf32>
    %c0_36 = arith.constant 0 : index
    %c8 = arith.constant 8 : index
    %68 = vector.load %arg2[%c0_36, %c8] : memref<12x27xf32, #tpu.memory_space<vmem>>, vector<12x1xf32>
    %69 = vector.broadcast %68 : vector<12x1xf32> to vector<12x256xf32>
    %70 = vector.broadcast %67 : vector<1x256xf32> to vector<12x256xf32>
    %71 = arith.mulf %69, %70 : vector<12x256xf32>
    %72 = arith.addf %65, %71 : vector<12x256xf32>
    %c1_37 = arith.constant 1 : index
    %c0_38 = arith.constant 0 : index
    %73 = vector.load %arg8[%c1_37, %c0_38] : memref<3x290xf32, #tpu.memory_space<vmem>>, vector<1x256xf32>
    %74 = arith.mulf %73, %0 : vector<1x256xf32>
    %c0_39 = arith.constant 0 : index
    %c9 = arith.constant 9 : index
    %75 = vector.load %arg2[%c0_39, %c9] : memref<12x27xf32, #tpu.memory_space<vmem>>, vector<12x1xf32>
    %76 = vector.broadcast %75 : vector<12x1xf32> to vector<12x256xf32>
    %77 = vector.broadcast %74 : vector<1x256xf32> to vector<12x256xf32>
    %78 = arith.mulf %76, %77 : vector<12x256xf32>
    %79 = arith.addf %72, %78 : vector<12x256xf32>
    %c1_40 = arith.constant 1 : index
    %c1_41 = arith.constant 1 : index
    %80 = vector.load %arg8[%c1_40, %c1_41] : memref<3x290xf32, #tpu.memory_space<vmem>>, vector<1x256xf32>
    %c0_42 = arith.constant 0 : index
    %c10 = arith.constant 10 : index
    %81 = vector.load %arg2[%c0_42, %c10] : memref<12x27xf32, #tpu.memory_space<vmem>>, vector<12x1xf32>
    %82 = vector.broadcast %81 : vector<12x1xf32> to vector<12x256xf32>
    %83 = vector.broadcast %80 : vector<1x256xf32> to vector<12x256xf32>
    %84 = arith.mulf %82, %83 : vector<12x256xf32>
    %85 = arith.addf %79, %84 : vector<12x256xf32>
    %c1_43 = arith.constant 1 : index
    %c2_44 = arith.constant 2 : index
    %86 = vector.load %arg8[%c1_43, %c2_44] : memref<3x290xf32, #tpu.memory_space<vmem>>, vector<1x256xf32>
    %87 = arith.mulf %86, %1 : vector<1x256xf32>
    %c0_45 = arith.constant 0 : index
    %c11 = arith.constant 11 : index
    %88 = vector.load %arg2[%c0_45, %c11] : memref<12x27xf32, #tpu.memory_space<vmem>>, vector<12x1xf32>
    %89 = vector.broadcast %88 : vector<12x1xf32> to vector<12x256xf32>
    %90 = vector.broadcast %87 : vector<1x256xf32> to vector<12x256xf32>
    %91 = arith.mulf %89, %90 : vector<12x256xf32>
    %92 = arith.addf %85, %91 : vector<12x256xf32>
    %c1_46 = arith.constant 1 : index
    %c16_47 = arith.constant 16 : index
    %93 = vector.load %arg8[%c1_46, %c16_47] : memref<3x290xf32, #tpu.memory_space<vmem>>, vector<1x256xf32>
    %94 = arith.mulf %93, %0 : vector<1x256xf32>
    %c0_48 = arith.constant 0 : index
    %c12 = arith.constant 12 : index
    %95 = vector.load %arg2[%c0_48, %c12] : memref<12x27xf32, #tpu.memory_space<vmem>>, vector<12x1xf32>
    %96 = vector.broadcast %95 : vector<12x1xf32> to vector<12x256xf32>
    %97 = vector.broadcast %94 : vector<1x256xf32> to vector<12x256xf32>
    %98 = arith.mulf %96, %97 : vector<12x256xf32>
    %99 = arith.addf %92, %98 : vector<12x256xf32>
    %c1_49 = arith.constant 1 : index
    %c17_50 = arith.constant 17 : index
    %100 = vector.load %arg8[%c1_49, %c17_50] : memref<3x290xf32, #tpu.memory_space<vmem>>, vector<1x256xf32>
    %c0_51 = arith.constant 0 : index
    %c13 = arith.constant 13 : index
    %101 = vector.load %arg2[%c0_51, %c13] : memref<12x27xf32, #tpu.memory_space<vmem>>, vector<12x1xf32>
    %102 = vector.broadcast %101 : vector<12x1xf32> to vector<12x256xf32>
    %103 = vector.broadcast %100 : vector<1x256xf32> to vector<12x256xf32>
    %104 = arith.mulf %102, %103 : vector<12x256xf32>
    %105 = arith.addf %99, %104 : vector<12x256xf32>
    %c1_52 = arith.constant 1 : index
    %c18_53 = arith.constant 18 : index
    %106 = vector.load %arg8[%c1_52, %c18_53] : memref<3x290xf32, #tpu.memory_space<vmem>>, vector<1x256xf32>
    %107 = arith.mulf %106, %1 : vector<1x256xf32>
    %c0_54 = arith.constant 0 : index
    %c14 = arith.constant 14 : index
    %108 = vector.load %arg2[%c0_54, %c14] : memref<12x27xf32, #tpu.memory_space<vmem>>, vector<12x1xf32>
    %109 = vector.broadcast %108 : vector<12x1xf32> to vector<12x256xf32>
    %110 = vector.broadcast %107 : vector<1x256xf32> to vector<12x256xf32>
    %111 = arith.mulf %109, %110 : vector<12x256xf32>
    %112 = arith.addf %105, %111 : vector<12x256xf32>
    %c1_55 = arith.constant 1 : index
    %c32_56 = arith.constant 32 : index
    %113 = vector.load %arg8[%c1_55, %c32_56] : memref<3x290xf32, #tpu.memory_space<vmem>>, vector<1x256xf32>
    %114 = arith.mulf %113, %0 : vector<1x256xf32>
    %c0_57 = arith.constant 0 : index
    %c15 = arith.constant 15 : index
    %115 = vector.load %arg2[%c0_57, %c15] : memref<12x27xf32, #tpu.memory_space<vmem>>, vector<12x1xf32>
    %116 = vector.broadcast %115 : vector<12x1xf32> to vector<12x256xf32>
    %117 = vector.broadcast %114 : vector<1x256xf32> to vector<12x256xf32>
    %118 = arith.mulf %116, %117 : vector<12x256xf32>
    %119 = arith.addf %112, %118 : vector<12x256xf32>
    %c1_58 = arith.constant 1 : index
    %c33_59 = arith.constant 33 : index
    %120 = vector.load %arg8[%c1_58, %c33_59] : memref<3x290xf32, #tpu.memory_space<vmem>>, vector<1x256xf32>
    %c0_60 = arith.constant 0 : index
    %c16_61 = arith.constant 16 : index
    %121 = vector.load %arg2[%c0_60, %c16_61] : memref<12x27xf32, #tpu.memory_space<vmem>>, vector<12x1xf32>
    %122 = vector.broadcast %121 : vector<12x1xf32> to vector<12x256xf32>
    %123 = vector.broadcast %120 : vector<1x256xf32> to vector<12x256xf32>
    %124 = arith.mulf %122, %123 : vector<12x256xf32>
    %125 = arith.addf %119, %124 : vector<12x256xf32>
    %c1_62 = arith.constant 1 : index
    %c34_63 = arith.constant 34 : index
    %126 = vector.load %arg8[%c1_62, %c34_63] : memref<3x290xf32, #tpu.memory_space<vmem>>, vector<1x256xf32>
    %127 = arith.mulf %126, %1 : vector<1x256xf32>
    %c0_64 = arith.constant 0 : index
    %c17_65 = arith.constant 17 : index
    %128 = vector.load %arg2[%c0_64, %c17_65] : memref<12x27xf32, #tpu.memory_space<vmem>>, vector<12x1xf32>
    %129 = vector.broadcast %128 : vector<12x1xf32> to vector<12x256xf32>
    %130 = vector.broadcast %127 : vector<1x256xf32> to vector<12x256xf32>
    %131 = arith.mulf %129, %130 : vector<12x256xf32>
    %132 = arith.addf %125, %131 : vector<12x256xf32>
    %c2_66 = arith.constant 2 : index
    %c0_67 = arith.constant 0 : index
    %133 = vector.load %arg8[%c2_66, %c0_67] : memref<3x290xf32, #tpu.memory_space<vmem>>, vector<1x256xf32>
    %134 = arith.mulf %133, %0 : vector<1x256xf32>
    %c0_68 = arith.constant 0 : index
    %c18_69 = arith.constant 18 : index
    %135 = vector.load %arg2[%c0_68, %c18_69] : memref<12x27xf32, #tpu.memory_space<vmem>>, vector<12x1xf32>
    %136 = vector.broadcast %135 : vector<12x1xf32> to vector<12x256xf32>
    %137 = vector.broadcast %134 : vector<1x256xf32> to vector<12x256xf32>
    %138 = arith.mulf %136, %137 : vector<12x256xf32>
    %139 = arith.addf %132, %138 : vector<12x256xf32>
    %c2_70 = arith.constant 2 : index
    %c1_71 = arith.constant 1 : index
    %140 = vector.load %arg8[%c2_70, %c1_71] : memref<3x290xf32, #tpu.memory_space<vmem>>, vector<1x256xf32>
    %c0_72 = arith.constant 0 : index
    %c19 = arith.constant 19 : index
    %141 = vector.load %arg2[%c0_72, %c19] : memref<12x27xf32, #tpu.memory_space<vmem>>, vector<12x1xf32>
    %142 = vector.broadcast %141 : vector<12x1xf32> to vector<12x256xf32>
    %143 = vector.broadcast %140 : vector<1x256xf32> to vector<12x256xf32>
    %144 = arith.mulf %142, %143 : vector<12x256xf32>
    %145 = arith.addf %139, %144 : vector<12x256xf32>
    %c2_73 = arith.constant 2 : index
    %c2_74 = arith.constant 2 : index
    %146 = vector.load %arg8[%c2_73, %c2_74] : memref<3x290xf32, #tpu.memory_space<vmem>>, vector<1x256xf32>
    %147 = arith.mulf %146, %1 : vector<1x256xf32>
    %c0_75 = arith.constant 0 : index
    %c20 = arith.constant 20 : index
    %148 = vector.load %arg2[%c0_75, %c20] : memref<12x27xf32, #tpu.memory_space<vmem>>, vector<12x1xf32>
    %149 = vector.broadcast %148 : vector<12x1xf32> to vector<12x256xf32>
    %150 = vector.broadcast %147 : vector<1x256xf32> to vector<12x256xf32>
    %151 = arith.mulf %149, %150 : vector<12x256xf32>
    %152 = arith.addf %145, %151 : vector<12x256xf32>
    %c2_76 = arith.constant 2 : index
    %c16_77 = arith.constant 16 : index
    %153 = vector.load %arg8[%c2_76, %c16_77] : memref<3x290xf32, #tpu.memory_space<vmem>>, vector<1x256xf32>
    %154 = arith.mulf %153, %0 : vector<1x256xf32>
    %c0_78 = arith.constant 0 : index
    %c21 = arith.constant 21 : index
    %155 = vector.load %arg2[%c0_78, %c21] : memref<12x27xf32, #tpu.memory_space<vmem>>, vector<12x1xf32>
    %156 = vector.broadcast %155 : vector<12x1xf32> to vector<12x256xf32>
    %157 = vector.broadcast %154 : vector<1x256xf32> to vector<12x256xf32>
    %158 = arith.mulf %156, %157 : vector<12x256xf32>
    %159 = arith.addf %152, %158 : vector<12x256xf32>
    %c2_79 = arith.constant 2 : index
    %c17_80 = arith.constant 17 : index
    %160 = vector.load %arg8[%c2_79, %c17_80] : memref<3x290xf32, #tpu.memory_space<vmem>>, vector<1x256xf32>
    %c0_81 = arith.constant 0 : index
    %c22 = arith.constant 22 : index
    %161 = vector.load %arg2[%c0_81, %c22] : memref<12x27xf32, #tpu.memory_space<vmem>>, vector<12x1xf32>
    %162 = vector.broadcast %161 : vector<12x1xf32> to vector<12x256xf32>
    %163 = vector.broadcast %160 : vector<1x256xf32> to vector<12x256xf32>
    %164 = arith.mulf %162, %163 : vector<12x256xf32>
    %165 = arith.addf %159, %164 : vector<12x256xf32>
    %c2_82 = arith.constant 2 : index
    %c18_83 = arith.constant 18 : index
    %166 = vector.load %arg8[%c2_82, %c18_83] : memref<3x290xf32, #tpu.memory_space<vmem>>, vector<1x256xf32>
    %167 = arith.mulf %166, %1 : vector<1x256xf32>
    %c0_84 = arith.constant 0 : index
    %c23 = arith.constant 23 : index
    %168 = vector.load %arg2[%c0_84, %c23] : memref<12x27xf32, #tpu.memory_space<vmem>>, vector<12x1xf32>
    %169 = vector.broadcast %168 : vector<12x1xf32> to vector<12x256xf32>
    %170 = vector.broadcast %167 : vector<1x256xf32> to vector<12x256xf32>
    %171 = arith.mulf %169, %170 : vector<12x256xf32>
    %172 = arith.addf %165, %171 : vector<12x256xf32>
    %c2_85 = arith.constant 2 : index
    %c32_86 = arith.constant 32 : index
    %173 = vector.load %arg8[%c2_85, %c32_86] : memref<3x290xf32, #tpu.memory_space<vmem>>, vector<1x256xf32>
    %174 = arith.mulf %173, %0 : vector<1x256xf32>
    %c0_87 = arith.constant 0 : index
    %c24 = arith.constant 24 : index
    %175 = vector.load %arg2[%c0_87, %c24] : memref<12x27xf32, #tpu.memory_space<vmem>>, vector<12x1xf32>
    %176 = vector.broadcast %175 : vector<12x1xf32> to vector<12x256xf32>
    %177 = vector.broadcast %174 : vector<1x256xf32> to vector<12x256xf32>
    %178 = arith.mulf %176, %177 : vector<12x256xf32>
    %179 = arith.addf %172, %178 : vector<12x256xf32>
    %c2_88 = arith.constant 2 : index
    %c33_89 = arith.constant 33 : index
    %180 = vector.load %arg8[%c2_88, %c33_89] : memref<3x290xf32, #tpu.memory_space<vmem>>, vector<1x256xf32>
    %c0_90 = arith.constant 0 : index
    %c25 = arith.constant 25 : index
    %181 = vector.load %arg2[%c0_90, %c25] : memref<12x27xf32, #tpu.memory_space<vmem>>, vector<12x1xf32>
    %182 = vector.broadcast %181 : vector<12x1xf32> to vector<12x256xf32>
    %183 = vector.broadcast %180 : vector<1x256xf32> to vector<12x256xf32>
    %184 = arith.mulf %182, %183 : vector<12x256xf32>
    %185 = arith.addf %179, %184 : vector<12x256xf32>
    %c2_91 = arith.constant 2 : index
    %c34_92 = arith.constant 34 : index
    %186 = vector.load %arg8[%c2_91, %c34_92] : memref<3x290xf32, #tpu.memory_space<vmem>>, vector<1x256xf32>
    %187 = arith.mulf %186, %1 : vector<1x256xf32>
    %c0_93 = arith.constant 0 : index
    %c26 = arith.constant 26 : index
    %188 = vector.load %arg2[%c0_93, %c26] : memref<12x27xf32, #tpu.memory_space<vmem>>, vector<12x1xf32>
    %189 = vector.broadcast %188 : vector<12x1xf32> to vector<12x256xf32>
    %190 = vector.broadcast %187 : vector<1x256xf32> to vector<12x256xf32>
    %191 = arith.mulf %189, %190 : vector<12x256xf32>
    %192 = arith.addf %185, %191 : vector<12x256xf32>
    %cst_94 = arith.constant 0.000000e+00 : f32
    %193 = vector.broadcast %cst_94 : f32 to vector<12x17xf32>
    %c0_95 = arith.constant 0 : index
    %c0_96 = arith.constant 0 : index
    %194 = vector.load %arg9[%c0_95, %c0_96] : memref<12x290xf32, #tpu.memory_space<vmem>>, vector<12x17xf32>
    tpu.vector_store %arg9[%c0_95, %c0_96], %193 {strides = array<i32>} : memref<12x290xf32, #tpu.memory_space<vmem>>, vector<12x17xf32>,
    %cst_97 = arith.constant 0.000000e+00 : f32
    %195 = vector.broadcast %cst_97 : f32 to vector<12x17xf32>
    %c0_98 = arith.constant 0 : index
    %c273_99 = arith.constant 273 : index
    %196 = vector.load %arg9[%c0_98, %c273_99] : memref<12x290xf32, #tpu.memory_space<vmem>>, vector<12x17xf32>
    tpu.vector_store %arg9[%c0_98, %c273_99], %195 {strides = array<i32>} : memref<12x290xf32, #tpu.memory_space<vmem>>, vector<12x17xf32>,
    %c0_100 = arith.constant 0 : index
    %c17_101 = arith.constant 17 : index
    %197 = vector.load %arg9[%c0_100, %c17_101] : memref<12x290xf32, #tpu.memory_space<vmem>>, vector<12x256xf32>
    tpu.vector_store %arg9[%c0_100, %c17_101], %192 {strides = array<i32>} : memref<12x290xf32, #tpu.memory_space<vmem>>, vector<12x256xf32>,
    %c0_102 = arith.constant 0 : index
    %c0_103 = arith.constant 0 : index
    %198 = vector.load %arg5[%c0_102, %c0_103] : memref<4x1xf32, #tpu.memory_space<vmem>>, vector<4x1xf32>
    %cst_104 = arith.constant 0.000000e+00 : f32
    %199 = vector.broadcast %cst_104 : f32 to vector<4x256xf32>
    %200 = vector.broadcast %198 : vector<4x1xf32> to vector<4x256xf32>
    %201 = arith.addf %200, %199 : vector<4x256xf32>
    %c0_105 = arith.constant 0 : index
    %c0_106 = arith.constant 0 : index
    %202 = vector.load %arg9[%c0_105, %c0_106] : memref<12x290xf32, #tpu.memory_space<vmem>>, vector<1x256xf32>
    %203 = arith.mulf %202, %0 : vector<1x256xf32>
    %c0_107 = arith.constant 0 : index
    %c0_108 = arith.constant 0 : index
    %204 = vector.load %arg4[%c0_107, %c0_108] : memref<4x108xf32, #tpu.memory_space<vmem>>, vector<4x1xf32>
    %205 = vector.broadcast %204 : vector<4x1xf32> to vector<4x256xf32>
    %206 = vector.broadcast %203 : vector<1x256xf32> to vector<4x256xf32>
    %207 = arith.mulf %205, %206 : vector<4x256xf32>
    %208 = arith.addf %201, %207 : vector<4x256xf32>
    %c0_109 = arith.constant 0 : index
    %c1_110 = arith.constant 1 : index
    %209 = vector.load %arg9[%c0_109, %c1_110] : memref<12x290xf32, #tpu.memory_space<vmem>>, vector<1x256xf32>
    %c0_111 = arith.constant 0 : index
    %c1_112 = arith.constant 1 : index
    %210 = vector.load %arg4[%c0_111, %c1_112] : memref<4x108xf32, #tpu.memory_space<vmem>>, vector<4x1xf32>
    %211 = vector.broadcast %210 : vector<4x1xf32> to vector<4x256xf32>
    %212 = vector.broadcast %209 : vector<1x256xf32> to vector<4x256xf32>
    %213 = arith.mulf %211, %212 : vector<4x256xf32>
    %214 = arith.addf %208, %213 : vector<4x256xf32>
    %c0_113 = arith.constant 0 : index
    %c2_114 = arith.constant 2 : index
    %215 = vector.load %arg9[%c0_113, %c2_114] : memref<12x290xf32, #tpu.memory_space<vmem>>, vector<1x256xf32>
    %216 = arith.mulf %215, %1 : vector<1x256xf32>
    %c0_115 = arith.constant 0 : index
    %c2_116 = arith.constant 2 : index
    %217 = vector.load %arg4[%c0_115, %c2_116] : memref<4x108xf32, #tpu.memory_space<vmem>>, vector<4x1xf32>
    %218 = vector.broadcast %217 : vector<4x1xf32> to vector<4x256xf32>
    %219 = vector.broadcast %216 : vector<1x256xf32> to vector<4x256xf32>
    %220 = arith.mulf %218, %219 : vector<4x256xf32>
    %221 = arith.addf %214, %220 : vector<4x256xf32>
    %c0_117 = arith.constant 0 : index
    %c16_118 = arith.constant 16 : index
    %222 = vector.load %arg9[%c0_117, %c16_118] : memref<12x290xf32, #tpu.memory_space<vmem>>, vector<1x256xf32>
    %223 = arith.mulf %222, %0 : vector<1x256xf32>
    %c0_119 = arith.constant 0 : index
    %c3_120 = arith.constant 3 : index
    %224 = vector.load %arg4[%c0_119, %c3_120] : memref<4x108xf32, #tpu.memory_space<vmem>>, vector<4x1xf32>
    %225 = vector.broadcast %224 : vector<4x1xf32> to vector<4x256xf32>
    %226 = vector.broadcast %223 : vector<1x256xf32> to vector<4x256xf32>
    %227 = arith.mulf %225, %226 : vector<4x256xf32>
    %228 = arith.addf %221, %227 : vector<4x256xf32>
    %c0_121 = arith.constant 0 : index
    %c17_122 = arith.constant 17 : index
    %229 = vector.load %arg9[%c0_121, %c17_122] : memref<12x290xf32, #tpu.memory_space<vmem>>, vector<1x256xf32>
    %c0_123 = arith.constant 0 : index
    %c4_124 = arith.constant 4 : index
    %230 = vector.load %arg4[%c0_123, %c4_124] : memref<4x108xf32, #tpu.memory_space<vmem>>, vector<4x1xf32>
    %231 = vector.broadcast %230 : vector<4x1xf32> to vector<4x256xf32>
    %232 = vector.broadcast %229 : vector<1x256xf32> to vector<4x256xf32>
    %233 = arith.mulf %231, %232 : vector<4x256xf32>
    %234 = arith.addf %228, %233 : vector<4x256xf32>
    %c0_125 = arith.constant 0 : index
    %c18_126 = arith.constant 18 : index
    %235 = vector.load %arg9[%c0_125, %c18_126] : memref<12x290xf32, #tpu.memory_space<vmem>>, vector<1x256xf32>
    %236 = arith.mulf %235, %1 : vector<1x256xf32>
    %c0_127 = arith.constant 0 : index
    %c5_128 = arith.constant 5 : index
    %237 = vector.load %arg4[%c0_127, %c5_128] : memref<4x108xf32, #tpu.memory_space<vmem>>, vector<4x1xf32>
    %238 = vector.broadcast %237 : vector<4x1xf32> to vector<4x256xf32>
    %239 = vector.broadcast %236 : vector<1x256xf32> to vector<4x256xf32>
    %240 = arith.mulf %238, %239 : vector<4x256xf32>
    %241 = arith.addf %234, %240 : vector<4x256xf32>
    %c0_129 = arith.constant 0 : index
    %c32_130 = arith.constant 32 : index
    %242 = vector.load %arg9[%c0_129, %c32_130] : memref<12x290xf32, #tpu.memory_space<vmem>>, vector<1x256xf32>
    %243 = arith.mulf %242, %0 : vector<1x256xf32>
    %c0_131 = arith.constant 0 : index
    %c6_132 = arith.constant 6 : index
    %244 = vector.load %arg4[%c0_131, %c6_132] : memref<4x108xf32, #tpu.memory_space<vmem>>, vector<4x1xf32>
    %245 = vector.broadcast %244 : vector<4x1xf32> to vector<4x256xf32>
    %246 = vector.broadcast %243 : vector<1x256xf32> to vector<4x256xf32>
    %247 = arith.mulf %245, %246 : vector<4x256xf32>
    %248 = arith.addf %241, %247 : vector<4x256xf32>
    %c0_133 = arith.constant 0 : index
    %c33_134 = arith.constant 33 : index
    %249 = vector.load %arg9[%c0_133, %c33_134] : memref<12x290xf32, #tpu.memory_space<vmem>>, vector<1x256xf32>
    %c0_135 = arith.constant 0 : index
    %c7_136 = arith.constant 7 : index
    %250 = vector.load %arg4[%c0_135, %c7_136] : memref<4x108xf32, #tpu.memory_space<vmem>>, vector<4x1xf32>
    %251 = vector.broadcast %250 : vector<4x1xf32> to vector<4x256xf32>
    %252 = vector.broadcast %249 : vector<1x256xf32> to vector<4x256xf32>
    %253 = arith.mulf %251, %252 : vector<4x256xf32>
    %254 = arith.addf %248, %253 : vector<4x256xf32>
    %c0_137 = arith.constant 0 : index
    %c34_138 = arith.constant 34 : index
    %255 = vector.load %arg9[%c0_137, %c34_138] : memref<12x290xf32, #tpu.memory_space<vmem>>, vector<1x256xf32>
    %256 = arith.mulf %255, %1 : vector<1x256xf32>
    %c0_139 = arith.constant 0 : index
    %c8_140 = arith.constant 8 : index
    %257 = vector.load %arg4[%c0_139, %c8_140] : memref<4x108xf32, #tpu.memory_space<vmem>>, vector<4x1xf32>
    %258 = vector.broadcast %257 : vector<4x1xf32> to vector<4x256xf32>
    %259 = vector.broadcast %256 : vector<1x256xf32> to vector<4x256xf32>
    %260 = arith.mulf %258, %259 : vector<4x256xf32>
    %261 = arith.addf %254, %260 : vector<4x256xf32>
    %c1_141 = arith.constant 1 : index
    %c0_142 = arith.constant 0 : index
    %262 = vector.load %arg9[%c1_141, %c0_142] : memref<12x290xf32, #tpu.memory_space<vmem>>, vector<1x256xf32>
    %263 = arith.mulf %262, %0 : vector<1x256xf32>
    %c0_143 = arith.constant 0 : index
    %c9_144 = arith.constant 9 : index
    %264 = vector.load %arg4[%c0_143, %c9_144] : memref<4x108xf32, #tpu.memory_space<vmem>>, vector<4x1xf32>
    %265 = vector.broadcast %264 : vector<4x1xf32> to vector<4x256xf32>
    %266 = vector.broadcast %263 : vector<1x256xf32> to vector<4x256xf32>
    %267 = arith.mulf %265, %266 : vector<4x256xf32>
    %268 = arith.addf %261, %267 : vector<4x256xf32>
    %c1_145 = arith.constant 1 : index
    %c1_146 = arith.constant 1 : index
    %269 = vector.load %arg9[%c1_145, %c1_146] : memref<12x290xf32, #tpu.memory_space<vmem>>, vector<1x256xf32>
    %c0_147 = arith.constant 0 : index
    %c10_148 = arith.constant 10 : index
    %270 = vector.load %arg4[%c0_147, %c10_148] : memref<4x108xf32, #tpu.memory_space<vmem>>, vector<4x1xf32>
    %271 = vector.broadcast %270 : vector<4x1xf32> to vector<4x256xf32>
    %272 = vector.broadcast %269 : vector<1x256xf32> to vector<4x256xf32>
    %273 = arith.mulf %271, %272 : vector<4x256xf32>
    %274 = arith.addf %268, %273 : vector<4x256xf32>
    %c1_149 = arith.constant 1 : index
    %c2_150 = arith.constant 2 : index
    %275 = vector.load %arg9[%c1_149, %c2_150] : memref<12x290xf32, #tpu.memory_space<vmem>>, vector<1x256xf32>
    %276 = arith.mulf %275, %1 : vector<1x256xf32>
    %c0_151 = arith.constant 0 : index
    %c11_152 = arith.constant 11 : index
    %277 = vector.load %arg4[%c0_151, %c11_152] : memref<4x108xf32, #tpu.memory_space<vmem>>, vector<4x1xf32>
    %278 = vector.broadcast %277 : vector<4x1xf32> to vector<4x256xf32>
    %279 = vector.broadcast %276 : vector<1x256xf32> to vector<4x256xf32>
    %280 = arith.mulf %278, %279 : vector<4x256xf32>
    %281 = arith.addf %274, %280 : vector<4x256xf32>
    %c1_153 = arith.constant 1 : index
    %c16_154 = arith.constant 16 : index
    %282 = vector.load %arg9[%c1_153, %c16_154] : memref<12x290xf32, #tpu.memory_space<vmem>>, vector<1x256xf32>
    %283 = arith.mulf %282, %0 : vector<1x256xf32>
    %c0_155 = arith.constant 0 : index
    %c12_156 = arith.constant 12 : index
    %284 = vector.load %arg4[%c0_155, %c12_156] : memref<4x108xf32, #tpu.memory_space<vmem>>, vector<4x1xf32>
    %285 = vector.broadcast %284 : vector<4x1xf32> to vector<4x256xf32>
    %286 = vector.broadcast %283 : vector<1x256xf32> to vector<4x256xf32>
    %287 = arith.mulf %285, %286 : vector<4x256xf32>
    %288 = arith.addf %281, %287 : vector<4x256xf32>
    %c1_157 = arith.constant 1 : index
    %c17_158 = arith.constant 17 : index
    %289 = vector.load %arg9[%c1_157, %c17_158] : memref<12x290xf32, #tpu.memory_space<vmem>>, vector<1x256xf32>
    %c0_159 = arith.constant 0 : index
    %c13_160 = arith.constant 13 : index
    %290 = vector.load %arg4[%c0_159, %c13_160] : memref<4x108xf32, #tpu.memory_space<vmem>>, vector<4x1xf32>
    %291 = vector.broadcast %290 : vector<4x1xf32> to vector<4x256xf32>
    %292 = vector.broadcast %289 : vector<1x256xf32> to vector<4x256xf32>
    %293 = arith.mulf %291, %292 : vector<4x256xf32>
    %294 = arith.addf %288, %293 : vector<4x256xf32>
    %c1_161 = arith.constant 1 : index
    %c18_162 = arith.constant 18 : index
    %295 = vector.load %arg9[%c1_161, %c18_162] : memref<12x290xf32, #tpu.memory_space<vmem>>, vector<1x256xf32>
    %296 = arith.mulf %295, %1 : vector<1x256xf32>
    %c0_163 = arith.constant 0 : index
    %c14_164 = arith.constant 14 : index
    %297 = vector.load %arg4[%c0_163, %c14_164] : memref<4x108xf32, #tpu.memory_space<vmem>>, vector<4x1xf32>
    %298 = vector.broadcast %297 : vector<4x1xf32> to vector<4x256xf32>
    %299 = vector.broadcast %296 : vector<1x256xf32> to vector<4x256xf32>
    %300 = arith.mulf %298, %299 : vector<4x256xf32>
    %301 = arith.addf %294, %300 : vector<4x256xf32>
    %c1_165 = arith.constant 1 : index
    %c32_166 = arith.constant 32 : index
    %302 = vector.load %arg9[%c1_165, %c32_166] : memref<12x290xf32, #tpu.memory_space<vmem>>, vector<1x256xf32>
    %303 = arith.mulf %302, %0 : vector<1x256xf32>
    %c0_167 = arith.constant 0 : index
    %c15_168 = arith.constant 15 : index
    %304 = vector.load %arg4[%c0_167, %c15_168] : memref<4x108xf32, #tpu.memory_space<vmem>>, vector<4x1xf32>
    %305 = vector.broadcast %304 : vector<4x1xf32> to vector<4x256xf32>
    %306 = vector.broadcast %303 : vector<1x256xf32> to vector<4x256xf32>
    %307 = arith.mulf %305, %306 : vector<4x256xf32>
    %308 = arith.addf %301, %307 : vector<4x256xf32>
    %c1_169 = arith.constant 1 : index
    %c33_170 = arith.constant 33 : index
    %309 = vector.load %arg9[%c1_169, %c33_170] : memref<12x290xf32, #tpu.memory_space<vmem>>, vector<1x256xf32>
    %c0_171 = arith.constant 0 : index
    %c16_172 = arith.constant 16 : index
    %310 = vector.load %arg4[%c0_171, %c16_172] : memref<4x108xf32, #tpu.memory_space<vmem>>, vector<4x1xf32>
    %311 = vector.broadcast %310 : vector<4x1xf32> to vector<4x256xf32>
    %312 = vector.broadcast %309 : vector<1x256xf32> to vector<4x256xf32>
    %313 = arith.mulf %311, %312 : vector<4x256xf32>
    %314 = arith.addf %308, %313 : vector<4x256xf32>
    %c1_173 = arith.constant 1 : index
    %c34_174 = arith.constant 34 : index
    %315 = vector.load %arg9[%c1_173, %c34_174] : memref<12x290xf32, #tpu.memory_space<vmem>>, vector<1x256xf32>
    %316 = arith.mulf %315, %1 : vector<1x256xf32>
    %c0_175 = arith.constant 0 : index
    %c17_176 = arith.constant 17 : index
    %317 = vector.load %arg4[%c0_175, %c17_176] : memref<4x108xf32, #tpu.memory_space<vmem>>, vector<4x1xf32>
    %318 = vector.broadcast %317 : vector<4x1xf32> to vector<4x256xf32>
    %319 = vector.broadcast %316 : vector<1x256xf32> to vector<4x256xf32>
    %320 = arith.mulf %318, %319 : vector<4x256xf32>
    %321 = arith.addf %314, %320 : vector<4x256xf32>
    %c2_177 = arith.constant 2 : index
    %c0_178 = arith.constant 0 : index
    %322 = vector.load %arg9[%c2_177, %c0_178] : memref<12x290xf32, #tpu.memory_space<vmem>>, vector<1x256xf32>
    %323 = arith.mulf %322, %0 : vector<1x256xf32>
    %c0_179 = arith.constant 0 : index
    %c18_180 = arith.constant 18 : index
    %324 = vector.load %arg4[%c0_179, %c18_180] : memref<4x108xf32, #tpu.memory_space<vmem>>, vector<4x1xf32>
    %325 = vector.broadcast %324 : vector<4x1xf32> to vector<4x256xf32>
    %326 = vector.broadcast %323 : vector<1x256xf32> to vector<4x256xf32>
    %327 = arith.mulf %325, %326 : vector<4x256xf32>
    %328 = arith.addf %321, %327 : vector<4x256xf32>
    %c2_181 = arith.constant 2 : index
    %c1_182 = arith.constant 1 : index
    %329 = vector.load %arg9[%c2_181, %c1_182] : memref<12x290xf32, #tpu.memory_space<vmem>>, vector<1x256xf32>
    %c0_183 = arith.constant 0 : index
    %c19_184 = arith.constant 19 : index
    %330 = vector.load %arg4[%c0_183, %c19_184] : memref<4x108xf32, #tpu.memory_space<vmem>>, vector<4x1xf32>
    %331 = vector.broadcast %330 : vector<4x1xf32> to vector<4x256xf32>
    %332 = vector.broadcast %329 : vector<1x256xf32> to vector<4x256xf32>
    %333 = arith.mulf %331, %332 : vector<4x256xf32>
    %334 = arith.addf %328, %333 : vector<4x256xf32>
    %c2_185 = arith.constant 2 : index
    %c2_186 = arith.constant 2 : index
    %335 = vector.load %arg9[%c2_185, %c2_186] : memref<12x290xf32, #tpu.memory_space<vmem>>, vector<1x256xf32>
    %336 = arith.mulf %335, %1 : vector<1x256xf32>
    %c0_187 = arith.constant 0 : index
    %c20_188 = arith.constant 20 : index
    %337 = vector.load %arg4[%c0_187, %c20_188] : memref<4x108xf32, #tpu.memory_space<vmem>>, vector<4x1xf32>
    %338 = vector.broadcast %337 : vector<4x1xf32> to vector<4x256xf32>
    %339 = vector.broadcast %336 : vector<1x256xf32> to vector<4x256xf32>
    %340 = arith.mulf %338, %339 : vector<4x256xf32>
    %341 = arith.addf %334, %340 : vector<4x256xf32>
    %c2_189 = arith.constant 2 : index
    %c16_190 = arith.constant 16 : index
    %342 = vector.load %arg9[%c2_189, %c16_190] : memref<12x290xf32, #tpu.memory_space<vmem>>, vector<1x256xf32>
    %343 = arith.mulf %342, %0 : vector<1x256xf32>
    %c0_191 = arith.constant 0 : index
    %c21_192 = arith.constant 21 : index
    %344 = vector.load %arg4[%c0_191, %c21_192] : memref<4x108xf32, #tpu.memory_space<vmem>>, vector<4x1xf32>
    %345 = vector.broadcast %344 : vector<4x1xf32> to vector<4x256xf32>
    %346 = vector.broadcast %343 : vector<1x256xf32> to vector<4x256xf32>
    %347 = arith.mulf %345, %346 : vector<4x256xf32>
    %348 = arith.addf %341, %347 : vector<4x256xf32>
    %c2_193 = arith.constant 2 : index
    %c17_194 = arith.constant 17 : index
    %349 = vector.load %arg9[%c2_193, %c17_194] : memref<12x290xf32, #tpu.memory_space<vmem>>, vector<1x256xf32>
    %c0_195 = arith.constant 0 : index
    %c22_196 = arith.constant 22 : index
    %350 = vector.load %arg4[%c0_195, %c22_196] : memref<4x108xf32, #tpu.memory_space<vmem>>, vector<4x1xf32>
    %351 = vector.broadcast %350 : vector<4x1xf32> to vector<4x256xf32>
    %352 = vector.broadcast %349 : vector<1x256xf32> to vector<4x256xf32>
    %353 = arith.mulf %351, %352 : vector<4x256xf32>
    %354 = arith.addf %348, %353 : vector<4x256xf32>
    %c2_197 = arith.constant 2 : index
    %c18_198 = arith.constant 18 : index
    %355 = vector.load %arg9[%c2_197, %c18_198] : memref<12x290xf32, #tpu.memory_space<vmem>>, vector<1x256xf32>
    %356 = arith.mulf %355, %1 : vector<1x256xf32>
    %c0_199 = arith.constant 0 : index
    %c23_200 = arith.constant 23 : index
    %357 = vector.load %arg4[%c0_199, %c23_200] : memref<4x108xf32, #tpu.memory_space<vmem>>, vector<4x1xf32>
    %358 = vector.broadcast %357 : vector<4x1xf32> to vector<4x256xf32>
    %359 = vector.broadcast %356 : vector<1x256xf32> to vector<4x256xf32>
    %360 = arith.mulf %358, %359 : vector<4x256xf32>
    %361 = arith.addf %354, %360 : vector<4x256xf32>
    %c2_201 = arith.constant 2 : index
    %c32_202 = arith.constant 32 : index
    %362 = vector.load %arg9[%c2_201, %c32_202] : memref<12x290xf32, #tpu.memory_space<vmem>>, vector<1x256xf32>
    %363 = arith.mulf %362, %0 : vector<1x256xf32>
    %c0_203 = arith.constant 0 : index
    %c24_204 = arith.constant 24 : index
    %364 = vector.load %arg4[%c0_203, %c24_204] : memref<4x108xf32, #tpu.memory_space<vmem>>, vector<4x1xf32>
    %365 = vector.broadcast %364 : vector<4x1xf32> to vector<4x256xf32>
    %366 = vector.broadcast %363 : vector<1x256xf32> to vector<4x256xf32>
    %367 = arith.mulf %365, %366 : vector<4x256xf32>
    %368 = arith.addf %361, %367 : vector<4x256xf32>
    %c2_205 = arith.constant 2 : index
    %c33_206 = arith.constant 33 : index
    %369 = vector.load %arg9[%c2_205, %c33_206] : memref<12x290xf32, #tpu.memory_space<vmem>>, vector<1x256xf32>
    %c0_207 = arith.constant 0 : index
    %c25_208 = arith.constant 25 : index
    %370 = vector.load %arg4[%c0_207, %c25_208] : memref<4x108xf32, #tpu.memory_space<vmem>>, vector<4x1xf32>
    %371 = vector.broadcast %370 : vector<4x1xf32> to vector<4x256xf32>
    %372 = vector.broadcast %369 : vector<1x256xf32> to vector<4x256xf32>
    %373 = arith.mulf %371, %372 : vector<4x256xf32>
    %374 = arith.addf %368, %373 : vector<4x256xf32>
    %c2_209 = arith.constant 2 : index
    %c34_210 = arith.constant 34 : index
    %375 = vector.load %arg9[%c2_209, %c34_210] : memref<12x290xf32, #tpu.memory_space<vmem>>, vector<1x256xf32>
    %376 = arith.mulf %375, %1 : vector<1x256xf32>
    %c0_211 = arith.constant 0 : index
    %c26_212 = arith.constant 26 : index
    %377 = vector.load %arg4[%c0_211, %c26_212] : memref<4x108xf32, #tpu.memory_space<vmem>>, vector<4x1xf32>
    %378 = vector.broadcast %377 : vector<4x1xf32> to vector<4x256xf32>
    %379 = vector.broadcast %376 : vector<1x256xf32> to vector<4x256xf32>
    %380 = arith.mulf %378, %379 : vector<4x256xf32>
    %381 = arith.addf %374, %380 : vector<4x256xf32>
    %c3_213 = arith.constant 3 : index
    %c0_214 = arith.constant 0 : index
    %382 = vector.load %arg9[%c3_213, %c0_214] : memref<12x290xf32, #tpu.memory_space<vmem>>, vector<1x256xf32>
    %383 = arith.mulf %382, %0 : vector<1x256xf32>
    %c0_215 = arith.constant 0 : index
    %c27 = arith.constant 27 : index
    %384 = vector.load %arg4[%c0_215, %c27] : memref<4x108xf32, #tpu.memory_space<vmem>>, vector<4x1xf32>
    %385 = vector.broadcast %384 : vector<4x1xf32> to vector<4x256xf32>
    %386 = vector.broadcast %383 : vector<1x256xf32> to vector<4x256xf32>
    %387 = arith.mulf %385, %386 : vector<4x256xf32>
    %388 = arith.addf %381, %387 : vector<4x256xf32>
    %c3_216 = arith.constant 3 : index
    %c1_217 = arith.constant 1 : index
    %389 = vector.load %arg9[%c3_216, %c1_217] : memref<12x290xf32, #tpu.memory_space<vmem>>, vector<1x256xf32>
    %c0_218 = arith.constant 0 : index
    %c28 = arith.constant 28 : index
    %390 = vector.load %arg4[%c0_218, %c28] : memref<4x108xf32, #tpu.memory_space<vmem>>, vector<4x1xf32>
    %391 = vector.broadcast %390 : vector<4x1xf32> to vector<4x256xf32>
    %392 = vector.broadcast %389 : vector<1x256xf32> to vector<4x256xf32>
    %393 = arith.mulf %391, %392 : vector<4x256xf32>
    %394 = arith.addf %388, %393 : vector<4x256xf32>
    %c3_219 = arith.constant 3 : index
    %c2_220 = arith.constant 2 : index
    %395 = vector.load %arg9[%c3_219, %c2_220] : memref<12x290xf32, #tpu.memory_space<vmem>>, vector<1x256xf32>
    %396 = arith.mulf %395, %1 : vector<1x256xf32>
    %c0_221 = arith.constant 0 : index
    %c29 = arith.constant 29 : index
    %397 = vector.load %arg4[%c0_221, %c29] : memref<4x108xf32, #tpu.memory_space<vmem>>, vector<4x1xf32>
    %398 = vector.broadcast %397 : vector<4x1xf32> to vector<4x256xf32>
    %399 = vector.broadcast %396 : vector<1x256xf32> to vector<4x256xf32>
    %400 = arith.mulf %398, %399 : vector<4x256xf32>
    %401 = arith.addf %394, %400 : vector<4x256xf32>
    %c3_222 = arith.constant 3 : index
    %c16_223 = arith.constant 16 : index
    %402 = vector.load %arg9[%c3_222, %c16_223] : memref<12x290xf32, #tpu.memory_space<vmem>>, vector<1x256xf32>
    %403 = arith.mulf %402, %0 : vector<1x256xf32>
    %c0_224 = arith.constant 0 : index
    %c30 = arith.constant 30 : index
    %404 = vector.load %arg4[%c0_224, %c30] : memref<4x108xf32, #tpu.memory_space<vmem>>, vector<4x1xf32>
    %405 = vector.broadcast %404 : vector<4x1xf32> to vector<4x256xf32>
    %406 = vector.broadcast %403 : vector<1x256xf32> to vector<4x256xf32>
    %407 = arith.mulf %405, %406 : vector<4x256xf32>
    %408 = arith.addf %401, %407 : vector<4x256xf32>
    %c3_225 = arith.constant 3 : index
    %c17_226 = arith.constant 17 : index
    %409 = vector.load %arg9[%c3_225, %c17_226] : memref<12x290xf32, #tpu.memory_space<vmem>>, vector<1x256xf32>
    %c0_227 = arith.constant 0 : index
    %c31 = arith.constant 31 : index
    %410 = vector.load %arg4[%c0_227, %c31] : memref<4x108xf32, #tpu.memory_space<vmem>>, vector<4x1xf32>
    %411 = vector.broadcast %410 : vector<4x1xf32> to vector<4x256xf32>
    %412 = vector.broadcast %409 : vector<1x256xf32> to vector<4x256xf32>
    %413 = arith.mulf %411, %412 : vector<4x256xf32>
    %414 = arith.addf %408, %413 : vector<4x256xf32>
    %c3_228 = arith.constant 3 : index
    %c18_229 = arith.constant 18 : index
    %415 = vector.load %arg9[%c3_228, %c18_229] : memref<12x290xf32, #tpu.memory_space<vmem>>, vector<1x256xf32>
    %416 = arith.mulf %415, %1 : vector<1x256xf32>
    %c0_230 = arith.constant 0 : index
    %c32_231 = arith.constant 32 : index
    %417 = vector.load %arg4[%c0_230, %c32_231] : memref<4x108xf32, #tpu.memory_space<vmem>>, vector<4x1xf32>
    %418 = vector.broadcast %417 : vector<4x1xf32> to vector<4x256xf32>
    %419 = vector.broadcast %416 : vector<1x256xf32> to vector<4x256xf32>
    %420 = arith.mulf %418, %419 : vector<4x256xf32>
    %421 = arith.addf %414, %420 : vector<4x256xf32>
    %c3_232 = arith.constant 3 : index
    %c32_233 = arith.constant 32 : index
    %422 = vector.load %arg9[%c3_232, %c32_233] : memref<12x290xf32, #tpu.memory_space<vmem>>, vector<1x256xf32>
    %423 = arith.mulf %422, %0 : vector<1x256xf32>
    %c0_234 = arith.constant 0 : index
    %c33_235 = arith.constant 33 : index
    %424 = vector.load %arg4[%c0_234, %c33_235] : memref<4x108xf32, #tpu.memory_space<vmem>>, vector<4x1xf32>
    %425 = vector.broadcast %424 : vector<4x1xf32> to vector<4x256xf32>
    %426 = vector.broadcast %423 : vector<1x256xf32> to vector<4x256xf32>
    %427 = arith.mulf %425, %426 : vector<4x256xf32>
    %428 = arith.addf %421, %427 : vector<4x256xf32>
    %c3_236 = arith.constant 3 : index
    %c33_237 = arith.constant 33 : index
    %429 = vector.load %arg9[%c3_236, %c33_237] : memref<12x290xf32, #tpu.memory_space<vmem>>, vector<1x256xf32>
    %c0_238 = arith.constant 0 : index
    %c34_239 = arith.constant 34 : index
    %430 = vector.load %arg4[%c0_238, %c34_239] : memref<4x108xf32, #tpu.memory_space<vmem>>, vector<4x1xf32>
    %431 = vector.broadcast %430 : vector<4x1xf32> to vector<4x256xf32>
    %432 = vector.broadcast %429 : vector<1x256xf32> to vector<4x256xf32>
    %433 = arith.mulf %431, %432 : vector<4x256xf32>
    %434 = arith.addf %428, %433 : vector<4x256xf32>
    %c3_240 = arith.constant 3 : index
    %c34_241 = arith.constant 34 : index
    %435 = vector.load %arg9[%c3_240, %c34_241] : memref<12x290xf32, #tpu.memory_space<vmem>>, vector<1x256xf32>
    %436 = arith.mulf %435, %1 : vector<1x256xf32>
    %c0_242 = arith.constant 0 : index
    %c35 = arith.constant 35 : index
    %437 = vector.load %arg4[%c0_242, %c35] : memref<4x108xf32, #tpu.memory_space<vmem>>, vector<4x1xf32>
    %438 = vector.broadcast %437 : vector<4x1xf32> to vector<4x256xf32>
    %439 = vector.broadcast %436 : vector<1x256xf32> to vector<4x256xf32>
    %440 = arith.mulf %438, %439 : vector<4x256xf32>
    %441 = arith.addf %434, %440 : vector<4x256xf32>
    %c4_243 = arith.constant 4 : index
    %c0_244 = arith.constant 0 : index
    %442 = vector.load %arg9[%c4_243, %c0_244] : memref<12x290xf32, #tpu.memory_space<vmem>>, vector<1x256xf32>
    %443 = arith.mulf %442, %0 : vector<1x256xf32>
    %c0_245 = arith.constant 0 : index
    %c36 = arith.constant 36 : index
    %444 = vector.load %arg4[%c0_245, %c36] : memref<4x108xf32, #tpu.memory_space<vmem>>, vector<4x1xf32>
    %445 = vector.broadcast %444 : vector<4x1xf32> to vector<4x256xf32>
    %446 = vector.broadcast %443 : vector<1x256xf32> to vector<4x256xf32>
    %447 = arith.mulf %445, %446 : vector<4x256xf32>
    %448 = arith.addf %441, %447 : vector<4x256xf32>
    %c4_246 = arith.constant 4 : index
    %c1_247 = arith.constant 1 : index
    %449 = vector.load %arg9[%c4_246, %c1_247] : memref<12x290xf32, #tpu.memory_space<vmem>>, vector<1x256xf32>
    %c0_248 = arith.constant 0 : index
    %c37 = arith.constant 37 : index
    %450 = vector.load %arg4[%c0_248, %c37] : memref<4x108xf32, #tpu.memory_space<vmem>>, vector<4x1xf32>
    %451 = vector.broadcast %450 : vector<4x1xf32> to vector<4x256xf32>
    %452 = vector.broadcast %449 : vector<1x256xf32> to vector<4x256xf32>
    %453 = arith.mulf %451, %452 : vector<4x256xf32>
    %454 = arith.addf %448, %453 : vector<4x256xf32>
    %c4_249 = arith.constant 4 : index
    %c2_250 = arith.constant 2 : index
    %455 = vector.load %arg9[%c4_249, %c2_250] : memref<12x290xf32, #tpu.memory_space<vmem>>, vector<1x256xf32>
    %456 = arith.mulf %455, %1 : vector<1x256xf32>
    %c0_251 = arith.constant 0 : index
    %c38 = arith.constant 38 : index
    %457 = vector.load %arg4[%c0_251, %c38] : memref<4x108xf32, #tpu.memory_space<vmem>>, vector<4x1xf32>
    %458 = vector.broadcast %457 : vector<4x1xf32> to vector<4x256xf32>
    %459 = vector.broadcast %456 : vector<1x256xf32> to vector<4x256xf32>
    %460 = arith.mulf %458, %459 : vector<4x256xf32>
    %461 = arith.addf %454, %460 : vector<4x256xf32>
    %c4_252 = arith.constant 4 : index
    %c16_253 = arith.constant 16 : index
    %462 = vector.load %arg9[%c4_252, %c16_253] : memref<12x290xf32, #tpu.memory_space<vmem>>, vector<1x256xf32>
    %463 = arith.mulf %462, %0 : vector<1x256xf32>
    %c0_254 = arith.constant 0 : index
    %c39 = arith.constant 39 : index
    %464 = vector.load %arg4[%c0_254, %c39] : memref<4x108xf32, #tpu.memory_space<vmem>>, vector<4x1xf32>
    %465 = vector.broadcast %464 : vector<4x1xf32> to vector<4x256xf32>
    %466 = vector.broadcast %463 : vector<1x256xf32> to vector<4x256xf32>
    %467 = arith.mulf %465, %466 : vector<4x256xf32>
    %468 = arith.addf %461, %467 : vector<4x256xf32>
    %c4_255 = arith.constant 4 : index
    %c17_256 = arith.constant 17 : index
    %469 = vector.load %arg9[%c4_255, %c17_256] : memref<12x290xf32, #tpu.memory_space<vmem>>, vector<1x256xf32>
    %c0_257 = arith.constant 0 : index
    %c40 = arith.constant 40 : index
    %470 = vector.load %arg4[%c0_257, %c40] : memref<4x108xf32, #tpu.memory_space<vmem>>, vector<4x1xf32>
    %471 = vector.broadcast %470 : vector<4x1xf32> to vector<4x256xf32>
    %472 = vector.broadcast %469 : vector<1x256xf32> to vector<4x256xf32>
    %473 = arith.mulf %471, %472 : vector<4x256xf32>
    %474 = arith.addf %468, %473 : vector<4x256xf32>
    %c4_258 = arith.constant 4 : index
    %c18_259 = arith.constant 18 : index
    %475 = vector.load %arg9[%c4_258, %c18_259] : memref<12x290xf32, #tpu.memory_space<vmem>>, vector<1x256xf32>
    %476 = arith.mulf %475, %1 : vector<1x256xf32>
    %c0_260 = arith.constant 0 : index
    %c41 = arith.constant 41 : index
    %477 = vector.load %arg4[%c0_260, %c41] : memref<4x108xf32, #tpu.memory_space<vmem>>, vector<4x1xf32>
    %478 = vector.broadcast %477 : vector<4x1xf32> to vector<4x256xf32>
    %479 = vector.broadcast %476 : vector<1x256xf32> to vector<4x256xf32>
    %480 = arith.mulf %478, %479 : vector<4x256xf32>
    %481 = arith.addf %474, %480 : vector<4x256xf32>
    %c4_261 = arith.constant 4 : index
    %c32_262 = arith.constant 32 : index
    %482 = vector.load %arg9[%c4_261, %c32_262] : memref<12x290xf32, #tpu.memory_space<vmem>>, vector<1x256xf32>
    %483 = arith.mulf %482, %0 : vector<1x256xf32>
    %c0_263 = arith.constant 0 : index
    %c42 = arith.constant 42 : index
    %484 = vector.load %arg4[%c0_263, %c42] : memref<4x108xf32, #tpu.memory_space<vmem>>, vector<4x1xf32>
    %485 = vector.broadcast %484 : vector<4x1xf32> to vector<4x256xf32>
    %486 = vector.broadcast %483 : vector<1x256xf32> to vector<4x256xf32>
    %487 = arith.mulf %485, %486 : vector<4x256xf32>
    %488 = arith.addf %481, %487 : vector<4x256xf32>
    %c4_264 = arith.constant 4 : index
    %c33_265 = arith.constant 33 : index
    %489 = vector.load %arg9[%c4_264, %c33_265] : memref<12x290xf32, #tpu.memory_space<vmem>>, vector<1x256xf32>
    %c0_266 = arith.constant 0 : index
    %c43 = arith.constant 43 : index
    %490 = vector.load %arg4[%c0_266, %c43] : memref<4x108xf32, #tpu.memory_space<vmem>>, vector<4x1xf32>
    %491 = vector.broadcast %490 : vector<4x1xf32> to vector<4x256xf32>
    %492 = vector.broadcast %489 : vector<1x256xf32> to vector<4x256xf32>
    %493 = arith.mulf %491, %492 : vector<4x256xf32>
    %494 = arith.addf %488, %493 : vector<4x256xf32>
    %c4_267 = arith.constant 4 : index
    %c34_268 = arith.constant 34 : index
    %495 = vector.load %arg9[%c4_267, %c34_268] : memref<12x290xf32, #tpu.memory_space<vmem>>, vector<1x256xf32>
    %496 = arith.mulf %495, %1 : vector<1x256xf32>
    %c0_269 = arith.constant 0 : index
    %c44 = arith.constant 44 : index
    %497 = vector.load %arg4[%c0_269, %c44] : memref<4x108xf32, #tpu.memory_space<vmem>>, vector<4x1xf32>
    %498 = vector.broadcast %497 : vector<4x1xf32> to vector<4x256xf32>
    %499 = vector.broadcast %496 : vector<1x256xf32> to vector<4x256xf32>
    %500 = arith.mulf %498, %499 : vector<4x256xf32>
    %501 = arith.addf %494, %500 : vector<4x256xf32>
    %c5_270 = arith.constant 5 : index
    %c0_271 = arith.constant 0 : index
    %502 = vector.load %arg9[%c5_270, %c0_271] : memref<12x290xf32, #tpu.memory_space<vmem>>, vector<1x256xf32>
    %503 = arith.mulf %502, %0 : vector<1x256xf32>
    %c0_272 = arith.constant 0 : index
    %c45 = arith.constant 45 : index
    %504 = vector.load %arg4[%c0_272, %c45] : memref<4x108xf32, #tpu.memory_space<vmem>>, vector<4x1xf32>
    %505 = vector.broadcast %504 : vector<4x1xf32> to vector<4x256xf32>
    %506 = vector.broadcast %503 : vector<1x256xf32> to vector<4x256xf32>
    %507 = arith.mulf %505, %506 : vector<4x256xf32>
    %508 = arith.addf %501, %507 : vector<4x256xf32>
    %c5_273 = arith.constant 5 : index
    %c1_274 = arith.constant 1 : index
    %509 = vector.load %arg9[%c5_273, %c1_274] : memref<12x290xf32, #tpu.memory_space<vmem>>, vector<1x256xf32>
    %c0_275 = arith.constant 0 : index
    %c46 = arith.constant 46 : index
    %510 = vector.load %arg4[%c0_275, %c46] : memref<4x108xf32, #tpu.memory_space<vmem>>, vector<4x1xf32>
    %511 = vector.broadcast %510 : vector<4x1xf32> to vector<4x256xf32>
    %512 = vector.broadcast %509 : vector<1x256xf32> to vector<4x256xf32>
    %513 = arith.mulf %511, %512 : vector<4x256xf32>
    %514 = arith.addf %508, %513 : vector<4x256xf32>
    %c5_276 = arith.constant 5 : index
    %c2_277 = arith.constant 2 : index
    %515 = vector.load %arg9[%c5_276, %c2_277] : memref<12x290xf32, #tpu.memory_space<vmem>>, vector<1x256xf32>
    %516 = arith.mulf %515, %1 : vector<1x256xf32>
    %c0_278 = arith.constant 0 : index
    %c47 = arith.constant 47 : index
    %517 = vector.load %arg4[%c0_278, %c47] : memref<4x108xf32, #tpu.memory_space<vmem>>, vector<4x1xf32>
    %518 = vector.broadcast %517 : vector<4x1xf32> to vector<4x256xf32>
    %519 = vector.broadcast %516 : vector<1x256xf32> to vector<4x256xf32>
    %520 = arith.mulf %518, %519 : vector<4x256xf32>
    %521 = arith.addf %514, %520 : vector<4x256xf32>
    %c5_279 = arith.constant 5 : index
    %c16_280 = arith.constant 16 : index
    %522 = vector.load %arg9[%c5_279, %c16_280] : memref<12x290xf32, #tpu.memory_space<vmem>>, vector<1x256xf32>
    %523 = arith.mulf %522, %0 : vector<1x256xf32>
    %c0_281 = arith.constant 0 : index
    %c48 = arith.constant 48 : index
    %524 = vector.load %arg4[%c0_281, %c48] : memref<4x108xf32, #tpu.memory_space<vmem>>, vector<4x1xf32>
    %525 = vector.broadcast %524 : vector<4x1xf32> to vector<4x256xf32>
    %526 = vector.broadcast %523 : vector<1x256xf32> to vector<4x256xf32>
    %527 = arith.mulf %525, %526 : vector<4x256xf32>
    %528 = arith.addf %521, %527 : vector<4x256xf32>
    %c5_282 = arith.constant 5 : index
    %c17_283 = arith.constant 17 : index
    %529 = vector.load %arg9[%c5_282, %c17_283] : memref<12x290xf32, #tpu.memory_space<vmem>>, vector<1x256xf32>
    %c0_284 = arith.constant 0 : index
    %c49 = arith.constant 49 : index
    %530 = vector.load %arg4[%c0_284, %c49] : memref<4x108xf32, #tpu.memory_space<vmem>>, vector<4x1xf32>
    %531 = vector.broadcast %530 : vector<4x1xf32> to vector<4x256xf32>
    %532 = vector.broadcast %529 : vector<1x256xf32> to vector<4x256xf32>
    %533 = arith.mulf %531, %532 : vector<4x256xf32>
    %534 = arith.addf %528, %533 : vector<4x256xf32>
    %c5_285 = arith.constant 5 : index
    %c18_286 = arith.constant 18 : index
    %535 = vector.load %arg9[%c5_285, %c18_286] : memref<12x290xf32, #tpu.memory_space<vmem>>, vector<1x256xf32>
    %536 = arith.mulf %535, %1 : vector<1x256xf32>
    %c0_287 = arith.constant 0 : index
    %c50 = arith.constant 50 : index
    %537 = vector.load %arg4[%c0_287, %c50] : memref<4x108xf32, #tpu.memory_space<vmem>>, vector<4x1xf32>
    %538 = vector.broadcast %537 : vector<4x1xf32> to vector<4x256xf32>
    %539 = vector.broadcast %536 : vector<1x256xf32> to vector<4x256xf32>
    %540 = arith.mulf %538, %539 : vector<4x256xf32>
    %541 = arith.addf %534, %540 : vector<4x256xf32>
    %c5_288 = arith.constant 5 : index
    %c32_289 = arith.constant 32 : index
    %542 = vector.load %arg9[%c5_288, %c32_289] : memref<12x290xf32, #tpu.memory_space<vmem>>, vector<1x256xf32>
    %543 = arith.mulf %542, %0 : vector<1x256xf32>
    %c0_290 = arith.constant 0 : index
    %c51 = arith.constant 51 : index
    %544 = vector.load %arg4[%c0_290, %c51] : memref<4x108xf32, #tpu.memory_space<vmem>>, vector<4x1xf32>
    %545 = vector.broadcast %544 : vector<4x1xf32> to vector<4x256xf32>
    %546 = vector.broadcast %543 : vector<1x256xf32> to vector<4x256xf32>
    %547 = arith.mulf %545, %546 : vector<4x256xf32>
    %548 = arith.addf %541, %547 : vector<4x256xf32>
    %c5_291 = arith.constant 5 : index
    %c33_292 = arith.constant 33 : index
    %549 = vector.load %arg9[%c5_291, %c33_292] : memref<12x290xf32, #tpu.memory_space<vmem>>, vector<1x256xf32>
    %c0_293 = arith.constant 0 : index
    %c52 = arith.constant 52 : index
    %550 = vector.load %arg4[%c0_293, %c52] : memref<4x108xf32, #tpu.memory_space<vmem>>, vector<4x1xf32>
    %551 = vector.broadcast %550 : vector<4x1xf32> to vector<4x256xf32>
    %552 = vector.broadcast %549 : vector<1x256xf32> to vector<4x256xf32>
    %553 = arith.mulf %551, %552 : vector<4x256xf32>
    %554 = arith.addf %548, %553 : vector<4x256xf32>
    %c5_294 = arith.constant 5 : index
    %c34_295 = arith.constant 34 : index
    %555 = vector.load %arg9[%c5_294, %c34_295] : memref<12x290xf32, #tpu.memory_space<vmem>>, vector<1x256xf32>
    %556 = arith.mulf %555, %1 : vector<1x256xf32>
    %c0_296 = arith.constant 0 : index
    %c53 = arith.constant 53 : index
    %557 = vector.load %arg4[%c0_296, %c53] : memref<4x108xf32, #tpu.memory_space<vmem>>, vector<4x1xf32>
    %558 = vector.broadcast %557 : vector<4x1xf32> to vector<4x256xf32>
    %559 = vector.broadcast %556 : vector<1x256xf32> to vector<4x256xf32>
    %560 = arith.mulf %558, %559 : vector<4x256xf32>
    %561 = arith.addf %554, %560 : vector<4x256xf32>
    %c6_297 = arith.constant 6 : index
    %c0_298 = arith.constant 0 : index
    %562 = vector.load %arg9[%c6_297, %c0_298] : memref<12x290xf32, #tpu.memory_space<vmem>>, vector<1x256xf32>
    %563 = arith.mulf %562, %0 : vector<1x256xf32>
    %c0_299 = arith.constant 0 : index
    %c54 = arith.constant 54 : index
    %564 = vector.load %arg4[%c0_299, %c54] : memref<4x108xf32, #tpu.memory_space<vmem>>, vector<4x1xf32>
    %565 = vector.broadcast %564 : vector<4x1xf32> to vector<4x256xf32>
    %566 = vector.broadcast %563 : vector<1x256xf32> to vector<4x256xf32>
    %567 = arith.mulf %565, %566 : vector<4x256xf32>
    %568 = arith.addf %561, %567 : vector<4x256xf32>
    %c6_300 = arith.constant 6 : index
    %c1_301 = arith.constant 1 : index
    %569 = vector.load %arg9[%c6_300, %c1_301] : memref<12x290xf32, #tpu.memory_space<vmem>>, vector<1x256xf32>
    %c0_302 = arith.constant 0 : index
    %c55 = arith.constant 55 : index
    %570 = vector.load %arg4[%c0_302, %c55] : memref<4x108xf32, #tpu.memory_space<vmem>>, vector<4x1xf32>
    %571 = vector.broadcast %570 : vector<4x1xf32> to vector<4x256xf32>
    %572 = vector.broadcast %569 : vector<1x256xf32> to vector<4x256xf32>
    %573 = arith.mulf %571, %572 : vector<4x256xf32>
    %574 = arith.addf %568, %573 : vector<4x256xf32>
    %c6_303 = arith.constant 6 : index
    %c2_304 = arith.constant 2 : index
    %575 = vector.load %arg9[%c6_303, %c2_304] : memref<12x290xf32, #tpu.memory_space<vmem>>, vector<1x256xf32>
    %576 = arith.mulf %575, %1 : vector<1x256xf32>
    %c0_305 = arith.constant 0 : index
    %c56 = arith.constant 56 : index
    %577 = vector.load %arg4[%c0_305, %c56] : memref<4x108xf32, #tpu.memory_space<vmem>>, vector<4x1xf32>
    %578 = vector.broadcast %577 : vector<4x1xf32> to vector<4x256xf32>
    %579 = vector.broadcast %576 : vector<1x256xf32> to vector<4x256xf32>
    %580 = arith.mulf %578, %579 : vector<4x256xf32>
    %581 = arith.addf %574, %580 : vector<4x256xf32>
    %c6_306 = arith.constant 6 : index
    %c16_307 = arith.constant 16 : index
    %582 = vector.load %arg9[%c6_306, %c16_307] : memref<12x290xf32, #tpu.memory_space<vmem>>, vector<1x256xf32>
    %583 = arith.mulf %582, %0 : vector<1x256xf32>
    %c0_308 = arith.constant 0 : index
    %c57 = arith.constant 57 : index
    %584 = vector.load %arg4[%c0_308, %c57] : memref<4x108xf32, #tpu.memory_space<vmem>>, vector<4x1xf32>
    %585 = vector.broadcast %584 : vector<4x1xf32> to vector<4x256xf32>
    %586 = vector.broadcast %583 : vector<1x256xf32> to vector<4x256xf32>
    %587 = arith.mulf %585, %586 : vector<4x256xf32>
    %588 = arith.addf %581, %587 : vector<4x256xf32>
    %c6_309 = arith.constant 6 : index
    %c17_310 = arith.constant 17 : index
    %589 = vector.load %arg9[%c6_309, %c17_310] : memref<12x290xf32, #tpu.memory_space<vmem>>, vector<1x256xf32>
    %c0_311 = arith.constant 0 : index
    %c58 = arith.constant 58 : index
    %590 = vector.load %arg4[%c0_311, %c58] : memref<4x108xf32, #tpu.memory_space<vmem>>, vector<4x1xf32>
    %591 = vector.broadcast %590 : vector<4x1xf32> to vector<4x256xf32>
    %592 = vector.broadcast %589 : vector<1x256xf32> to vector<4x256xf32>
    %593 = arith.mulf %591, %592 : vector<4x256xf32>
    %594 = arith.addf %588, %593 : vector<4x256xf32>
    %c6_312 = arith.constant 6 : index
    %c18_313 = arith.constant 18 : index
    %595 = vector.load %arg9[%c6_312, %c18_313] : memref<12x290xf32, #tpu.memory_space<vmem>>, vector<1x256xf32>
    %596 = arith.mulf %595, %1 : vector<1x256xf32>
    %c0_314 = arith.constant 0 : index
    %c59 = arith.constant 59 : index
    %597 = vector.load %arg4[%c0_314, %c59] : memref<4x108xf32, #tpu.memory_space<vmem>>, vector<4x1xf32>
    %598 = vector.broadcast %597 : vector<4x1xf32> to vector<4x256xf32>
    %599 = vector.broadcast %596 : vector<1x256xf32> to vector<4x256xf32>
    %600 = arith.mulf %598, %599 : vector<4x256xf32>
    %601 = arith.addf %594, %600 : vector<4x256xf32>
    %c6_315 = arith.constant 6 : index
    %c32_316 = arith.constant 32 : index
    %602 = vector.load %arg9[%c6_315, %c32_316] : memref<12x290xf32, #tpu.memory_space<vmem>>, vector<1x256xf32>
    %603 = arith.mulf %602, %0 : vector<1x256xf32>
    %c0_317 = arith.constant 0 : index
    %c60 = arith.constant 60 : index
    %604 = vector.load %arg4[%c0_317, %c60] : memref<4x108xf32, #tpu.memory_space<vmem>>, vector<4x1xf32>
    %605 = vector.broadcast %604 : vector<4x1xf32> to vector<4x256xf32>
    %606 = vector.broadcast %603 : vector<1x256xf32> to vector<4x256xf32>
    %607 = arith.mulf %605, %606 : vector<4x256xf32>
    %608 = arith.addf %601, %607 : vector<4x256xf32>
    %c6_318 = arith.constant 6 : index
    %c33_319 = arith.constant 33 : index
    %609 = vector.load %arg9[%c6_318, %c33_319] : memref<12x290xf32, #tpu.memory_space<vmem>>, vector<1x256xf32>
    %c0_320 = arith.constant 0 : index
    %c61 = arith.constant 61 : index
    %610 = vector.load %arg4[%c0_320, %c61] : memref<4x108xf32, #tpu.memory_space<vmem>>, vector<4x1xf32>
    %611 = vector.broadcast %610 : vector<4x1xf32> to vector<4x256xf32>
    %612 = vector.broadcast %609 : vector<1x256xf32> to vector<4x256xf32>
    %613 = arith.mulf %611, %612 : vector<4x256xf32>
    %614 = arith.addf %608, %613 : vector<4x256xf32>
    %c6_321 = arith.constant 6 : index
    %c34_322 = arith.constant 34 : index
    %615 = vector.load %arg9[%c6_321, %c34_322] : memref<12x290xf32, #tpu.memory_space<vmem>>, vector<1x256xf32>
    %616 = arith.mulf %615, %1 : vector<1x256xf32>
    %c0_323 = arith.constant 0 : index
    %c62 = arith.constant 62 : index
    %617 = vector.load %arg4[%c0_323, %c62] : memref<4x108xf32, #tpu.memory_space<vmem>>, vector<4x1xf32>
    %618 = vector.broadcast %617 : vector<4x1xf32> to vector<4x256xf32>
    %619 = vector.broadcast %616 : vector<1x256xf32> to vector<4x256xf32>
    %620 = arith.mulf %618, %619 : vector<4x256xf32>
    %621 = arith.addf %614, %620 : vector<4x256xf32>
    %c7_324 = arith.constant 7 : index
    %c0_325 = arith.constant 0 : index
    %622 = vector.load %arg9[%c7_324, %c0_325] : memref<12x290xf32, #tpu.memory_space<vmem>>, vector<1x256xf32>
    %623 = arith.mulf %622, %0 : vector<1x256xf32>
    %c0_326 = arith.constant 0 : index
    %c63 = arith.constant 63 : index
    %624 = vector.load %arg4[%c0_326, %c63] : memref<4x108xf32, #tpu.memory_space<vmem>>, vector<4x1xf32>
    %625 = vector.broadcast %624 : vector<4x1xf32> to vector<4x256xf32>
    %626 = vector.broadcast %623 : vector<1x256xf32> to vector<4x256xf32>
    %627 = arith.mulf %625, %626 : vector<4x256xf32>
    %628 = arith.addf %621, %627 : vector<4x256xf32>
    %c7_327 = arith.constant 7 : index
    %c1_328 = arith.constant 1 : index
    %629 = vector.load %arg9[%c7_327, %c1_328] : memref<12x290xf32, #tpu.memory_space<vmem>>, vector<1x256xf32>
    %c0_329 = arith.constant 0 : index
    %c64 = arith.constant 64 : index
    %630 = vector.load %arg4[%c0_329, %c64] : memref<4x108xf32, #tpu.memory_space<vmem>>, vector<4x1xf32>
    %631 = vector.broadcast %630 : vector<4x1xf32> to vector<4x256xf32>
    %632 = vector.broadcast %629 : vector<1x256xf32> to vector<4x256xf32>
    %633 = arith.mulf %631, %632 : vector<4x256xf32>
    %634 = arith.addf %628, %633 : vector<4x256xf32>
    %c7_330 = arith.constant 7 : index
    %c2_331 = arith.constant 2 : index
    %635 = vector.load %arg9[%c7_330, %c2_331] : memref<12x290xf32, #tpu.memory_space<vmem>>, vector<1x256xf32>
    %636 = arith.mulf %635, %1 : vector<1x256xf32>
    %c0_332 = arith.constant 0 : index
    %c65 = arith.constant 65 : index
    %637 = vector.load %arg4[%c0_332, %c65] : memref<4x108xf32, #tpu.memory_space<vmem>>, vector<4x1xf32>
    %638 = vector.broadcast %637 : vector<4x1xf32> to vector<4x256xf32>
    %639 = vector.broadcast %636 : vector<1x256xf32> to vector<4x256xf32>
    %640 = arith.mulf %638, %639 : vector<4x256xf32>
    %641 = arith.addf %634, %640 : vector<4x256xf32>
    %c7_333 = arith.constant 7 : index
    %c16_334 = arith.constant 16 : index
    %642 = vector.load %arg9[%c7_333, %c16_334] : memref<12x290xf32, #tpu.memory_space<vmem>>, vector<1x256xf32>
    %643 = arith.mulf %642, %0 : vector<1x256xf32>
    %c0_335 = arith.constant 0 : index
    %c66 = arith.constant 66 : index
    %644 = vector.load %arg4[%c0_335, %c66] : memref<4x108xf32, #tpu.memory_space<vmem>>, vector<4x1xf32>
    %645 = vector.broadcast %644 : vector<4x1xf32> to vector<4x256xf32>
    %646 = vector.broadcast %643 : vector<1x256xf32> to vector<4x256xf32>
    %647 = arith.mulf %645, %646 : vector<4x256xf32>
    %648 = arith.addf %641, %647 : vector<4x256xf32>
    %c7_336 = arith.constant 7 : index
    %c17_337 = arith.constant 17 : index
    %649 = vector.load %arg9[%c7_336, %c17_337] : memref<12x290xf32, #tpu.memory_space<vmem>>, vector<1x256xf32>
    %c0_338 = arith.constant 0 : index
    %c67 = arith.constant 67 : index
    %650 = vector.load %arg4[%c0_338, %c67] : memref<4x108xf32, #tpu.memory_space<vmem>>, vector<4x1xf32>
    %651 = vector.broadcast %650 : vector<4x1xf32> to vector<4x256xf32>
    %652 = vector.broadcast %649 : vector<1x256xf32> to vector<4x256xf32>
    %653 = arith.mulf %651, %652 : vector<4x256xf32>
    %654 = arith.addf %648, %653 : vector<4x256xf32>
    %c7_339 = arith.constant 7 : index
    %c18_340 = arith.constant 18 : index
    %655 = vector.load %arg9[%c7_339, %c18_340] : memref<12x290xf32, #tpu.memory_space<vmem>>, vector<1x256xf32>
    %656 = arith.mulf %655, %1 : vector<1x256xf32>
    %c0_341 = arith.constant 0 : index
    %c68 = arith.constant 68 : index
    %657 = vector.load %arg4[%c0_341, %c68] : memref<4x108xf32, #tpu.memory_space<vmem>>, vector<4x1xf32>
    %658 = vector.broadcast %657 : vector<4x1xf32> to vector<4x256xf32>
    %659 = vector.broadcast %656 : vector<1x256xf32> to vector<4x256xf32>
    %660 = arith.mulf %658, %659 : vector<4x256xf32>
    %661 = arith.addf %654, %660 : vector<4x256xf32>
    %c7_342 = arith.constant 7 : index
    %c32_343 = arith.constant 32 : index
    %662 = vector.load %arg9[%c7_342, %c32_343] : memref<12x290xf32, #tpu.memory_space<vmem>>, vector<1x256xf32>
    %663 = arith.mulf %662, %0 : vector<1x256xf32>
    %c0_344 = arith.constant 0 : index
    %c69 = arith.constant 69 : index
    %664 = vector.load %arg4[%c0_344, %c69] : memref<4x108xf32, #tpu.memory_space<vmem>>, vector<4x1xf32>
    %665 = vector.broadcast %664 : vector<4x1xf32> to vector<4x256xf32>
    %666 = vector.broadcast %663 : vector<1x256xf32> to vector<4x256xf32>
    %667 = arith.mulf %665, %666 : vector<4x256xf32>
    %668 = arith.addf %661, %667 : vector<4x256xf32>
    %c7_345 = arith.constant 7 : index
    %c33_346 = arith.constant 33 : index
    %669 = vector.load %arg9[%c7_345, %c33_346] : memref<12x290xf32, #tpu.memory_space<vmem>>, vector<1x256xf32>
    %c0_347 = arith.constant 0 : index
    %c70 = arith.constant 70 : index
    %670 = vector.load %arg4[%c0_347, %c70] : memref<4x108xf32, #tpu.memory_space<vmem>>, vector<4x1xf32>
    %671 = vector.broadcast %670 : vector<4x1xf32> to vector<4x256xf32>
    %672 = vector.broadcast %669 : vector<1x256xf32> to vector<4x256xf32>
    %673 = arith.mulf %671, %672 : vector<4x256xf32>
    %674 = arith.addf %668, %673 : vector<4x256xf32>
    %c7_348 = arith.constant 7 : index
    %c34_349 = arith.constant 34 : index
    %675 = vector.load %arg9[%c7_348, %c34_349] : memref<12x290xf32, #tpu.memory_space<vmem>>, vector<1x256xf32>
    %676 = arith.mulf %675, %1 : vector<1x256xf32>
    %c0_350 = arith.constant 0 : index
    %c71 = arith.constant 71 : index
    %677 = vector.load %arg4[%c0_350, %c71] : memref<4x108xf32, #tpu.memory_space<vmem>>, vector<4x1xf32>
    %678 = vector.broadcast %677 : vector<4x1xf32> to vector<4x256xf32>
    %679 = vector.broadcast %676 : vector<1x256xf32> to vector<4x256xf32>
    %680 = arith.mulf %678, %679 : vector<4x256xf32>
    %681 = arith.addf %674, %680 : vector<4x256xf32>
    %c8_351 = arith.constant 8 : index
    %c0_352 = arith.constant 0 : index
    %682 = vector.load %arg9[%c8_351, %c0_352] : memref<12x290xf32, #tpu.memory_space<vmem>>, vector<1x256xf32>
    %683 = arith.mulf %682, %0 : vector<1x256xf32>
    %c0_353 = arith.constant 0 : index
    %c72 = arith.constant 72 : index
    %684 = vector.load %arg4[%c0_353, %c72] : memref<4x108xf32, #tpu.memory_space<vmem>>, vector<4x1xf32>
    %685 = vector.broadcast %684 : vector<4x1xf32> to vector<4x256xf32>
    %686 = vector.broadcast %683 : vector<1x256xf32> to vector<4x256xf32>
    %687 = arith.mulf %685, %686 : vector<4x256xf32>
    %688 = arith.addf %681, %687 : vector<4x256xf32>
    %c8_354 = arith.constant 8 : index
    %c1_355 = arith.constant 1 : index
    %689 = vector.load %arg9[%c8_354, %c1_355] : memref<12x290xf32, #tpu.memory_space<vmem>>, vector<1x256xf32>
    %c0_356 = arith.constant 0 : index
    %c73 = arith.constant 73 : index
    %690 = vector.load %arg4[%c0_356, %c73] : memref<4x108xf32, #tpu.memory_space<vmem>>, vector<4x1xf32>
    %691 = vector.broadcast %690 : vector<4x1xf32> to vector<4x256xf32>
    %692 = vector.broadcast %689 : vector<1x256xf32> to vector<4x256xf32>
    %693 = arith.mulf %691, %692 : vector<4x256xf32>
    %694 = arith.addf %688, %693 : vector<4x256xf32>
    %c8_357 = arith.constant 8 : index
    %c2_358 = arith.constant 2 : index
    %695 = vector.load %arg9[%c8_357, %c2_358] : memref<12x290xf32, #tpu.memory_space<vmem>>, vector<1x256xf32>
    %696 = arith.mulf %695, %1 : vector<1x256xf32>
    %c0_359 = arith.constant 0 : index
    %c74 = arith.constant 74 : index
    %697 = vector.load %arg4[%c0_359, %c74] : memref<4x108xf32, #tpu.memory_space<vmem>>, vector<4x1xf32>
    %698 = vector.broadcast %697 : vector<4x1xf32> to vector<4x256xf32>
    %699 = vector.broadcast %696 : vector<1x256xf32> to vector<4x256xf32>
    %700 = arith.mulf %698, %699 : vector<4x256xf32>
    %701 = arith.addf %694, %700 : vector<4x256xf32>
    %c8_360 = arith.constant 8 : index
    %c16_361 = arith.constant 16 : index
    %702 = vector.load %arg9[%c8_360, %c16_361] : memref<12x290xf32, #tpu.memory_space<vmem>>, vector<1x256xf32>
    %703 = arith.mulf %702, %0 : vector<1x256xf32>
    %c0_362 = arith.constant 0 : index
    %c75 = arith.constant 75 : index
    %704 = vector.load %arg4[%c0_362, %c75] : memref<4x108xf32, #tpu.memory_space<vmem>>, vector<4x1xf32>
    %705 = vector.broadcast %704 : vector<4x1xf32> to vector<4x256xf32>
    %706 = vector.broadcast %703 : vector<1x256xf32> to vector<4x256xf32>
    %707 = arith.mulf %705, %706 : vector<4x256xf32>
    %708 = arith.addf %701, %707 : vector<4x256xf32>
    %c8_363 = arith.constant 8 : index
    %c17_364 = arith.constant 17 : index
    %709 = vector.load %arg9[%c8_363, %c17_364] : memref<12x290xf32, #tpu.memory_space<vmem>>, vector<1x256xf32>
    %c0_365 = arith.constant 0 : index
    %c76 = arith.constant 76 : index
    %710 = vector.load %arg4[%c0_365, %c76] : memref<4x108xf32, #tpu.memory_space<vmem>>, vector<4x1xf32>
    %711 = vector.broadcast %710 : vector<4x1xf32> to vector<4x256xf32>
    %712 = vector.broadcast %709 : vector<1x256xf32> to vector<4x256xf32>
    %713 = arith.mulf %711, %712 : vector<4x256xf32>
    %714 = arith.addf %708, %713 : vector<4x256xf32>
    %c8_366 = arith.constant 8 : index
    %c18_367 = arith.constant 18 : index
    %715 = vector.load %arg9[%c8_366, %c18_367] : memref<12x290xf32, #tpu.memory_space<vmem>>, vector<1x256xf32>
    %716 = arith.mulf %715, %1 : vector<1x256xf32>
    %c0_368 = arith.constant 0 : index
    %c77 = arith.constant 77 : index
    %717 = vector.load %arg4[%c0_368, %c77] : memref<4x108xf32, #tpu.memory_space<vmem>>, vector<4x1xf32>
    %718 = vector.broadcast %717 : vector<4x1xf32> to vector<4x256xf32>
    %719 = vector.broadcast %716 : vector<1x256xf32> to vector<4x256xf32>
    %720 = arith.mulf %718, %719 : vector<4x256xf32>
    %721 = arith.addf %714, %720 : vector<4x256xf32>
    %c8_369 = arith.constant 8 : index
    %c32_370 = arith.constant 32 : index
    %722 = vector.load %arg9[%c8_369, %c32_370] : memref<12x290xf32, #tpu.memory_space<vmem>>, vector<1x256xf32>
    %723 = arith.mulf %722, %0 : vector<1x256xf32>
    %c0_371 = arith.constant 0 : index
    %c78 = arith.constant 78 : index
    %724 = vector.load %arg4[%c0_371, %c78] : memref<4x108xf32, #tpu.memory_space<vmem>>, vector<4x1xf32>
    %725 = vector.broadcast %724 : vector<4x1xf32> to vector<4x256xf32>
    %726 = vector.broadcast %723 : vector<1x256xf32> to vector<4x256xf32>
    %727 = arith.mulf %725, %726 : vector<4x256xf32>
    %728 = arith.addf %721, %727 : vector<4x256xf32>
    %c8_372 = arith.constant 8 : index
    %c33_373 = arith.constant 33 : index
    %729 = vector.load %arg9[%c8_372, %c33_373] : memref<12x290xf32, #tpu.memory_space<vmem>>, vector<1x256xf32>
    %c0_374 = arith.constant 0 : index
    %c79 = arith.constant 79 : index
    %730 = vector.load %arg4[%c0_374, %c79] : memref<4x108xf32, #tpu.memory_space<vmem>>, vector<4x1xf32>
    %731 = vector.broadcast %730 : vector<4x1xf32> to vector<4x256xf32>
    %732 = vector.broadcast %729 : vector<1x256xf32> to vector<4x256xf32>
    %733 = arith.mulf %731, %732 : vector<4x256xf32>
    %734 = arith.addf %728, %733 : vector<4x256xf32>
    %c8_375 = arith.constant 8 : index
    %c34_376 = arith.constant 34 : index
    %735 = vector.load %arg9[%c8_375, %c34_376] : memref<12x290xf32, #tpu.memory_space<vmem>>, vector<1x256xf32>
    %736 = arith.mulf %735, %1 : vector<1x256xf32>
    %c0_377 = arith.constant 0 : index
    %c80 = arith.constant 80 : index
    %737 = vector.load %arg4[%c0_377, %c80] : memref<4x108xf32, #tpu.memory_space<vmem>>, vector<4x1xf32>
    %738 = vector.broadcast %737 : vector<4x1xf32> to vector<4x256xf32>
    %739 = vector.broadcast %736 : vector<1x256xf32> to vector<4x256xf32>
    %740 = arith.mulf %738, %739 : vector<4x256xf32>
    %741 = arith.addf %734, %740 : vector<4x256xf32>
    %c9_378 = arith.constant 9 : index
    %c0_379 = arith.constant 0 : index
    %742 = vector.load %arg9[%c9_378, %c0_379] : memref<12x290xf32, #tpu.memory_space<vmem>>, vector<1x256xf32>
    %743 = arith.mulf %742, %0 : vector<1x256xf32>
    %c0_380 = arith.constant 0 : index
    %c81 = arith.constant 81 : index
    %744 = vector.load %arg4[%c0_380, %c81] : memref<4x108xf32, #tpu.memory_space<vmem>>, vector<4x1xf32>
    %745 = vector.broadcast %744 : vector<4x1xf32> to vector<4x256xf32>
    %746 = vector.broadcast %743 : vector<1x256xf32> to vector<4x256xf32>
    %747 = arith.mulf %745, %746 : vector<4x256xf32>
    %748 = arith.addf %741, %747 : vector<4x256xf32>
    %c9_381 = arith.constant 9 : index
    %c1_382 = arith.constant 1 : index
    %749 = vector.load %arg9[%c9_381, %c1_382] : memref<12x290xf32, #tpu.memory_space<vmem>>, vector<1x256xf32>
    %c0_383 = arith.constant 0 : index
    %c82 = arith.constant 82 : index
    %750 = vector.load %arg4[%c0_383, %c82] : memref<4x108xf32, #tpu.memory_space<vmem>>, vector<4x1xf32>
    %751 = vector.broadcast %750 : vector<4x1xf32> to vector<4x256xf32>
    %752 = vector.broadcast %749 : vector<1x256xf32> to vector<4x256xf32>
    %753 = arith.mulf %751, %752 : vector<4x256xf32>
    %754 = arith.addf %748, %753 : vector<4x256xf32>
    %c9_384 = arith.constant 9 : index
    %c2_385 = arith.constant 2 : index
    %755 = vector.load %arg9[%c9_384, %c2_385] : memref<12x290xf32, #tpu.memory_space<vmem>>, vector<1x256xf32>
    %756 = arith.mulf %755, %1 : vector<1x256xf32>
    %c0_386 = arith.constant 0 : index
    %c83 = arith.constant 83 : index
    %757 = vector.load %arg4[%c0_386, %c83] : memref<4x108xf32, #tpu.memory_space<vmem>>, vector<4x1xf32>
    %758 = vector.broadcast %757 : vector<4x1xf32> to vector<4x256xf32>
    %759 = vector.broadcast %756 : vector<1x256xf32> to vector<4x256xf32>
    %760 = arith.mulf %758, %759 : vector<4x256xf32>
    %761 = arith.addf %754, %760 : vector<4x256xf32>
    %c9_387 = arith.constant 9 : index
    %c16_388 = arith.constant 16 : index
    %762 = vector.load %arg9[%c9_387, %c16_388] : memref<12x290xf32, #tpu.memory_space<vmem>>, vector<1x256xf32>
    %763 = arith.mulf %762, %0 : vector<1x256xf32>
    %c0_389 = arith.constant 0 : index
    %c84 = arith.constant 84 : index
    %764 = vector.load %arg4[%c0_389, %c84] : memref<4x108xf32, #tpu.memory_space<vmem>>, vector<4x1xf32>
    %765 = vector.broadcast %764 : vector<4x1xf32> to vector<4x256xf32>
    %766 = vector.broadcast %763 : vector<1x256xf32> to vector<4x256xf32>
    %767 = arith.mulf %765, %766 : vector<4x256xf32>
    %768 = arith.addf %761, %767 : vector<4x256xf32>
    %c9_390 = arith.constant 9 : index
    %c17_391 = arith.constant 17 : index
    %769 = vector.load %arg9[%c9_390, %c17_391] : memref<12x290xf32, #tpu.memory_space<vmem>>, vector<1x256xf32>
    %c0_392 = arith.constant 0 : index
    %c85 = arith.constant 85 : index
    %770 = vector.load %arg4[%c0_392, %c85] : memref<4x108xf32, #tpu.memory_space<vmem>>, vector<4x1xf32>
    %771 = vector.broadcast %770 : vector<4x1xf32> to vector<4x256xf32>
    %772 = vector.broadcast %769 : vector<1x256xf32> to vector<4x256xf32>
    %773 = arith.mulf %771, %772 : vector<4x256xf32>
    %774 = arith.addf %768, %773 : vector<4x256xf32>
    %c9_393 = arith.constant 9 : index
    %c18_394 = arith.constant 18 : index
    %775 = vector.load %arg9[%c9_393, %c18_394] : memref<12x290xf32, #tpu.memory_space<vmem>>, vector<1x256xf32>
    %776 = arith.mulf %775, %1 : vector<1x256xf32>
    %c0_395 = arith.constant 0 : index
    %c86 = arith.constant 86 : index
    %777 = vector.load %arg4[%c0_395, %c86] : memref<4x108xf32, #tpu.memory_space<vmem>>, vector<4x1xf32>
    %778 = vector.broadcast %777 : vector<4x1xf32> to vector<4x256xf32>
    %779 = vector.broadcast %776 : vector<1x256xf32> to vector<4x256xf32>
    %780 = arith.mulf %778, %779 : vector<4x256xf32>
    %781 = arith.addf %774, %780 : vector<4x256xf32>
    %c9_396 = arith.constant 9 : index
    %c32_397 = arith.constant 32 : index
    %782 = vector.load %arg9[%c9_396, %c32_397] : memref<12x290xf32, #tpu.memory_space<vmem>>, vector<1x256xf32>
    %783 = arith.mulf %782, %0 : vector<1x256xf32>
    %c0_398 = arith.constant 0 : index
    %c87 = arith.constant 87 : index
    %784 = vector.load %arg4[%c0_398, %c87] : memref<4x108xf32, #tpu.memory_space<vmem>>, vector<4x1xf32>
    %785 = vector.broadcast %784 : vector<4x1xf32> to vector<4x256xf32>
    %786 = vector.broadcast %783 : vector<1x256xf32> to vector<4x256xf32>
    %787 = arith.mulf %785, %786 : vector<4x256xf32>
    %788 = arith.addf %781, %787 : vector<4x256xf32>
    %c9_399 = arith.constant 9 : index
    %c33_400 = arith.constant 33 : index
    %789 = vector.load %arg9[%c9_399, %c33_400] : memref<12x290xf32, #tpu.memory_space<vmem>>, vector<1x256xf32>
    %c0_401 = arith.constant 0 : index
    %c88 = arith.constant 88 : index
    %790 = vector.load %arg4[%c0_401, %c88] : memref<4x108xf32, #tpu.memory_space<vmem>>, vector<4x1xf32>
    %791 = vector.broadcast %790 : vector<4x1xf32> to vector<4x256xf32>
    %792 = vector.broadcast %789 : vector<1x256xf32> to vector<4x256xf32>
    %793 = arith.mulf %791, %792 : vector<4x256xf32>
    %794 = arith.addf %788, %793 : vector<4x256xf32>
    %c9_402 = arith.constant 9 : index
    %c34_403 = arith.constant 34 : index
    %795 = vector.load %arg9[%c9_402, %c34_403] : memref<12x290xf32, #tpu.memory_space<vmem>>, vector<1x256xf32>
    %796 = arith.mulf %795, %1 : vector<1x256xf32>
    %c0_404 = arith.constant 0 : index
    %c89 = arith.constant 89 : index
    %797 = vector.load %arg4[%c0_404, %c89] : memref<4x108xf32, #tpu.memory_space<vmem>>, vector<4x1xf32>
    %798 = vector.broadcast %797 : vector<4x1xf32> to vector<4x256xf32>
    %799 = vector.broadcast %796 : vector<1x256xf32> to vector<4x256xf32>
    %800 = arith.mulf %798, %799 : vector<4x256xf32>
    %801 = arith.addf %794, %800 : vector<4x256xf32>
    %c10_405 = arith.constant 10 : index
    %c0_406 = arith.constant 0 : index
    %802 = vector.load %arg9[%c10_405, %c0_406] : memref<12x290xf32, #tpu.memory_space<vmem>>, vector<1x256xf32>
    %803 = arith.mulf %802, %0 : vector<1x256xf32>
    %c0_407 = arith.constant 0 : index
    %c90 = arith.constant 90 : index
    %804 = vector.load %arg4[%c0_407, %c90] : memref<4x108xf32, #tpu.memory_space<vmem>>, vector<4x1xf32>
    %805 = vector.broadcast %804 : vector<4x1xf32> to vector<4x256xf32>
    %806 = vector.broadcast %803 : vector<1x256xf32> to vector<4x256xf32>
    %807 = arith.mulf %805, %806 : vector<4x256xf32>
    %808 = arith.addf %801, %807 : vector<4x256xf32>
    %c10_408 = arith.constant 10 : index
    %c1_409 = arith.constant 1 : index
    %809 = vector.load %arg9[%c10_408, %c1_409] : memref<12x290xf32, #tpu.memory_space<vmem>>, vector<1x256xf32>
    %c0_410 = arith.constant 0 : index
    %c91 = arith.constant 91 : index
    %810 = vector.load %arg4[%c0_410, %c91] : memref<4x108xf32, #tpu.memory_space<vmem>>, vector<4x1xf32>
    %811 = vector.broadcast %810 : vector<4x1xf32> to vector<4x256xf32>
    %812 = vector.broadcast %809 : vector<1x256xf32> to vector<4x256xf32>
    %813 = arith.mulf %811, %812 : vector<4x256xf32>
    %814 = arith.addf %808, %813 : vector<4x256xf32>
    %c10_411 = arith.constant 10 : index
    %c2_412 = arith.constant 2 : index
    %815 = vector.load %arg9[%c10_411, %c2_412] : memref<12x290xf32, #tpu.memory_space<vmem>>, vector<1x256xf32>
    %816 = arith.mulf %815, %1 : vector<1x256xf32>
    %c0_413 = arith.constant 0 : index
    %c92 = arith.constant 92 : index
    %817 = vector.load %arg4[%c0_413, %c92] : memref<4x108xf32, #tpu.memory_space<vmem>>, vector<4x1xf32>
    %818 = vector.broadcast %817 : vector<4x1xf32> to vector<4x256xf32>
    %819 = vector.broadcast %816 : vector<1x256xf32> to vector<4x256xf32>
    %820 = arith.mulf %818, %819 : vector<4x256xf32>
    %821 = arith.addf %814, %820 : vector<4x256xf32>
    %c10_414 = arith.constant 10 : index
    %c16_415 = arith.constant 16 : index
    %822 = vector.load %arg9[%c10_414, %c16_415] : memref<12x290xf32, #tpu.memory_space<vmem>>, vector<1x256xf32>
    %823 = arith.mulf %822, %0 : vector<1x256xf32>
    %c0_416 = arith.constant 0 : index
    %c93 = arith.constant 93 : index
    %824 = vector.load %arg4[%c0_416, %c93] : memref<4x108xf32, #tpu.memory_space<vmem>>, vector<4x1xf32>
    %825 = vector.broadcast %824 : vector<4x1xf32> to vector<4x256xf32>
    %826 = vector.broadcast %823 : vector<1x256xf32> to vector<4x256xf32>
    %827 = arith.mulf %825, %826 : vector<4x256xf32>
    %828 = arith.addf %821, %827 : vector<4x256xf32>
    %c10_417 = arith.constant 10 : index
    %c17_418 = arith.constant 17 : index
    %829 = vector.load %arg9[%c10_417, %c17_418] : memref<12x290xf32, #tpu.memory_space<vmem>>, vector<1x256xf32>
    %c0_419 = arith.constant 0 : index
    %c94 = arith.constant 94 : index
    %830 = vector.load %arg4[%c0_419, %c94] : memref<4x108xf32, #tpu.memory_space<vmem>>, vector<4x1xf32>
    %831 = vector.broadcast %830 : vector<4x1xf32> to vector<4x256xf32>
    %832 = vector.broadcast %829 : vector<1x256xf32> to vector<4x256xf32>
    %833 = arith.mulf %831, %832 : vector<4x256xf32>
    %834 = arith.addf %828, %833 : vector<4x256xf32>
    %c10_420 = arith.constant 10 : index
    %c18_421 = arith.constant 18 : index
    %835 = vector.load %arg9[%c10_420, %c18_421] : memref<12x290xf32, #tpu.memory_space<vmem>>, vector<1x256xf32>
    %836 = arith.mulf %835, %1 : vector<1x256xf32>
    %c0_422 = arith.constant 0 : index
    %c95 = arith.constant 95 : index
    %837 = vector.load %arg4[%c0_422, %c95] : memref<4x108xf32, #tpu.memory_space<vmem>>, vector<4x1xf32>
    %838 = vector.broadcast %837 : vector<4x1xf32> to vector<4x256xf32>
    %839 = vector.broadcast %836 : vector<1x256xf32> to vector<4x256xf32>
    %840 = arith.mulf %838, %839 : vector<4x256xf32>
    %841 = arith.addf %834, %840 : vector<4x256xf32>
    %c10_423 = arith.constant 10 : index
    %c32_424 = arith.constant 32 : index
    %842 = vector.load %arg9[%c10_423, %c32_424] : memref<12x290xf32, #tpu.memory_space<vmem>>, vector<1x256xf32>
    %843 = arith.mulf %842, %0 : vector<1x256xf32>
    %c0_425 = arith.constant 0 : index
    %c96 = arith.constant 96 : index
    %844 = vector.load %arg4[%c0_425, %c96] : memref<4x108xf32, #tpu.memory_space<vmem>>, vector<4x1xf32>
    %845 = vector.broadcast %844 : vector<4x1xf32> to vector<4x256xf32>
    %846 = vector.broadcast %843 : vector<1x256xf32> to vector<4x256xf32>
    %847 = arith.mulf %845, %846 : vector<4x256xf32>
    %848 = arith.addf %841, %847 : vector<4x256xf32>
    %c10_426 = arith.constant 10 : index
    %c33_427 = arith.constant 33 : index
    %849 = vector.load %arg9[%c10_426, %c33_427] : memref<12x290xf32, #tpu.memory_space<vmem>>, vector<1x256xf32>
    %c0_428 = arith.constant 0 : index
    %c97 = arith.constant 97 : index
    %850 = vector.load %arg4[%c0_428, %c97] : memref<4x108xf32, #tpu.memory_space<vmem>>, vector<4x1xf32>
    %851 = vector.broadcast %850 : vector<4x1xf32> to vector<4x256xf32>
    %852 = vector.broadcast %849 : vector<1x256xf32> to vector<4x256xf32>
    %853 = arith.mulf %851, %852 : vector<4x256xf32>
    %854 = arith.addf %848, %853 : vector<4x256xf32>
    %c10_429 = arith.constant 10 : index
    %c34_430 = arith.constant 34 : index
    %855 = vector.load %arg9[%c10_429, %c34_430] : memref<12x290xf32, #tpu.memory_space<vmem>>, vector<1x256xf32>
    %856 = arith.mulf %855, %1 : vector<1x256xf32>
    %c0_431 = arith.constant 0 : index
    %c98 = arith.constant 98 : index
    %857 = vector.load %arg4[%c0_431, %c98] : memref<4x108xf32, #tpu.memory_space<vmem>>, vector<4x1xf32>
    %858 = vector.broadcast %857 : vector<4x1xf32> to vector<4x256xf32>
    %859 = vector.broadcast %856 : vector<1x256xf32> to vector<4x256xf32>
    %860 = arith.mulf %858, %859 : vector<4x256xf32>
    %861 = arith.addf %854, %860 : vector<4x256xf32>
    %c11_432 = arith.constant 11 : index
    %c0_433 = arith.constant 0 : index
    %862 = vector.load %arg9[%c11_432, %c0_433] : memref<12x290xf32, #tpu.memory_space<vmem>>, vector<1x256xf32>
    %863 = arith.mulf %862, %0 : vector<1x256xf32>
    %c0_434 = arith.constant 0 : index
    %c99 = arith.constant 99 : index
    %864 = vector.load %arg4[%c0_434, %c99] : memref<4x108xf32, #tpu.memory_space<vmem>>, vector<4x1xf32>
    %865 = vector.broadcast %864 : vector<4x1xf32> to vector<4x256xf32>
    %866 = vector.broadcast %863 : vector<1x256xf32> to vector<4x256xf32>
    %867 = arith.mulf %865, %866 : vector<4x256xf32>
    %868 = arith.addf %861, %867 : vector<4x256xf32>
    %c11_435 = arith.constant 11 : index
    %c1_436 = arith.constant 1 : index
    %869 = vector.load %arg9[%c11_435, %c1_436] : memref<12x290xf32, #tpu.memory_space<vmem>>, vector<1x256xf32>
    %c0_437 = arith.constant 0 : index
    %c100 = arith.constant 100 : index
    %870 = vector.load %arg4[%c0_437, %c100] : memref<4x108xf32, #tpu.memory_space<vmem>>, vector<4x1xf32>
    %871 = vector.broadcast %870 : vector<4x1xf32> to vector<4x256xf32>
    %872 = vector.broadcast %869 : vector<1x256xf32> to vector<4x256xf32>
    %873 = arith.mulf %871, %872 : vector<4x256xf32>
    %874 = arith.addf %868, %873 : vector<4x256xf32>
    %c11_438 = arith.constant 11 : index
    %c2_439 = arith.constant 2 : index
    %875 = vector.load %arg9[%c11_438, %c2_439] : memref<12x290xf32, #tpu.memory_space<vmem>>, vector<1x256xf32>
    %876 = arith.mulf %875, %1 : vector<1x256xf32>
    %c0_440 = arith.constant 0 : index
    %c101 = arith.constant 101 : index
    %877 = vector.load %arg4[%c0_440, %c101] : memref<4x108xf32, #tpu.memory_space<vmem>>, vector<4x1xf32>
    %878 = vector.broadcast %877 : vector<4x1xf32> to vector<4x256xf32>
    %879 = vector.broadcast %876 : vector<1x256xf32> to vector<4x256xf32>
    %880 = arith.mulf %878, %879 : vector<4x256xf32>
    %881 = arith.addf %874, %880 : vector<4x256xf32>
    %c11_441 = arith.constant 11 : index
    %c16_442 = arith.constant 16 : index
    %882 = vector.load %arg9[%c11_441, %c16_442] : memref<12x290xf32, #tpu.memory_space<vmem>>, vector<1x256xf32>
    %883 = arith.mulf %882, %0 : vector<1x256xf32>
    %c0_443 = arith.constant 0 : index
    %c102 = arith.constant 102 : index
    %884 = vector.load %arg4[%c0_443, %c102] : memref<4x108xf32, #tpu.memory_space<vmem>>, vector<4x1xf32>
    %885 = vector.broadcast %884 : vector<4x1xf32> to vector<4x256xf32>
    %886 = vector.broadcast %883 : vector<1x256xf32> to vector<4x256xf32>
    %887 = arith.mulf %885, %886 : vector<4x256xf32>
    %888 = arith.addf %881, %887 : vector<4x256xf32>
    %c11_444 = arith.constant 11 : index
    %c17_445 = arith.constant 17 : index
    %889 = vector.load %arg9[%c11_444, %c17_445] : memref<12x290xf32, #tpu.memory_space<vmem>>, vector<1x256xf32>
    %c0_446 = arith.constant 0 : index
    %c103 = arith.constant 103 : index
    %890 = vector.load %arg4[%c0_446, %c103] : memref<4x108xf32, #tpu.memory_space<vmem>>, vector<4x1xf32>
    %891 = vector.broadcast %890 : vector<4x1xf32> to vector<4x256xf32>
    %892 = vector.broadcast %889 : vector<1x256xf32> to vector<4x256xf32>
    %893 = arith.mulf %891, %892 : vector<4x256xf32>
    %894 = arith.addf %888, %893 : vector<4x256xf32>
    %c11_447 = arith.constant 11 : index
    %c18_448 = arith.constant 18 : index
    %895 = vector.load %arg9[%c11_447, %c18_448] : memref<12x290xf32, #tpu.memory_space<vmem>>, vector<1x256xf32>
    %896 = arith.mulf %895, %1 : vector<1x256xf32>
    %c0_449 = arith.constant 0 : index
    %c104 = arith.constant 104 : index
    %897 = vector.load %arg4[%c0_449, %c104] : memref<4x108xf32, #tpu.memory_space<vmem>>, vector<4x1xf32>
    %898 = vector.broadcast %897 : vector<4x1xf32> to vector<4x256xf32>
    %899 = vector.broadcast %896 : vector<1x256xf32> to vector<4x256xf32>
    %900 = arith.mulf %898, %899 : vector<4x256xf32>
    %901 = arith.addf %894, %900 : vector<4x256xf32>
    %c11_450 = arith.constant 11 : index
    %c32_451 = arith.constant 32 : index
    %902 = vector.load %arg9[%c11_450, %c32_451] : memref<12x290xf32, #tpu.memory_space<vmem>>, vector<1x256xf32>
    %903 = arith.mulf %902, %0 : vector<1x256xf32>
    %c0_452 = arith.constant 0 : index
    %c105 = arith.constant 105 : index
    %904 = vector.load %arg4[%c0_452, %c105] : memref<4x108xf32, #tpu.memory_space<vmem>>, vector<4x1xf32>
    %905 = vector.broadcast %904 : vector<4x1xf32> to vector<4x256xf32>
    %906 = vector.broadcast %903 : vector<1x256xf32> to vector<4x256xf32>
    %907 = arith.mulf %905, %906 : vector<4x256xf32>
    %908 = arith.addf %901, %907 : vector<4x256xf32>
    %c11_453 = arith.constant 11 : index
    %c33_454 = arith.constant 33 : index
    %909 = vector.load %arg9[%c11_453, %c33_454] : memref<12x290xf32, #tpu.memory_space<vmem>>, vector<1x256xf32>
    %c0_455 = arith.constant 0 : index
    %c106 = arith.constant 106 : index
    %910 = vector.load %arg4[%c0_455, %c106] : memref<4x108xf32, #tpu.memory_space<vmem>>, vector<4x1xf32>
    %911 = vector.broadcast %910 : vector<4x1xf32> to vector<4x256xf32>
    %912 = vector.broadcast %909 : vector<1x256xf32> to vector<4x256xf32>
    %913 = arith.mulf %911, %912 : vector<4x256xf32>
    %914 = arith.addf %908, %913 : vector<4x256xf32>
    %c11_456 = arith.constant 11 : index
    %c34_457 = arith.constant 34 : index
    %915 = vector.load %arg9[%c11_456, %c34_457] : memref<12x290xf32, #tpu.memory_space<vmem>>, vector<1x256xf32>
    %916 = arith.mulf %915, %1 : vector<1x256xf32>
    %c0_458 = arith.constant 0 : index
    %c107 = arith.constant 107 : index
    %917 = vector.load %arg4[%c0_458, %c107] : memref<4x108xf32, #tpu.memory_space<vmem>>, vector<4x1xf32>
    %918 = vector.broadcast %917 : vector<4x1xf32> to vector<4x256xf32>
    %919 = vector.broadcast %916 : vector<1x256xf32> to vector<4x256xf32>
    %920 = arith.mulf %918, %919 : vector<4x256xf32>
    %921 = arith.addf %914, %920 : vector<4x256xf32>
    %cst_459 = arith.constant 3.000000e-01 : f32
    %cst_460 = arith.constant 4.000000e-01 : f32
    %922 = vector.broadcast %cst_459 : f32 to vector<4x256xf32>
    %923 = arith.maximumf %922, %921 : vector<4x256xf32>
    %924 = vector.broadcast %cst_460 : f32 to vector<4x256xf32>
    %925 = arith.minimumf %924, %923 : vector<4x256xf32>
    %c0_461 = arith.constant 0 : index
    %c0_462 = arith.constant 0 : index
    %c0_463 = arith.constant 0 : index
    %926 = vector.load %arg7[%c0_461, %c0_462, %c0_463] : memref<1x4x256xf32, #tpu.memory_space<vmem>>, vector<1x4x256xf32>
    %927 = vector.shape_cast %926 : vector<1x4x256xf32> to vector<4x256xf32>
    %928 = vector.shape_cast %925 : vector<4x256xf32> to vector<1x4x256xf32>
    tpu.vector_store %arg7[%c0_461, %c0_462, %c0_463], %928 {strides = array<i32>} : memref<1x4x256xf32, #tpu.memory_space<vmem>>, vector<1x4x256xf32>,
    return
  }
  func.func @transform_0(%arg0: i32) -> (i32, i32, i32) {
    %c0_i32 = arith.constant 0 : i32
    %c0_i32_0 = arith.constant 0 : i32
    %c0_i32_1 = arith.constant 0 : i32
    return %arg0, %c0_i32, %c0_i32_0 : i32, i32, i32
  }
  func.func @transform_1(%arg0: i32) -> (i32, i32) {
    %c0_i32 = arith.constant 0 : i32
    %c0_i32_0 = arith.constant 0 : i32
    %c0_i32_1 = arith.constant 0 : i32
    return %c0_i32, %c0_i32_0 : i32, i32
  }
  func.func @transform_2(%arg0: i32) -> (i32, i32) {
    %c0_i32 = arith.constant 0 : i32
    %c0_i32_0 = arith.constant 0 : i32
    %c0_i32_1 = arith.constant 0 : i32
    return %c0_i32, %c0_i32_0 : i32, i32
  }
  func.func @transform_3(%arg0: i32) -> (i32, i32) {
    %c0_i32 = arith.constant 0 : i32
    %c0_i32_0 = arith.constant 0 : i32
    %c0_i32_1 = arith.constant 0 : i32
    return %c0_i32, %c0_i32_0 : i32, i32
  }
  func.func @transform_4(%arg0: i32) -> (i32, i32) {
    %c0_i32 = arith.constant 0 : i32
    %c0_i32_0 = arith.constant 0 : i32
    %c0_i32_1 = arith.constant 0 : i32
    return %c0_i32, %c0_i32_0 : i32, i32
  }
  func.func @transform_5(%arg0: i32) -> (i32, i32) {
    %c0_i32 = arith.constant 0 : i32
    %c0_i32_0 = arith.constant 0 : i32
    %c0_i32_1 = arith.constant 0 : i32
    return %c0_i32, %c0_i32_0 : i32, i32
  }
  func.func @transform_6(%arg0: i32) -> (i32, i32, i32) {
    %c0_i32 = arith.constant 0 : i32
    %c0_i32_0 = arith.constant 0 : i32
    %c0_i32_1 = arith.constant 0 : i32
    return %arg0, %c0_i32, %c0_i32_0 : i32, i32, i32
  }
}

</mosaic_0001>

<llo_original>
// kernel: model_forward.1
$region0: #{model_forward.1}
  #allocation0 [shape = 'u32[]', space=smem, size = 0x4, offset = 0x4, fixed_abs, tag = 'smem constant byte address 0x4 - core index']
  #allocation1 [shape = 'u32[144,128]{1,0:T(1,128)}', space=vmem, size = 0x12000, scoped, tag = 'internal scratch']
  #allocation2 [shape = 'f32[3,290]{1,0:T(4,128)}', space=vmem, size = 0x1800, scoped, tag = 'scratch operand']
  #allocation3 [shape = 'f32[12,290]{1,0:T(8,128)}', space=vmem, size = 0x6000, scoped, tag = 'scratch operand']
  %s0 = inlined_call_operand.vmem [shape: f32[2,3,256], index: 0, kind: input, shape index: {}]
  %s1 = inlined_call_operand.vmem [shape: f32[12,27], index: 1, kind: input, shape index: {}]
  %s2 = inlined_call_operand.vmem [shape: f32[12,1], index: 2, kind: input, shape index: {}]
  %s3 = inlined_call_operand.vmem [shape: f32[4,108], index: 3, kind: input, shape index: {}]
  %s4 = inlined_call_operand.vmem [shape: f32[4,1], index: 4, kind: input, shape index: {}]
  %s5 = inlined_call_operand.vmem [shape: f32[2,256], index: 5, kind: input, shape index: {}]
  %s6 = inlined_call_operand.vmem [shape: f32[2,4,256], index: 6, kind: output, shape index: {}]
  %s7 = sld [smem:[#allocation0]]
  $region57: #{model_forward.1} parent=0
    _
  %s9 = ssub.s32 1, %s7
  %s10 = scalar_select 0, %s9, %s7
  loop: start=0, step=1, limit=4
  $region2: #{model_forward.1} parent=0 // loop_pre_header
    _
  $region3: #{model_forward.1} parent=0 // loop_header
    %s12 = sphi 0, %s16
    %p13 = scmp.ge.s32.totalorder %s12, 4
    %s22 = sphi 0, %s24
    %s25 = sphi 0, %s22
    %s26 = sphi 0, %s25
    %s42 = sphi 0, %s26
    %s46 = sphi 0, %s46
    %s48 = sphi 0, %s46
    %s49 = sphi 0, %s48
    %s63 = sphi 0, %s49
    %s67 = sphi 0, %s67
    %s69 = sphi 0, %s67
    %s70 = sphi 0, %s69
    %s84 = sphi 0, %s70
    %s88 = sphi 0, %s88
    %s90 = sphi 0, %s88
    %s91 = sphi 0, %s90
    %s105 = sphi 0, %s91
    %s109 = sphi 0, %s109
    %s111 = sphi 0, %s109
    %s112 = sphi 0, %s111
    %s126 = sphi 0, %s112
    %s130 = sphi 0, %s130
    %s132 = sphi 0, %s130
    %s133 = sphi 0, %s132
    %s147 = sphi 0, %s133
    %s153 = sphi 0, %s155
    %s156 = sphi 0, %s153
    %s157 = sphi 0, %s156
    %s173 = sphi 0, %s157
  $region4: #{model_forward.1} parent=0 // loop_header_branch
    %15 = sbr.rel (%p13) target = $region8
  $region5: #{model_forward.1} parent=0 // loop_body
    %s17 = ssub.s32 %s12, 1
    %s18 = ssub.s32 %s12, 2
    %s19 = sadd.s32 %s12, 1
    %s20 = ssub.s32 %s12, %s19
    %p21 = scmp.eq.s32.totalorder %s20, 0
    %s23 = sadd.s32 %s22, 1
    %s24 = scalar_select %p21, %s22, %s23
    %p27 = pneg %p21
    %p28 = scmp.eq.s32.totalorder %s12, 1
    %p29 = por %p27, %p28
    %p30 = scmp.ne.s32.totalorder %s22, %s25
    %p31 = scmp.eq.s32.totalorder %s12, 0
    %p32 = por %p30, %p31
    %p33 = scmp.ne.s32.totalorder %s22, %s25
    %p34 = scmp.eq.s32.totalorder %s17, 1
    %p35 = por %p33, %p34
    %p36 = scmp.ne.s32.totalorder %s25, %s26
    %p37 = scmp.eq.s32.totalorder %s17, 0
    %p38 = por %p36, %p37
    %p39 = scmp.ne.s32.totalorder %s25, %s26
    %p40 = scmp.eq.s32.totalorder %s18, 1
    %p41 = por %p39, %p40
    %p43 = scmp.ne.s32.totalorder %s26, %s42
    %p44 = scmp.eq.s32.totalorder %s18, 0
    %p45 = por %p43, %p44
    %s47 = sadd.s32 %s46, 1
    %p50 = scmp.eq.s32.totalorder %s12, 1
    %p51 = scmp.ne.s32.totalorder %s46, %s48
    %p52 = scmp.eq.s32.totalorder %s12, 0
    %p53 = por %p51, %p52
    %p54 = scmp.ne.s32.totalorder %s46, %s48
    %p55 = scmp.eq.s32.totalorder %s17, 1
    %p56 = por %p54, %p55
    %p57 = scmp.ne.s32.totalorder %s48, %s49
    %p58 = scmp.eq.s32.totalorder %s17, 0
    %p59 = por %p57, %p58
    %p60 = scmp.ne.s32.totalorder %s48, %s49
    %p61 = scmp.eq.s32.totalorder %s18, 1
    %p62 = por %p60, %p61
    %p64 = scmp.ne.s32.totalorder %s49, %s63
    %p65 = scmp.eq.s32.totalorder %s18, 0
    %p66 = por %p64, %p65
    %s68 = sadd.s32 %s67, 1
    %p71 = scmp.eq.s32.totalorder %s12, 1
    %p72 = scmp.ne.s32.totalorder %s67, %s69
    %p73 = scmp.eq.s32.totalorder %s12, 0
    %p74 = por %p72, %p73
    %p75 = scmp.ne.s32.totalorder %s67, %s69
    %p76 = scmp.eq.s32.totalorder %s17, 1
    %p77 = por %p75, %p76
    %p78 = scmp.ne.s32.totalorder %s69, %s70
    %p79 = scmp.eq.s32.totalorder %s17, 0
    %p80 = por %p78, %p79
    %p81 = scmp.ne.s32.totalorder %s69, %s70
    %p82 = scmp.eq.s32.totalorder %s18, 1
    %p83 = por %p81, %p82
    %p85 = scmp.ne.s32.totalorder %s70, %s84
    %p86 = scmp.eq.s32.totalorder %s18, 0
    %p87 = por %p85, %p86
    %s89 = sadd.s32 %s88, 1
    %p92 = scmp.eq.s32.totalorder %s12, 1
    %p93 = scmp.ne.s32.totalorder %s88, %s90
    %p94 = scmp.eq.s32.totalorder %s12, 0
    %p95 = por %p93, %p94
    %p96 = scmp.ne.s32.totalorder %s88, %s90
    %p97 = scmp.eq.s32.totalorder %s17, 1
    %p98 = por %p96, %p97
    %p99 = scmp.ne.s32.totalorder %s90, %s91
    %p100 = scmp.eq.s32.totalorder %s17, 0
    %p101 = por %p99, %p100
    %p102 = scmp.ne.s32.totalorder %s90, %s91
    %p103 = scmp.eq.s32.totalorder %s18, 1
    %p104 = por %p102, %p103
    %p106 = scmp.ne.s32.totalorder %s91, %s105
    %p107 = scmp.eq.s32.totalorder %s18, 0
    %p108 = por %p106, %p107
    %s110 = sadd.s32 %s109, 1
    %p113 = scmp.eq.s32.totalorder %s12, 1
    %p114 = scmp.ne.s32.totalorder %s109, %s111
    %p115 = scmp.eq.s32.totalorder %s12, 0
    %p116 = por %p114, %p115
    %p117 = scmp.ne.s32.totalorder %s109, %s111
    %p118 = scmp.eq.s32.totalorder %s17, 1
    %p119 = por %p117, %p118
    %p120 = scmp.ne.s32.totalorder %s111, %s112
    %p121 = scmp.eq.s32.totalorder %s17, 0
    %p122 = por %p120, %p121
    %p123 = scmp.ne.s32.totalorder %s111, %s112
    %p124 = scmp.eq.s32.totalorder %s18, 1
    %p125 = por %p123, %p124
    %p127 = scmp.ne.s32.totalorder %s112, %s126
    %p128 = scmp.eq.s32.totalorder %s18, 0
    %p129 = por %p127, %p128
    %s131 = sadd.s32 %s130, 1
    %p134 = scmp.eq.s32.totalorder %s12, 1
    %p135 = scmp.ne.s32.totalorder %s130, %s132
    %p136 = scmp.eq.s32.totalorder %s12, 0
    %p137 = por %p135, %p136
    %p138 = scmp.ne.s32.totalorder %s130, %s132
    %p139 = scmp.eq.s32.totalorder %s17, 1
    %p140 = por %p138, %p139
    %p141 = scmp.ne.s32.totalorder %s132, %s133
    %p142 = scmp.eq.s32.totalorder %s17, 0
    %p143 = por %p141, %p142
    %p144 = scmp.ne.s32.totalorder %s132, %s133
    %p145 = scmp.eq.s32.totalorder %s18, 1
    %p146 = por %p144, %p145
    %p148 = scmp.ne.s32.totalorder %s133, %s147
    %p149 = scmp.eq.s32.totalorder %s18, 0
    %p150 = por %p148, %p149
    %s151 = ssub.s32 %s12, %s19
    %p152 = scmp.eq.s32.totalorder %s151, 0
    %s154 = sadd.s32 %s153, 1
    %s155 = scalar_select %p152, %s153, %s154
    %p158 = pneg %p152
    %p159 = scmp.eq.s32.totalorder %s12, 1
    %p160 = por %p158, %p159
    %p161 = scmp.ne.s32.totalorder %s153, %s156
    %p162 = scmp.eq.s32.totalorder %s12, 0
    %p163 = por %p161, %p162
    %p164 = scmp.ne.s32.totalorder %s153, %s156
    %p165 = scmp.eq.s32.totalorder %s17, 1
    %p166 = por %p164, %p165
    %p167 = scmp.ne.s32.totalorder %s156, %s157
    %p168 = scmp.eq.s32.totalorder %s17, 0
    %p169 = por %p167, %p168
    %p170 = scmp.ne.s32.totalorder %s156, %s157
    %p171 = scmp.eq.s32.totalorder %s18, 1
    %p172 = por %p170, %p171
    %p174 = scmp.ne.s32.totalorder %s157, %s173
    %p175 = scmp.eq.s32.totalorder %s18, 0
    %p176 = por %p174, %p175
    %p177 = scmp.le.s32.totalorder 1, %s12
    %p178 = scmp.lt.s32.totalorder %s12, 3
    %p179 = pnand %p177, %p178
    %p180 = pneg %p179
    // Predicated region
    $region9: #{model_forward.1} parent=5 // pred_check
      _
    $region10: #{model_forward.1} parent=5 // pred_check_branch
      %182 = sbr.rel (%p179) target = $region12
    $region11: #{model_forward.1} parent=5 // pred_region
      %s183 = ssub.s32 %s12, 1
      // Predicated region
      $region13: #{model_forward.1} parent=11 // pred_check
        %p184 = pneg %p59
      $region14: #{model_forward.1} parent=11 // pred_check_branch
        %186 = sbr.rel (%p184) target = $region16
      $region15: #{model_forward.1} parent=11 // pred_region
        _
      $region16: #{model_forward.1} parent=11 // pred_fallthru
        _
      // Predicated region
      $region17: #{model_forward.1} parent=11 // pred_check
        %p187 = pneg %p80
      $region18: #{model_forward.1} parent=11 // pred_check_branch
        %189 = sbr.rel (%p187) target = $region20
      $region19: #{model_forward.1} parent=11 // pred_region
        _
      $region20: #{model_forward.1} parent=11 // pred_fallthru
        _
      // Predicated region
      $region21: #{model_forward.1} parent=11 // pred_check
        %p190 = pneg %p101
      $region22: #{model_forward.1} parent=11 // pred_check_branch
        %192 = sbr.rel (%p190) target = $region24
      $region23: #{model_forward.1} parent=11 // pred_region
        _
      $region24: #{model_forward.1} parent=11 // pred_fallthru
        _
      // Predicated region
      $region25: #{model_forward.1} parent=11 // pred_check
        %p193 = pneg %p122
      $region26: #{model_forward.1} parent=11 // pred_check_branch
        %195 = sbr.rel (%p193) target = $region28
      $region27: #{model_forward.1} parent=11 // pred_region
        _
      $region28: #{model_forward.1} parent=11 // pred_fallthru
        _
      // Predicated region
      $region29: #{model_forward.1} parent=11 // pred_check
        %p196 = pneg %p143
      $region30: #{model_forward.1} parent=11 // pred_check_branch
        %198 = sbr.rel (%p196) target = $region32
      $region31: #{model_forward.1} parent=11 // pred_region
        _
      $region32: #{model_forward.1} parent=11 // pred_fallthru
        _
    $region12: #{model_forward.1} parent=5 // pred_fallthru
      _
    %p199 = scmp.lt.s32.totalorder %s12, 2
    // Predicated region
    $region33: #{model_forward.1} parent=5 // pred_check
      %p200 = pneg %p199
    $region34: #{model_forward.1} parent=5 // pred_check_branch
      %202 = sbr.rel (%p200) target = $region36
    $region35: #{model_forward.1} parent=5 // pred_region
      // Predicated region
      $region37: #{model_forward.1} parent=35 // pred_check
        %p203 = pneg %p32
      $region38: #{model_forward.1} parent=35 // pred_check_branch
        %205 = sbr.rel (%p203) target = $region40
      $region39: #{model_forward.1} parent=35 // pred_region
        %p206 = scmp.lt.s32.totalorder %s12, 1
        %s207 = scalar_select %p206, %s12, 1
        %s208 = smul.addr %s207, 2
        %s209 = smul.addr %s208, 4
        %s210 = scalar_lea.vmem %s0, %s209
      $region40: #{model_forward.1} parent=35 // pred_fallthru
        _
    $region36: #{model_forward.1} parent=5 // pred_fallthru
      _
    %p211 = scmp.le.s32.totalorder 1, %s12
    %p212 = scmp.lt.s32.totalorder %s12, 3
    %p213 = pnand %p211, %p212
    %p214 = pneg %p213
    // Predicated region
    $region41: #{model_forward.1} parent=5 // pred_check
      _
    $region42: #{model_forward.1} parent=5 // pred_check_branch
      %216 = sbr.rel (%p213) target = $region44
    $region43: #{model_forward.1} parent=5 // pred_region
      %s217 = ssub.s32 %s12, 1
      %p218 = scmp.lt.s32.totalorder %s17, 1
      %s219 = scalar_select %p218, %s17, 1
      %s220 = smul.addr %s219, 2
      %s221 = smul.addr %s220, 4
      %s222 = scalar_lea.vmem %s0, %s221
      %p223 = pneg %p38
      %p224 = pneg %p35
      %p225 = pneg %p59
      %p226 = pneg %p56
      %p227 = pneg %p80
      %p228 = pneg %p77
      %p229 = pneg %p101
      %p230 = pneg %p98
      %p231 = pneg %p122
      %p232 = pneg %p119
      %p233 = pneg %p143
      %p234 = pneg %p140
      %p235 = pneg %p169
      %p236 = pneg %p166
      %p237 = scmp.lt.s32.totalorder %s17, 1
      %s238 = scalar_select %p237, %s17, 1
      %s239 = smul.addr %s238, 2
      %s240 = smul.addr %s239, 4
      %s241 = scalar_lea.vmem %s6, %s240
      %p242 = scmp.lt.s32.totalorder %s17, 1
      %s243 = scalar_select %p242, %s17, 1
      %s244 = smul.addr %s243, 2
      %s245 = smul.addr %s244, 4
      %s246 = scalar_lea.vmem %s0, %s245
      %p247 = scmp.lt.s32.totalorder %s17, 1
      %s248 = scalar_select %p247, %s17, 1
      %s249 = smul.addr %s248, 2
      %s250 = smul.addr %s249, 4
      %s251 = scalar_lea.vmem %s6, %s250
      %v252 = vld [vmem:[%s5] ss:$2 sm:$0x3]
      %s253 = scalar_lea.vmem %s5, 1
      %v254 = vld [vmem:[%s253] ss:$2 sm:$0x3]
      %vm255 = vcmask 133120
      %256 = vst.msk [vmem:[#allocation2] sm:$0x7] %vm255, 0.0
      %vm257 = vcmask 272520
      %258 = vst.msk [vmem:[#allocation2 + $0x8] sm:$0x7] %vm257, 0.0
      %v259 = vld [vmem:[%s246] sm:$0x77]
      %261 = vrot.lane.b32.xlu0 %v259, 17
      %v262 = vpop.permute.xlu0 %261
      %v263 = vrot.slane %v262, 4
      %vm264 = vcmask 138240
      %v265 = vsel %vm264, %v263, %v262
      %vm268 = vcmask 1042568
      %vm269 = vcmask 1046532
      %vm270 = vmor %vm269, %vm268
      %271 = vst.msk [vmem:[#allocation2] sm:$0x77] %vm270, %v265
      %272 = vst.msk [vmem:[#allocation2 + $0x8] sm:$0x7] %vm255, %v263
      %v273 = vld [vmem:[%s2] sm:$0xff]
      %v274 = vld [vmem:[%s2 + $0x8] sm:$0xf]
      %276 = vset.pattern.permute.xlu0 0
      %277 = vperm.xlu0 %276, %v273
      %v278 = vpop.permute.xlu0 %277
      %281 = vset.pattern.permute.xlu0 0
      %282 = vperm.xlu0 %281, %v274
      %v283 = vpop.permute.xlu0 %282
      %v285 = vadd.f32 %v278, 0.0
      %v286 = vadd.f32 %v283, 0.0
      %v287 = vld [vmem:[#allocation2] ss:$4 sm:$0x3]
      %v288 = vmul.f32 %v287, %v252
      %v289 = vld [vmem:[%s1] sm:$0xff]
      %v290 = vld [vmem:[%s1 + $0x8] sm:$0xf]
      %292 = vset.pattern.permute.xlu0 0
      %293 = vperm.xlu0 %292, %v289
      %v294 = vpop.permute.xlu0 %293
      %297 = vset.pattern.permute.xlu0 0
      %298 = vperm.xlu0 %297, %v290
      %v299 = vpop.permute.xlu0 %298
      %v302 = vlaneseq
      %v303 = vshrl.u32 %v302, 7
      %v304 = vsub.s32 0, %v303
      %v305 = vrot.slane %v288, %v304
      %v306 = vlaneseq
      %v307 = vshrl.u32 %v306, 7
      %v308 = vsub.s32 1, %v307
      %v309 = vrot.slane %v288, %v308
      %v312 = vmul.f32 %v294, %v305
      %v313 = vmul.f32 %v294, %v309
      %v314 = vmul.f32 %v299, %v305
      %v315 = vmul.f32 %v299, %v309
      %v316 = vadd.f32 %v285, %v312
      %v317 = vadd.f32 %v285, %v313
      %v318 = vadd.f32 %v286, %v314
      %v319 = vadd.f32 %v286, %v315
      %v320 = vld [vmem:[#allocation2] ss:$4 sm:$0x7]
      %321 = vset.pattern.permute.xlu0 1
      %322 = vperm.xlu0 %321, %v289
      %v323 = vpop.permute.xlu0 %322
      %325 = vset.pattern.permute.xlu0 1
      %326 = vperm.xlu0 %325, %v290
      %v327 = vpop.permute.xlu0 %326
      %v330 = vlaneseq
      %v331 = vshrl.u32 %v330, 7
      %v332 = vsub.s32 0, %v331
      %v333 = vrot.slane %v320, %v332
      %v334 = vlaneseq
      %v335 = vshrl.u32 %v334, 7
      %v336 = vsub.s32 1, %v335
      %v337 = vrot.slane %v320, %v336
      %v338 = vlaneseq
      %v339 = vshrl.u32 %v338, 7
      %v340 = vsub.s32 2, %v339
      %v341 = vrot.slane %v320, %v340
      %v345 = vmul.f32 %v323, %v333
      %v346 = vmul.f32 %v323, %v337
      %v347 = vmul.f32 %v323, %v341
      %v348 = vmul.f32 %v327, %v333
      %v349 = vmul.f32 %v327, %v337
      %v350 = vmul.f32 %v327, %v341
      %357 = vrot.lane.b32.xlu0 %v345, 127
      %v358 = vpop.permute.xlu0 %357
      %359 = vrot.lane.b32.xlu0 %v346, 127
      %v360 = vpop.permute.xlu0 %359
      %361 = vrot.lane.b32.xlu0 %v347, 127
      %v362 = vpop.permute.xlu0 %361
      %363 = vrot.lane.b32.xlu0 %v348, 127
      %v364 = vpop.permute.xlu0 %363
      %365 = vrot.lane.b32.xlu0 %v349, 127
      %v366 = vpop.permute.xlu0 %365
      %367 = vrot.lane.b32.xlu0 %v350, 127
      %v368 = vpop.permute.xlu0 %367
      %vm369 = vcmask 1039360
      %v370 = vsel %vm369, %v358, %v360
      %v371 = vsel %vm369, %v360, %v362
      %v372 = vsel %vm369, %v364, %v366
      %v373 = vsel %vm369, %v366, %v368
      %v378 = vadd.f32 %v316, %v370
      %v379 = vadd.f32 %v317, %v371
      %v380 = vadd.f32 %v318, %v372
      %v381 = vadd.f32 %v319, %v373
      %383 = vrot.lane.b32.xlu0 %v254, 2
      %v384 = vpop.permute.xlu0 %383
      %v385 = vrot.slane %v384, 7
      %vm386 = vcmask 15360
      %v387 = vsel %vm386, %v385, %v384
      %v389 = vmul.f32 %v320, %v387
      %390 = vset.pattern.permute.xlu0 2
      %391 = vperm.xlu0 %390, %v289
      %v392 = vpop.permute.xlu0 %391
      %394 = vset.pattern.permute.xlu0 2
      %395 = vperm.xlu0 %394, %v290
      %v396 = vpop.permute.xlu0 %395
      %v399 = vlaneseq
      %v400 = vshrl.u32 %v399, 7
      %v401 = vsub.s32 0, %v400
      %v402 = vrot.slane %v389, %v401
      %v403 = vlaneseq
      %v404 = vshrl.u32 %v403, 7
      %v405 = vsub.s32 1, %v404
      %v406 = vrot.slane %v389, %v405
      %v407 = vlaneseq
      %v408 = vshrl.u32 %v407, 7
      %v409 = vsub.s32 2, %v408
      %v410 = vrot.slane %v389, %v409
      %v414 = vmul.f32 %v392, %v402
      %v415 = vmul.f32 %v392, %v406
      %v416 = vmul.f32 %v392, %v410
      %v417 = vmul.f32 %v396, %v402
      %v418 = vmul.f32 %v396, %v406
      %v419 = vmul.f32 %v396, %v410
      %426 = vrot.lane.b32.xlu0 %v414, 126
      %v427 = vpop.permute.xlu0 %426
      %428 = vrot.lane.b32.xlu0 %v415, 126
      %v429 = vpop.permute.xlu0 %428
      %430 = vrot.lane.b32.xlu0 %v416, 126
      %v431 = vpop.permute.xlu0 %430
      %432 = vrot.lane.b32.xlu0 %v417, 126
      %v433 = vpop.permute.xlu0 %432
      %434 = vrot.lane.b32.xlu0 %v418, 126
      %v435 = vpop.permute.xlu0 %434
      %436 = vrot.lane.b32.xlu0 %v419, 126
      %v437 = vpop.permute.xlu0 %436
      %vm438 = vcmask 1031168
      %v439 = vsel %vm438, %v427, %v429
      %v440 = vsel %vm438, %v429, %v431
      %v441 = vsel %vm438, %v433, %v435
      %v442 = vsel %vm438, %v435, %v437
      %v447 = vadd.f32 %v378, %v439
      %v448 = vadd.f32 %v379, %v440
      %v449 = vadd.f32 %v380, %v441
      %v450 = vadd.f32 %v381, %v442
      %452 = vrot.lane.b32.xlu0 %v252, 16
      %v453 = vpop.permute.xlu0 %452
      %v454 = vrot.slane %v453, 7
      %vm455 = vcmask 130048
      %v456 = vsel %vm455, %v454, %v453
      %v458 = vmul.f32 %v320, %v456
      %459 = vset.pattern.permute.xlu0 3
      %460 = vperm.xlu0 %459, %v289
      %v461 = vpop.permute.xlu0 %460
      %463 = vset.pattern.permute.xlu0 3
      %464 = vperm.xlu0 %463, %v290
      %v465 = vpop.permute.xlu0 %464
      %v468 = vlaneseq
      %v469 = vshrl.u32 %v468, 7
      %v470 = vsub.s32 0, %v469
      %v471 = vrot.slane %v458, %v470
      %v472 = vlaneseq
      %v473 = vshrl.u32 %v472, 7
      %v474 = vsub.s32 1, %v473
      %v475 = vrot.slane %v458, %v474
      %v476 = vlaneseq
      %v477 = vshrl.u32 %v476, 7
      %v478 = vsub.s32 2, %v477
      %v479 = vrot.slane %v458, %v478
      %v483 = vmul.f32 %v461, %v471
      %v484 = vmul.f32 %v461, %v475
      %v485 = vmul.f32 %v461, %v479
      %v486 = vmul.f32 %v465, %v471
      %v487 = vmul.f32 %v465, %v475
      %v488 = vmul.f32 %v465, %v479
      %495 = vrot.lane.b32.xlu0 %v483, 112
      %v496 = vpop.permute.xlu0 %495
      %497 = vrot.lane.b32.xlu0 %v484, 112
      %v498 = vpop.permute.xlu0 %497
      %499 = vrot.lane.b32.xlu0 %v485, 112
      %v500 = vpop.permute.xlu0 %499
      %501 = vrot.lane.b32.xlu0 %v486, 112
      %v502 = vpop.permute.xlu0 %501
      %503 = vrot.lane.b32.xlu0 %v487, 112
      %v504 = vpop.permute.xlu0 %503
      %505 = vrot.lane.b32.xlu0 %v488, 112
      %v506 = vpop.permute.xlu0 %505
      %vm507 = vcmask 916480
      %v508 = vsel %vm507, %v496, %v498
      %v509 = vsel %vm507, %v498, %v500
      %v510 = vsel %vm507, %v502, %v504
      %v511 = vsel %vm507, %v504, %v506
      %v516 = vadd.f32 %v447, %v508
      %v517 = vadd.f32 %v448, %v509
      %v518 = vadd.f32 %v449, %v510
      %v519 = vadd.f32 %v450, %v511
      %520 = vset.pattern.permute.xlu0 4
      %521 = vperm.xlu0 %520, %v289
      %v522 = vpop.permute.xlu0 %521
      %524 = vset.pattern.permute.xlu0 4
      %525 = vperm.xlu0 %524, %v290
      %v526 = vpop.permute.xlu0 %525
      %v528 = vmul.f32 %v522, %v333
      %v529 = vmul.f32 %v522, %v337
      %v530 = vmul.f32 %v522, %v341
      %v531 = vmul.f32 %v526, %v333
      %v532 = vmul.f32 %v526, %v337
      %v533 = vmul.f32 %v526, %v341
      %540 = vrot.lane.b32.xlu0 %v528, 111
      %v541 = vpop.permute.xlu0 %540
      %542 = vrot.lane.b32.xlu0 %v529, 111
      %v543 = vpop.permute.xlu0 %542
      %544 = vrot.lane.b32.xlu0 %v530, 111
      %v545 = vpop.permute.xlu0 %544
      %546 = vrot.lane.b32.xlu0 %v531, 111
      %v547 = vpop.permute.xlu0 %546
      %548 = vrot.lane.b32.xlu0 %v532, 111
      %v549 = vpop.permute.xlu0 %548
      %550 = vrot.lane.b32.xlu0 %v533, 111
      %v551 = vpop.permute.xlu0 %550
      %vm552 = vcmask 908288
      %v553 = vsel %vm552, %v541, %v543
      %v554 = vsel %vm552, %v543, %v545
      %v555 = vsel %vm552, %v547, %v549
      %v556 = vsel %vm552, %v549, %v551
      %v561 = vadd.f32 %v516, %v553
      %v562 = vadd.f32 %v517, %v554
      %v563 = vadd.f32 %v518, %v555
      %v564 = vadd.f32 %v519, %v556
      %565 = vrot.lane.b32.xlu0 %v254, 18
      %v566 = vpop.permute.xlu0 %565
      %v567 = vrot.slane %v566, 7
      %vm568 = vcmask 146432
      %v569 = vsel %vm568, %v567, %v566
      %v571 = vmul.f32 %v320, %v569
      %572 = vset.pattern.permute.xlu0 5
      %573 = vperm.xlu0 %572, %v289
      %v574 = vpop.permute.xlu0 %573
      %576 = vset.pattern.permute.xlu0 5
      %577 = vperm.xlu0 %576, %v290
      %v578 = vpop.permute.xlu0 %577
      %v581 = vlaneseq
      %v582 = vshrl.u32 %v581, 7
      %v583 = vsub.s32 0, %v582
      %v584 = vrot.slane %v571, %v583
      %v585 = vlaneseq
      %v586 = vshrl.u32 %v585, 7
      %v587 = vsub.s32 1, %v586
      %v588 = vrot.slane %v571, %v587
      %v589 = vlaneseq
      %v590 = vshrl.u32 %v589, 7
      %v591 = vsub.s32 2, %v590
      %v592 = vrot.slane %v571, %v591
      %v596 = vmul.f32 %v574, %v584
      %v597 = vmul.f32 %v574, %v588
      %v598 = vmul.f32 %v574, %v592
      %v599 = vmul.f32 %v578, %v584
      %v600 = vmul.f32 %v578, %v588
      %v601 = vmul.f32 %v578, %v592
      %608 = vrot.lane.b32.xlu0 %v596, 110
      %v609 = vpop.permute.xlu0 %608
      %610 = vrot.lane.b32.xlu0 %v597, 110
      %v611 = vpop.permute.xlu0 %610
      %612 = vrot.lane.b32.xlu0 %v598, 110
      %v613 = vpop.permute.xlu0 %612
      %614 = vrot.lane.b32.xlu0 %v599, 110
      %v615 = vpop.permute.xlu0 %614
      %616 = vrot.lane.b32.xlu0 %v600, 110
      %v617 = vpop.permute.xlu0 %616
      %618 = vrot.lane.b32.xlu0 %v601, 110
      %v619 = vpop.permute.xlu0 %618
      %vm620 = vcmask 900096
      %v621 = vsel %vm620, %v609, %v611
      %v622 = vsel %vm620, %v611, %v613
      %v623 = vsel %vm620, %v615, %v617
      %v624 = vsel %vm620, %v617, %v619
      %v629 = vadd.f32 %v561, %v621
      %v630 = vadd.f32 %v562, %v622
      %v631 = vadd.f32 %v563, %v623
      %v632 = vadd.f32 %v564, %v624
      %633 = vrot.lane.b32.xlu0 %v252, 32
      %v634 = vpop.permute.xlu0 %633
      %v635 = vrot.slane %v634, 7
      %vm636 = vcmask 261120
      %v637 = vsel %vm636, %v635, %v634
      %v639 = vmul.f32 %v320, %v637
      %640 = vset.pattern.permute.xlu0 6
      %641 = vperm.xlu0 %640, %v289
      %v642 = vpop.permute.xlu0 %641
      %644 = vset.pattern.permute.xlu0 6
      %645 = vperm.xlu0 %644, %v290
      %v646 = vpop.permute.xlu0 %645
      %v649 = vlaneseq
      %v650 = vshrl.u32 %v649, 7
      %v651 = vsub.s32 0, %v650
      %v652 = vrot.slane %v639, %v651
      %v653 = vlaneseq
      %v654 = vshrl.u32 %v653, 7
      %v655 = vsub.s32 1, %v654
      %v656 = vrot.slane %v639, %v655
      %v657 = vlaneseq
      %v658 = vshrl.u32 %v657, 7
      %v659 = vsub.s32 2, %v658
      %v660 = vrot.slane %v639, %v659
      %v664 = vmul.f32 %v642, %v652
      %v665 = vmul.f32 %v642, %v656
      %v666 = vmul.f32 %v642, %v660
      %v667 = vmul.f32 %v646, %v652
      %v668 = vmul.f32 %v646, %v656
      %v669 = vmul.f32 %v646, %v660
      %676 = vrot.lane.b32.xlu0 %v664, 96
      %v677 = vpop.permute.xlu0 %676
      %678 = vrot.lane.b32.xlu0 %v665, 96
      %v679 = vpop.permute.xlu0 %678
      %680 = vrot.lane.b32.xlu0 %v666, 96
      %v681 = vpop.permute.xlu0 %680
      %682 = vrot.lane.b32.xlu0 %v667, 96
      %v683 = vpop.permute.xlu0 %682
      %684 = vrot.lane.b32.xlu0 %v668, 96
      %v685 = vpop.permute.xlu0 %684
      %686 = vrot.lane.b32.xlu0 %v669, 96
      %v687 = vpop.permute.xlu0 %686
      %vm688 = vcmask 785408
      %v689 = vsel %vm688, %v677, %v679
      %v690 = vsel %vm688, %v679, %v681
      %v691 = vsel %vm688, %v683, %v685
      %v692 = vsel %vm688, %v685, %v687
      %v697 = vadd.f32 %v629, %v689
      %v698 = vadd.f32 %v630, %v690
      %v699 = vadd.f32 %v631, %v691
      %v700 = vadd.f32 %v632, %v692
      %701 = vset.pattern.permute.xlu0 7
      %702 = vperm.xlu0 %701, %v289
      %v703 = vpop.permute.xlu0 %702
      %705 = vset.pattern.permute.xlu0 7
      %706 = vperm.xlu0 %705, %v290
      %v707 = vpop.permute.xlu0 %706
      %v709 = vmul.f32 %v703, %v333
      %v710 = vmul.f32 %v703, %v337
      %v711 = vmul.f32 %v703, %v341
      %v712 = vmul.f32 %v707, %v333
      %v713 = vmul.f32 %v707, %v337
      %v714 = vmul.f32 %v707, %v341
      %721 = vrot.lane.b32.xlu0 %v709, 95
      %v722 = vpop.permute.xlu0 %721
      %723 = vrot.lane.b32.xlu0 %v710, 95
      %v724 = vpop.permute.xlu0 %723
      %725 = vrot.lane.b32.xlu0 %v711, 95
      %v726 = vpop.permute.xlu0 %725
      %727 = vrot.lane.b32.xlu0 %v712, 95
      %v728 = vpop.permute.xlu0 %727
      %729 = vrot.lane.b32.xlu0 %v713, 95
      %v730 = vpop.permute.xlu0 %729
      %731 = vrot.lane.b32.xlu0 %v714, 95
      %v732 = vpop.permute.xlu0 %731
      %vm733 = vcmask 777216
      %v734 = vsel %vm733, %v722, %v724
      %v735 = vsel %vm733, %v724, %v726
      %v736 = vsel %vm733, %v728, %v730
      %v737 = vsel %vm733, %v730, %v732
      %v742 = vadd.f32 %v697, %v734
      %v743 = vadd.f32 %v698, %v735
      %v744 = vadd.f32 %v699, %v736
      %v745 = vadd.f32 %v700, %v737
      %746 = vrot.lane.b32.xlu0 %v254, 34
      %v747 = vpop.permute.xlu0 %746
      %v748 = vrot.slane %v747, 7
      %vm749 = vcmask 277504
      %v750 = vsel %vm749, %v748, %v747
      %v752 = vmul.f32 %v320, %v750
      %753 = vset.pattern.permute.xlu0 8
      %754 = vperm.xlu0 %753, %v289
      %v755 = vpop.permute.xlu0 %754
      %757 = vset.pattern.permute.xlu0 8
      %758 = vperm.xlu0 %757, %v290
      %v759 = vpop.permute.xlu0 %758
      %v762 = vlaneseq
      %v763 = vshrl.u32 %v762, 7
      %v764 = vsub.s32 0, %v763
      %v765 = vrot.slane %v752, %v764
      %v766 = vlaneseq
      %v767 = vshrl.u32 %v766, 7
      %v768 = vsub.s32 1, %v767
      %v769 = vrot.slane %v752, %v768
      %v770 = vlaneseq
      %v771 = vshrl.u32 %v770, 7
      %v772 = vsub.s32 2, %v771
      %v773 = vrot.slane %v752, %v772
      %v777 = vmul.f32 %v755, %v765
      %v778 = vmul.f32 %v755, %v769
      %v779 = vmul.f32 %v755, %v773
      %v780 = vmul.f32 %v759, %v765
      %v781 = vmul.f32 %v759, %v769
      %v782 = vmul.f32 %v759, %v773
      %789 = vrot.lane.b32.xlu0 %v777, 94
      %v790 = vpop.permute.xlu0 %789
      %791 = vrot.lane.b32.xlu0 %v778, 94
      %v792 = vpop.permute.xlu0 %791
      %793 = vrot.lane.b32.xlu0 %v779, 94
      %v794 = vpop.permute.xlu0 %793
      %795 = vrot.lane.b32.xlu0 %v780, 94
      %v796 = vpop.permute.xlu0 %795
      %797 = vrot.lane.b32.xlu0 %v781, 94
      %v798 = vpop.permute.xlu0 %797
      %799 = vrot.lane.b32.xlu0 %v782, 94
      %v800 = vpop.permute.xlu0 %799
      %vm801 = vcmask 769024
      %v802 = vsel %vm801, %v790, %v792
      %v803 = vsel %vm801, %v792, %v794
      %v804 = vsel %vm801, %v796, %v798
      %v805 = vsel %vm801, %v798, %v800
      %v810 = vadd.f32 %v742, %v802
      %v811 = vadd.f32 %v743, %v803
      %v812 = vadd.f32 %v744, %v804
      %v813 = vadd.f32 %v745, %v805
      %s814 = scalar_lea.vmem [#allocation2], 1
      %v815 = vld [vmem:[%s814] ss:$4 sm:$0x3]
      %v816 = vmul.f32 %v815, %v252
      %817 = vset.pattern.permute.xlu0 9
      %818 = vperm.xlu0 %817, %v289
      %v819 = vpop.permute.xlu0 %818
      %821 = vset.pattern.permute.xlu0 9
      %822 = vperm.xlu0 %821, %v290
      %v823 = vpop.permute.xlu0 %822
      %v826 = vlaneseq
      %v827 = vshrl.u32 %v826, 7
      %v828 = vsub.s32 0, %v827
      %v829 = vrot.slane %v816, %v828
      %v830 = vlaneseq
      %v831 = vshrl.u32 %v830, 7
      %v832 = vsub.s32 1, %v831
      %v833 = vrot.slane %v816, %v832
      %v836 = vmul.f32 %v819, %v829
      %v837 = vmul.f32 %v819, %v833
      %v838 = vmul.f32 %v823, %v829
      %v839 = vmul.f32 %v823, %v833
      %v840 = vadd.f32 %v810, %v836
      %v841 = vadd.f32 %v811, %v837
      %v842 = vadd.f32 %v812, %v838
      %v843 = vadd.f32 %v813, %v839
      %v844 = vld [vmem:[%s814] ss:$4 sm:$0x7]
      %845 = vset.pattern.permute.xlu0 10
      %846 = vperm.xlu0 %845, %v289
      %v847 = vpop.permute.xlu0 %846
      %849 = vset.pattern.permute.xlu0 10
      %850 = vperm.xlu0 %849, %v290
      %v851 = vpop.permute.xlu0 %850
      %v854 = vlaneseq
      %v855 = vshrl.u32 %v854, 7
      %v856 = vsub.s32 0, %v855
      %v857 = vrot.slane %v844, %v856
      %v858 = vlaneseq
      %v859 = vshrl.u32 %v858, 7
      %v860 = vsub.s32 1, %v859
      %v861 = vrot.slane %v844, %v860
      %v862 = vlaneseq
      %v863 = vshrl.u32 %v862, 7
      %v864 = vsub.s32 2, %v863
      %v865 = vrot.slane %v844, %v864
      %v869 = vmul.f32 %v847, %v857
      %v870 = vmul.f32 %v847, %v861
      %v871 = vmul.f32 %v847, %v865
      %v872 = vmul.f32 %v851, %v857
      %v873 = vmul.f32 %v851, %v861
      %v874 = vmul.f32 %v851, %v865
      %881 = vrot.lane.b32.xlu0 %v869, 127
      %v882 = vpop.permute.xlu0 %881
      %883 = vrot.lane.b32.xlu0 %v870, 127
      %v884 = vpop.permute.xlu0 %883
      %885 = vrot.lane.b32.xlu0 %v871, 127
      %v886 = vpop.permute.xlu0 %885
      %887 = vrot.lane.b32.xlu0 %v872, 127
      %v888 = vpop.permute.xlu0 %887
      %889 = vrot.lane.b32.xlu0 %v873, 127
      %v890 = vpop.permute.xlu0 %889
      %891 = vrot.lane.b32.xlu0 %v874, 127
      %v892 = vpop.permute.xlu0 %891
      %v893 = vsel %vm369, %v882, %v884
      %v894 = vsel %vm369, %v884, %v886
      %v895 = vsel %vm369, %v888, %v890
      %v896 = vsel %vm369, %v890, %v892
      %v901 = vadd.f32 %v840, %v893
      %v902 = vadd.f32 %v841, %v894
      %v903 = vadd.f32 %v842, %v895
      %v904 = vadd.f32 %v843, %v896
      %v905 = vmul.f32 %v844, %v387
      %906 = vset.pattern.permute.xlu0 11
      %907 = vperm.xlu0 %906, %v289
      %v908 = vpop.permute.xlu0 %907
      %910 = vset.pattern.permute.xlu0 11
      %911 = vperm.xlu0 %910, %v290
      %v912 = vpop.permute.xlu0 %911
      %v915 = vlaneseq
      %v916 = vshrl.u32 %v915, 7
      %v917 = vsub.s32 0, %v916
      %v918 = vrot.slane %v905, %v917
      %v919 = vlaneseq
      %v920 = vshrl.u32 %v919, 7
      %v921 = vsub.s32 1, %v920
      %v922 = vrot.slane %v905, %v921
      %v923 = vlaneseq
      %v924 = vshrl.u32 %v923, 7
      %v925 = vsub.s32 2, %v924
      %v926 = vrot.slane %v905, %v925
      %v930 = vmul.f32 %v908, %v918
      %v931 = vmul.f32 %v908, %v922
      %v932 = vmul.f32 %v908, %v926
      %v933 = vmul.f32 %v912, %v918
      %v934 = vmul.f32 %v912, %v922
      %v935 = vmul.f32 %v912, %v926
      %942 = vrot.lane.b32.xlu0 %v930, 126
      %v943 = vpop.permute.xlu0 %942
      %944 = vrot.lane.b32.xlu0 %v931, 126
      %v945 = vpop.permute.xlu0 %944
      %946 = vrot.lane.b32.xlu0 %v932, 126
      %v947 = vpop.permute.xlu0 %946
      %948 = vrot.lane.b32.xlu0 %v933, 126
      %v949 = vpop.permute.xlu0 %948
      %950 = vrot.lane.b32.xlu0 %v934, 126
      %v951 = vpop.permute.xlu0 %950
      %952 = vrot.lane.b32.xlu0 %v935, 126
      %v953 = vpop.permute.xlu0 %952
      %v954 = vsel %vm438, %v943, %v945
      %v955 = vsel %vm438, %v945, %v947
      %v956 = vsel %vm438, %v949, %v951
      %v957 = vsel %vm438, %v951, %v953
      %v962 = vadd.f32 %v901, %v954
      %v963 = vadd.f32 %v902, %v955
      %v964 = vadd.f32 %v903, %v956
      %v965 = vadd.f32 %v904, %v957
      %v966 = vmul.f32 %v844, %v456
      %967 = vset.pattern.permute.xlu0 12
      %968 = vperm.xlu0 %967, %v289
      %v969 = vpop.permute.xlu0 %968
      %971 = vset.pattern.permute.xlu0 12
      %972 = vperm.xlu0 %971, %v290
      %v973 = vpop.permute.xlu0 %972
      %v976 = vlaneseq
      %v977 = vshrl.u32 %v976, 7
      %v978 = vsub.s32 0, %v977
      %v979 = vrot.slane %v966, %v978
      %v980 = vlaneseq
      %v981 = vshrl.u32 %v980, 7
      %v982 = vsub.s32 1, %v981
      %v983 = vrot.slane %v966, %v982
      %v984 = vlaneseq
      %v985 = vshrl.u32 %v984, 7
      %v986 = vsub.s32 2, %v985
      %v987 = vrot.slane %v966, %v986
      %v991 = vmul.f32 %v969, %v979
      %v992 = vmul.f32 %v969, %v983
      %v993 = vmul.f32 %v969, %v987
      %v994 = vmul.f32 %v973, %v979
      %v995 = vmul.f32 %v973, %v983
      %v996 = vmul.f32 %v973, %v987
      %1003 = vrot.lane.b32.xlu0 %v991, 112
      %v1004 = vpop.permute.xlu0 %1003
      %1005 = vrot.lane.b32.xlu0 %v992, 112
      %v1006 = vpop.permute.xlu0 %1005
      %1007 = vrot.lane.b32.xlu0 %v993, 112
      %v1008 = vpop.permute.xlu0 %1007
      %1009 = vrot.lane.b32.xlu0 %v994, 112
      %v1010 = vpop.permute.xlu0 %1009
      %1011 = vrot.lane.b32.xlu0 %v995, 112
      %v1012 = vpop.permute.xlu0 %1011
      %1013 = vrot.lane.b32.xlu0 %v996, 112
      %v1014 = vpop.permute.xlu0 %1013
      %v1015 = vsel %vm507, %v1004, %v1006
      %v1016 = vsel %vm507, %v1006, %v1008
      %v1017 = vsel %vm507, %v1010, %v1012
      %v1018 = vsel %vm507, %v1012, %v1014
      %v1023 = vadd.f32 %v962, %v1015
      %v1024 = vadd.f32 %v963, %v1016
      %v1025 = vadd.f32 %v964, %v1017
      %v1026 = vadd.f32 %v965, %v1018
      %1027 = vset.pattern.permute.xlu0 13
      %1028 = vperm.xlu0 %1027, %v289
      %v1029 = vpop.permute.xlu0 %1028
      %1031 = vset.pattern.permute.xlu0 13
      %1032 = vperm.xlu0 %1031, %v290
      %v1033 = vpop.permute.xlu0 %1032
      %v1035 = vmul.f32 %v1029, %v857
      %v1036 = vmul.f32 %v1029, %v861
      %v1037 = vmul.f32 %v1029, %v865
      %v1038 = vmul.f32 %v1033, %v857
      %v1039 = vmul.f32 %v1033, %v861
      %v1040 = vmul.f32 %v1033, %v865
      %1047 = vrot.lane.b32.xlu0 %v1035, 111
      %v1048 = vpop.permute.xlu0 %1047
      %1049 = vrot.lane.b32.xlu0 %v1036, 111
      %v1050 = vpop.permute.xlu0 %1049
      %1051 = vrot.lane.b32.xlu0 %v1037, 111
      %v1052 = vpop.permute.xlu0 %1051
      %1053 = vrot.lane.b32.xlu0 %v1038, 111
      %v1054 = vpop.permute.xlu0 %1053
      %1055 = vrot.lane.b32.xlu0 %v1039, 111
      %v1056 = vpop.permute.xlu0 %1055
      %1057 = vrot.lane.b32.xlu0 %v1040, 111
      %v1058 = vpop.permute.xlu0 %1057
      %v1059 = vsel %vm552, %v1048, %v1050
      %v1060 = vsel %vm552, %v1050, %v1052
      %v1061 = vsel %vm552, %v1054, %v1056
      %v1062 = vsel %vm552, %v1056, %v1058
      %v1067 = vadd.f32 %v1023, %v1059
      %v1068 = vadd.f32 %v1024, %v1060
      %v1069 = vadd.f32 %v1025, %v1061
      %v1070 = vadd.f32 %v1026, %v1062
      %v1071 = vmul.f32 %v844, %v569
      %1072 = vset.pattern.permute.xlu0 14
      %1073 = vperm.xlu0 %1072, %v289
      %v1074 = vpop.permute.xlu0 %1073
      %1076 = vset.pattern.permute.xlu0 14
      %1077 = vperm.xlu0 %1076, %v290
      %v1078 = vpop.permute.xlu0 %1077
      %v1081 = vlaneseq
      %v1082 = vshrl.u32 %v1081, 7
      %v1083 = vsub.s32 0, %v1082
      %v1084 = vrot.slane %v1071, %v1083
      %v1085 = vlaneseq
      %v1086 = vshrl.u32 %v1085, 7
      %v1087 = vsub.s32 1, %v1086
      %v1088 = vrot.slane %v1071, %v1087
      %v1089 = vlaneseq
      %v1090 = vshrl.u32 %v1089, 7
      %v1091 = vsub.s32 2, %v1090
      %v1092 = vrot.slane %v1071, %v1091
      %v1096 = vmul.f32 %v1074, %v1084
      %v1097 = vmul.f32 %v1074, %v1088
      %v1098 = vmul.f32 %v1074, %v1092
      %v1099 = vmul.f32 %v1078, %v1084
      %v1100 = vmul.f32 %v1078, %v1088
      %v1101 = vmul.f32 %v1078, %v1092
      %1108 = vrot.lane.b32.xlu0 %v1096, 110
      %v1109 = vpop.permute.xlu0 %1108
      %1110 = vrot.lane.b32.xlu0 %v1097, 110
      %v1111 = vpop.permute.xlu0 %1110
      %1112 = vrot.lane.b32.xlu0 %v1098, 110
      %v1113 = vpop.permute.xlu0 %1112
      %1114 = vrot.lane.b32.xlu0 %v1099, 110
      %v1115 = vpop.permute.xlu0 %1114
      %1116 = vrot.lane.b32.xlu0 %v1100, 110
      %v1117 = vpop.permute.xlu0 %1116
      %1118 = vrot.lane.b32.xlu0 %v1101, 110
      %v1119 = vpop.permute.xlu0 %1118
      %v1120 = vsel %vm620, %v1109, %v1111
      %v1121 = vsel %vm620, %v1111, %v1113
      %v1122 = vsel %vm620, %v1115, %v1117
      %v1123 = vsel %vm620, %v1117, %v1119
      %v1128 = vadd.f32 %v1067, %v1120
      %v1129 = vadd.f32 %v1068, %v1121
      %v1130 = vadd.f32 %v1069, %v1122
      %v1131 = vadd.f32 %v1070, %v1123
      %v1132 = vmul.f32 %v844, %v637
      %1133 = vset.pattern.permute.xlu0 15
      %1134 = vperm.xlu0 %1133, %v289
      %v1135 = vpop.permute.xlu0 %1134
      %1137 = vset.pattern.permute.xlu0 15
      %1138 = vperm.xlu0 %1137, %v290
      %v1139 = vpop.permute.xlu0 %1138
      %v1142 = vlaneseq
      %v1143 = vshrl.u32 %v1142, 7
      %v1144 = vsub.s32 0, %v1143
      %v1145 = vrot.slane %v1132, %v1144
      %v1146 = vlaneseq
      %v1147 = vshrl.u32 %v1146, 7
      %v1148 = vsub.s32 1, %v1147
      %v1149 = vrot.slane %v1132, %v1148
      %v1150 = vlaneseq
      %v1151 = vshrl.u32 %v1150, 7
      %v1152 = vsub.s32 2, %v1151
      %v1153 = vrot.slane %v1132, %v1152
      %v1157 = vmul.f32 %v1135, %v1145
      %v1158 = vmul.f32 %v1135, %v1149
      %v1159 = vmul.f32 %v1135, %v1153
      %v1160 = vmul.f32 %v1139, %v1145
      %v1161 = vmul.f32 %v1139, %v1149
      %v1162 = vmul.f32 %v1139, %v1153
      %1169 = vrot.lane.b32.xlu0 %v1157, 96
      %v1170 = vpop.permute.xlu0 %1169
      %1171 = vrot.lane.b32.xlu0 %v1158, 96
      %v1172 = vpop.permute.xlu0 %1171
      %1173 = vrot.lane.b32.xlu0 %v1159, 96
      %v1174 = vpop.permute.xlu0 %1173
      %1175 = vrot.lane.b32.xlu0 %v1160, 96
      %v1176 = vpop.permute.xlu0 %1175
      %1177 = vrot.lane.b32.xlu0 %v1161, 96
      %v1178 = vpop.permute.xlu0 %1177
      %1179 = vrot.lane.b32.xlu0 %v1162, 96
      %v1180 = vpop.permute.xlu0 %1179
      %v1181 = vsel %vm688, %v1170, %v1172
      %v1182 = vsel %vm688, %v1172, %v1174
      %v1183 = vsel %vm688, %v1176, %v1178
      %v1184 = vsel %vm688, %v1178, %v1180
      %v1189 = vadd.f32 %v1128, %v1181
      %v1190 = vadd.f32 %v1129, %v1182
      %v1191 = vadd.f32 %v1130, %v1183
      %v1192 = vadd.f32 %v1131, %v1184
      %1193 = vset.pattern.permute.xlu0 16
      %1194 = vperm.xlu0 %1193, %v289
      %v1195 = vpop.permute.xlu0 %1194
      %1197 = vset.pattern.permute.xlu0 16
      %1198 = vperm.xlu0 %1197, %v290
      %v1199 = vpop.permute.xlu0 %1198
      %v1201 = vmul.f32 %v1195, %v857
      %v1202 = vmul.f32 %v1195, %v861
      %v1203 = vmul.f32 %v1195, %v865
      %v1204 = vmul.f32 %v1199, %v857
      %v1205 = vmul.f32 %v1199, %v861
      %v1206 = vmul.f32 %v1199, %v865
      %1213 = vrot.lane.b32.xlu0 %v1201, 95
      %v1214 = vpop.permute.xlu0 %1213
      %1215 = vrot.lane.b32.xlu0 %v1202, 95
      %v1216 = vpop.permute.xlu0 %1215
      %1217 = vrot.lane.b32.xlu0 %v1203, 95
      %v1218 = vpop.permute.xlu0 %1217
      %1219 = vrot.lane.b32.xlu0 %v1204, 95
      %v1220 = vpop.permute.xlu0 %1219
      %1221 = vrot.lane.b32.xlu0 %v1205, 95
      %v1222 = vpop.permute.xlu0 %1221
      %1223 = vrot.lane.b32.xlu0 %v1206, 95
      %v1224 = vpop.permute.xlu0 %1223
      %v1225 = vsel %vm733, %v1214, %v1216
      %v1226 = vsel %vm733, %v1216, %v1218
      %v1227 = vsel %vm733, %v1220, %v1222
      %v1228 = vsel %vm733, %v1222, %v1224
      %v1233 = vadd.f32 %v1189, %v1225
      %v1234 = vadd.f32 %v1190, %v1226
      %v1235 = vadd.f32 %v1191, %v1227
      %v1236 = vadd.f32 %v1192, %v1228
      %v1237 = vmul.f32 %v844, %v750
      %1238 = vset.pattern.permute.xlu0 17
      %1239 = vperm.xlu0 %1238, %v289
      %v1240 = vpop.permute.xlu0 %1239
      %1242 = vset.pattern.permute.xlu0 17
      %1243 = vperm.xlu0 %1242, %v290
      %v1244 = vpop.permute.xlu0 %1243
      %v1247 = vlaneseq
      %v1248 = vshrl.u32 %v1247, 7
      %v1249 = vsub.s32 0, %v1248
      %v1250 = vrot.slane %v1237, %v1249
      %v1251 = vlaneseq
      %v1252 = vshrl.u32 %v1251, 7
      %v1253 = vsub.s32 1, %v1252
      %v1254 = vrot.slane %v1237, %v1253
      %v1255 = vlaneseq
      %v1256 = vshrl.u32 %v1255, 7
      %v1257 = vsub.s32 2, %v1256
      %v1258 = vrot.slane %v1237, %v1257
      %v1262 = vmul.f32 %v1240, %v1250
      %v1263 = vmul.f32 %v1240, %v1254
      %v1264 = vmul.f32 %v1240, %v1258
      %v1265 = vmul.f32 %v1244, %v1250
      %v1266 = vmul.f32 %v1244, %v1254
      %v1267 = vmul.f32 %v1244, %v1258
      %1274 = vrot.lane.b32.xlu0 %v1262, 94
      %v1275 = vpop.permute.xlu0 %1274
      %1276 = vrot.lane.b32.xlu0 %v1263, 94
      %v1277 = vpop.permute.xlu0 %1276
      %1278 = vrot.lane.b32.xlu0 %v1264, 94
      %v1279 = vpop.permute.xlu0 %1278
      %1280 = vrot.lane.b32.xlu0 %v1265, 94
      %v1281 = vpop.permute.xlu0 %1280
      %1282 = vrot.lane.b32.xlu0 %v1266, 94
      %v1283 = vpop.permute.xlu0 %1282
      %1284 = vrot.lane.b32.xlu0 %v1267, 94
      %v1285 = vpop.permute.xlu0 %1284
      %v1286 = vsel %vm801, %v1275, %v1277
      %v1287 = vsel %vm801, %v1277, %v1279
      %v1288 = vsel %vm801, %v1281, %v1283
      %v1289 = vsel %vm801, %v1283, %v1285
      %v1294 = vadd.f32 %v1233, %v1286
      %v1295 = vadd.f32 %v1234, %v1287
      %v1296 = vadd.f32 %v1235, %v1288
      %v1297 = vadd.f32 %v1236, %v1289
      %s1298 = scalar_lea.vmem [#allocation2], 2
      %v1299 = vld [vmem:[%s1298] ss:$4 sm:$0x3]
      %v1300 = vmul.f32 %v1299, %v252
      %1301 = vset.pattern.permute.xlu0 18
      %1302 = vperm.xlu0 %1301, %v289
      %v1303 = vpop.permute.xlu0 %1302
      %1305 = vset.pattern.permute.xlu0 18
      %1306 = vperm.xlu0 %1305, %v290
      %v1307 = vpop.permute.xlu0 %1306
      %v1310 = vlaneseq
      %v1311 = vshrl.u32 %v1310, 7
      %v1312 = vsub.s32 0, %v1311
      %v1313 = vrot.slane %v1300, %v1312
      %v1314 = vlaneseq
      %v1315 = vshrl.u32 %v1314, 7
      %v1316 = vsub.s32 1, %v1315
      %v1317 = vrot.slane %v1300, %v1316
      %v1320 = vmul.f32 %v1303, %v1313
      %v1321 = vmul.f32 %v1303, %v1317
      %v1322 = vmul.f32 %v1307, %v1313
      %v1323 = vmul.f32 %v1307, %v1317
      %v1324 = vadd.f32 %v1294, %v1320
      %v1325 = vadd.f32 %v1295, %v1321
      %v1326 = vadd.f32 %v1296, %v1322
      %v1327 = vadd.f32 %v1297, %v1323
      %v1328 = vld [vmem:[%s1298] ss:$4 sm:$0x7]
      %1329 = vset.pattern.permute.xlu0 19
      %1330 = vperm.xlu0 %1329, %v289
      %v1331 = vpop.permute.xlu0 %1330
      %1333 = vset.pattern.permute.xlu0 19
      %1334 = vperm.xlu0 %1333, %v290
      %v1335 = vpop.permute.xlu0 %1334
      %v1338 = vlaneseq
      %v1339 = vshrl.u32 %v1338, 7
      %v1340 = vsub.s32 0, %v1339
      %v1341 = vrot.slane %v1328, %v1340
      %v1342 = vlaneseq
      %v1343 = vshrl.u32 %v1342, 7
      %v1344 = vsub.s32 1, %v1343
      %v1345 = vrot.slane %v1328, %v1344
      %v1346 = vlaneseq
      %v1347 = vshrl.u32 %v1346, 7
      %v1348 = vsub.s32 2, %v1347
      %v1349 = vrot.slane %v1328, %v1348
      %v1353 = vmul.f32 %v1331, %v1341
      %v1354 = vmul.f32 %v1331, %v1345
      %v1355 = vmul.f32 %v1331, %v1349
      %v1356 = vmul.f32 %v1335, %v1341
      %v1357 = vmul.f32 %v1335, %v1345
      %v1358 = vmul.f32 %v1335, %v1349
      %1365 = vrot.lane.b32.xlu0 %v1353, 127
      %v1366 = vpop.permute.xlu0 %1365
      %1367 = vrot.lane.b32.xlu0 %v1354, 127
      %v1368 = vpop.permute.xlu0 %1367
      %1369 = vrot.lane.b32.xlu0 %v1355, 127
      %v1370 = vpop.permute.xlu0 %1369
      %1371 = vrot.lane.b32.xlu0 %v1356, 127
      %v1372 = vpop.permute.xlu0 %1371
      %1373 = vrot.lane.b32.xlu0 %v1357, 127
      %v1374 = vpop.permute.xlu0 %1373
      %1375 = vrot.lane.b32.xlu0 %v1358, 127
      %v1376 = vpop.permute.xlu0 %1375
      %v1377 = vsel %vm369, %v1366, %v1368
      %v1378 = vsel %vm369, %v1368, %v1370
      %v1379 = vsel %vm369, %v1372, %v1374
      %v1380 = vsel %vm369, %v1374, %v1376
      %v1385 = vadd.f32 %v1324, %v1377
      %v1386 = vadd.f32 %v1325, %v1378
      %v1387 = vadd.f32 %v1326, %v1379
      %v1388 = vadd.f32 %v1327, %v1380
      %v1389 = vmul.f32 %v1328, %v387
      %1390 = vset.pattern.permute.xlu0 20
      %1391 = vperm.xlu0 %1390, %v289
      %v1392 = vpop.permute.xlu0 %1391
      %1394 = vset.pattern.permute.xlu0 20
      %1395 = vperm.xlu0 %1394, %v290
      %v1396 = vpop.permute.xlu0 %1395
      %v1399 = vlaneseq
      %v1400 = vshrl.u32 %v1399, 7
      %v1401 = vsub.s32 0, %v1400
      %v1402 = vrot.slane %v1389, %v1401
      %v1403 = vlaneseq
      %v1404 = vshrl.u32 %v1403, 7
      %v1405 = vsub.s32 1, %v1404
      %v1406 = vrot.slane %v1389, %v1405
      %v1407 = vlaneseq
      %v1408 = vshrl.u32 %v1407, 7
      %v1409 = vsub.s32 2, %v1408
      %v1410 = vrot.slane %v1389, %v1409
      %v1414 = vmul.f32 %v1392, %v1402
      %v1415 = vmul.f32 %v1392, %v1406
      %v1416 = vmul.f32 %v1392, %v1410
      %v1417 = vmul.f32 %v1396, %v1402
      %v1418 = vmul.f32 %v1396, %v1406
      %v1419 = vmul.f32 %v1396, %v1410
      %1426 = vrot.lane.b32.xlu0 %v1414, 126
      %v1427 = vpop.permute.xlu0 %1426
      %1428 = vrot.lane.b32.xlu0 %v1415, 126
      %v1429 = vpop.permute.xlu0 %1428
      %1430 = vrot.lane.b32.xlu0 %v1416, 126
      %v1431 = vpop.permute.xlu0 %1430
      %1432 = vrot.lane.b32.xlu0 %v1417, 126
      %v1433 = vpop.permute.xlu0 %1432
      %1434 = vrot.lane.b32.xlu0 %v1418, 126
      %v1435 = vpop.permute.xlu0 %1434
      %1436 = vrot.lane.b32.xlu0 %v1419, 126
      %v1437 = vpop.permute.xlu0 %1436
      %v1438 = vsel %vm438, %v1427, %v1429
      %v1439 = vsel %vm438, %v1429, %v1431
      %v1440 = vsel %vm438, %v1433, %v1435
      %v1441 = vsel %vm438, %v1435, %v1437
      %v1446 = vadd.f32 %v1385, %v1438
      %v1447 = vadd.f32 %v1386, %v1439
      %v1448 = vadd.f32 %v1387, %v1440
      %v1449 = vadd.f32 %v1388, %v1441
      %v1450 = vmul.f32 %v1328, %v456
      %1451 = vset.pattern.permute.xlu0 21
      %1452 = vperm.xlu0 %1451, %v289
      %v1453 = vpop.permute.xlu0 %1452
      %1455 = vset.pattern.permute.xlu0 21
      %1456 = vperm.xlu0 %1455, %v290
      %v1457 = vpop.permute.xlu0 %1456
      %v1460 = vlaneseq
      %v1461 = vshrl.u32 %v1460, 7
      %v1462 = vsub.s32 0, %v1461
      %v1463 = vrot.slane %v1450, %v1462
      %v1464 = vlaneseq
      %v1465 = vshrl.u32 %v1464, 7
      %v1466 = vsub.s32 1, %v1465
      %v1467 = vrot.slane %v1450, %v1466
      %v1468 = vlaneseq
      %v1469 = vshrl.u32 %v1468, 7
      %v1470 = vsub.s32 2, %v1469
      %v1471 = vrot.slane %v1450, %v1470
      %v1475 = vmul.f32 %v1453, %v1463
      %v1476 = vmul.f32 %v1453, %v1467
      %v1477 = vmul.f32 %v1453, %v1471
      %v1478 = vmul.f32 %v1457, %v1463
      %v1479 = vmul.f32 %v1457, %v1467
      %v1480 = vmul.f32 %v1457, %v1471
      %1487 = vrot.lane.b32.xlu0 %v1475, 112
      %v1488 = vpop.permute.xlu0 %1487
      %1489 = vrot.lane.b32.xlu0 %v1476, 112
      %v1490 = vpop.permute.xlu0 %1489
      %1491 = vrot.lane.b32.xlu0 %v1477, 112
      %v1492 = vpop.permute.xlu0 %1491
      %1493 = vrot.lane.b32.xlu0 %v1478, 112
      %v1494 = vpop.permute.xlu0 %1493
      %1495 = vrot.lane.b32.xlu0 %v1479, 112
      %v1496 = vpop.permute.xlu0 %1495
      %1497 = vrot.lane.b32.xlu0 %v1480, 112
      %v1498 = vpop.permute.xlu0 %1497
      %v1499 = vsel %vm507, %v1488, %v1490
      %v1500 = vsel %vm507, %v1490, %v1492
      %v1501 = vsel %vm507, %v1494, %v1496
      %v1502 = vsel %vm507, %v1496, %v1498
      %v1507 = vadd.f32 %v1446, %v1499
      %v1508 = vadd.f32 %v1447, %v1500
      %v1509 = vadd.f32 %v1448, %v1501
      %v1510 = vadd.f32 %v1449, %v1502
      %1511 = vset.pattern.permute.xlu0 22
      %1512 = vperm.xlu0 %1511, %v289
      %v1513 = vpop.permute.xlu0 %1512
      %1515 = vset.pattern.permute.xlu0 22
      %1516 = vperm.xlu0 %1515, %v290
      %v1517 = vpop.permute.xlu0 %1516
      %v1519 = vmul.f32 %v1513, %v1341
      %v1520 = vmul.f32 %v1513, %v1345
      %v1521 = vmul.f32 %v1513, %v1349
      %v1522 = vmul.f32 %v1517, %v1341
      %v1523 = vmul.f32 %v1517, %v1345
      %v1524 = vmul.f32 %v1517, %v1349
      %1531 = vrot.lane.b32.xlu0 %v1519, 111
      %v1532 = vpop.permute.xlu0 %1531
      %1533 = vrot.lane.b32.xlu0 %v1520, 111
      %v1534 = vpop.permute.xlu0 %1533
      %1535 = vrot.lane.b32.xlu0 %v1521, 111
      %v1536 = vpop.permute.xlu0 %1535
      %1537 = vrot.lane.b32.xlu0 %v1522, 111
      %v1538 = vpop.permute.xlu0 %1537
      %1539 = vrot.lane.b32.xlu0 %v1523, 111
      %v1540 = vpop.permute.xlu0 %1539
      %1541 = vrot.lane.b32.xlu0 %v1524, 111
      %v1542 = vpop.permute.xlu0 %1541
      %v1543 = vsel %vm552, %v1532, %v1534
      %v1544 = vsel %vm552, %v1534, %v1536
      %v1545 = vsel %vm552, %v1538, %v1540
      %v1546 = vsel %vm552, %v1540, %v1542
      %v1551 = vadd.f32 %v1507, %v1543
      %v1552 = vadd.f32 %v1508, %v1544
      %v1553 = vadd.f32 %v1509, %v1545
      %v1554 = vadd.f32 %v1510, %v1546
      %v1555 = vmul.f32 %v1328, %v569
      %1556 = vset.pattern.permute.xlu0 23
      %1557 = vperm.xlu0 %1556, %v289
      %v1558 = vpop.permute.xlu0 %1557
      %1560 = vset.pattern.permute.xlu0 23
      %1561 = vperm.xlu0 %1560, %v290
      %v1562 = vpop.permute.xlu0 %1561
      %v1565 = vlaneseq
      %v1566 = vshrl.u32 %v1565, 7
      %v1567 = vsub.s32 0, %v1566
      %v1568 = vrot.slane %v1555, %v1567
      %v1569 = vlaneseq
      %v1570 = vshrl.u32 %v1569, 7
      %v1571 = vsub.s32 1, %v1570
      %v1572 = vrot.slane %v1555, %v1571
      %v1573 = vlaneseq
      %v1574 = vshrl.u32 %v1573, 7
      %v1575 = vsub.s32 2, %v1574
      %v1576 = vrot.slane %v1555, %v1575
      %v1580 = vmul.f32 %v1558, %v1568
      %v1581 = vmul.f32 %v1558, %v1572
      %v1582 = vmul.f32 %v1558, %v1576
      %v1583 = vmul.f32 %v1562, %v1568
      %v1584 = vmul.f32 %v1562, %v1572
      %v1585 = vmul.f32 %v1562, %v1576
      %1592 = vrot.lane.b32.xlu0 %v1580, 110
      %v1593 = vpop.permute.xlu0 %1592
      %1594 = vrot.lane.b32.xlu0 %v1581, 110
      %v1595 = vpop.permute.xlu0 %1594
      %1596 = vrot.lane.b32.xlu0 %v1582, 110
      %v1597 = vpop.permute.xlu0 %1596
      %1598 = vrot.lane.b32.xlu0 %v1583, 110
      %v1599 = vpop.permute.xlu0 %1598
      %1600 = vrot.lane.b32.xlu0 %v1584, 110
      %v1601 = vpop.permute.xlu0 %1600
      %1602 = vrot.lane.b32.xlu0 %v1585, 110
      %v1603 = vpop.permute.xlu0 %1602
      %v1604 = vsel %vm620, %v1593, %v1595
      %v1605 = vsel %vm620, %v1595, %v1597
      %v1606 = vsel %vm620, %v1599, %v1601
      %v1607 = vsel %vm620, %v1601, %v1603
      %v1612 = vadd.f32 %v1551, %v1604
      %v1613 = vadd.f32 %v1552, %v1605
      %v1614 = vadd.f32 %v1553, %v1606
      %v1615 = vadd.f32 %v1554, %v1607
      %v1616 = vmul.f32 %v1328, %v637
      %1617 = vset.pattern.permute.xlu0 24
      %1618 = vperm.xlu0 %1617, %v289
      %v1619 = vpop.permute.xlu0 %1618
      %1621 = vset.pattern.permute.xlu0 24
      %1622 = vperm.xlu0 %1621, %v290
      %v1623 = vpop.permute.xlu0 %1622
      %v1626 = vlaneseq
      %v1627 = vshrl.u32 %v1626, 7
      %v1628 = vsub.s32 0, %v1627
      %v1629 = vrot.slane %v1616, %v1628
      %v1630 = vlaneseq
      %v1631 = vshrl.u32 %v1630, 7
      %v1632 = vsub.s32 1, %v1631
      %v1633 = vrot.slane %v1616, %v1632
      %v1634 = vlaneseq
      %v1635 = vshrl.u32 %v1634, 7
      %v1636 = vsub.s32 2, %v1635
      %v1637 = vrot.slane %v1616, %v1636
      %v1641 = vmul.f32 %v1619, %v1629
      %v1642 = vmul.f32 %v1619, %v1633
      %v1643 = vmul.f32 %v1619, %v1637
      %v1644 = vmul.f32 %v1623, %v1629
      %v1645 = vmul.f32 %v1623, %v1633
      %v1646 = vmul.f32 %v1623, %v1637
      %1653 = vrot.lane.b32.xlu0 %v1641, 96
      %v1654 = vpop.permute.xlu0 %1653
      %1655 = vrot.lane.b32.xlu0 %v1642, 96
      %v1656 = vpop.permute.xlu0 %1655
      %1657 = vrot.lane.b32.xlu0 %v1643, 96
      %v1658 = vpop.permute.xlu0 %1657
      %1659 = vrot.lane.b32.xlu0 %v1644, 96
      %v1660 = vpop.permute.xlu0 %1659
      %1661 = vrot.lane.b32.xlu0 %v1645, 96
      %v1662 = vpop.permute.xlu0 %1661
      %1663 = vrot.lane.b32.xlu0 %v1646, 96
      %v1664 = vpop.permute.xlu0 %1663
      %v1665 = vsel %vm688, %v1654, %v1656
      %v1666 = vsel %vm688, %v1656, %v1658
      %v1667 = vsel %vm688, %v1660, %v1662
      %v1668 = vsel %vm688, %v1662, %v1664
      %v1673 = vadd.f32 %v1612, %v1665
      %v1674 = vadd.f32 %v1613, %v1666
      %v1675 = vadd.f32 %v1614, %v1667
      %v1676 = vadd.f32 %v1615, %v1668
      %1677 = vset.pattern.permute.xlu0 25
      %1678 = vperm.xlu0 %1677, %v289
      %v1679 = vpop.permute.xlu0 %1678
      %1681 = vset.pattern.permute.xlu0 25
      %1682 = vperm.xlu0 %1681, %v290
      %v1683 = vpop.permute.xlu0 %1682
      %v1685 = vmul.f32 %v1679, %v1341
      %v1686 = vmul.f32 %v1679, %v1345
      %v1687 = vmul.f32 %v1679, %v1349
      %v1688 = vmul.f32 %v1683, %v1341
      %v1689 = vmul.f32 %v1683, %v1345
      %v1690 = vmul.f32 %v1683, %v1349
      %1697 = vrot.lane.b32.xlu0 %v1685, 95
      %v1698 = vpop.permute.xlu0 %1697
      %1699 = vrot.lane.b32.xlu0 %v1686, 95
      %v1700 = vpop.permute.xlu0 %1699
      %1701 = vrot.lane.b32.xlu0 %v1687, 95
      %v1702 = vpop.permute.xlu0 %1701
      %1703 = vrot.lane.b32.xlu0 %v1688, 95
      %v1704 = vpop.permute.xlu0 %1703
      %1705 = vrot.lane.b32.xlu0 %v1689, 95
      %v1706 = vpop.permute.xlu0 %1705
      %1707 = vrot.lane.b32.xlu0 %v1690, 95
      %v1708 = vpop.permute.xlu0 %1707
      %v1709 = vsel %vm733, %v1698, %v1700
      %v1710 = vsel %vm733, %v1700, %v1702
      %v1711 = vsel %vm733, %v1704, %v1706
      %v1712 = vsel %vm733, %v1706, %v1708
      %v1717 = vadd.f32 %v1673, %v1709
      %v1718 = vadd.f32 %v1674, %v1710
      %v1719 = vadd.f32 %v1675, %v1711
      %v1720 = vadd.f32 %v1676, %v1712
      %v1721 = vmul.f32 %v1328, %v750
      %1722 = vset.pattern.permute.xlu0 26
      %1723 = vperm.xlu0 %1722, %v289
      %v1724 = vpop.permute.xlu0 %1723
      %1726 = vset.pattern.permute.xlu0 26
      %1727 = vperm.xlu0 %1726, %v290
      %v1728 = vpop.permute.xlu0 %1727
      %v1731 = vlaneseq
      %v1732 = vshrl.u32 %v1731, 7
      %v1733 = vsub.s32 0, %v1732
      %v1734 = vrot.slane %v1721, %v1733
      %v1735 = vlaneseq
      %v1736 = vshrl.u32 %v1735, 7
      %v1737 = vsub.s32 1, %v1736
      %v1738 = vrot.slane %v1721, %v1737
      %v1739 = vlaneseq
      %v1740 = vshrl.u32 %v1739, 7
      %v1741 = vsub.s32 2, %v1740
      %v1742 = vrot.slane %v1721, %v1741
      %v1746 = vmul.f32 %v1724, %v1734
      %v1747 = vmul.f32 %v1724, %v1738
      %v1748 = vmul.f32 %v1724, %v1742
      %v1749 = vmul.f32 %v1728, %v1734
      %v1750 = vmul.f32 %v1728, %v1738
      %v1751 = vmul.f32 %v1728, %v1742
      %1758 = vrot.lane.b32.xlu0 %v1746, 94
      %v1759 = vpop.permute.xlu0 %1758
      %1760 = vrot.lane.b32.xlu0 %v1747, 94
      %v1761 = vpop.permute.xlu0 %1760
      %1762 = vrot.lane.b32.xlu0 %v1748, 94
      %v1763 = vpop.permute.xlu0 %1762
      %1764 = vrot.lane.b32.xlu0 %v1749, 94
      %v1765 = vpop.permute.xlu0 %1764
      %1766 = vrot.lane.b32.xlu0 %v1750, 94
      %v1767 = vpop.permute.xlu0 %1766
      %1768 = vrot.lane.b32.xlu0 %v1751, 94
      %v1769 = vpop.permute.xlu0 %1768
      %v1770 = vsel %vm801, %v1759, %v1761
      %v1771 = vsel %vm801, %v1761, %v1763
      %v1772 = vsel %vm801, %v1765, %v1767
      %v1773 = vsel %vm801, %v1767, %v1769
      %v1778 = vadd.f32 %v1717, %v1770
      %v1779 = vadd.f32 %v1718, %v1771
      %v1780 = vadd.f32 %v1719, %v1772
      %v1781 = vadd.f32 %v1720, %v1773
      %1782 = vst.msk [vmem:[#allocation3] sm:$0xff] %vm264, 0.0
      %vm1783 = vcmask 134144
      %1784 = vst.msk [vmem:[#allocation3 + $0x18] sm:$0xf] %vm1783, 0.0
      %vm1785 = vcmask 277640
      %1786 = vst.msk [vmem:[#allocation3 + $0x10] sm:$0xff] %vm1785, 0.0
      %vm1787 = vcmask 273544
      %1788 = vst.msk [vmem:[#allocation3 + $0x28] sm:$0xf] %vm1787, 0.0
      %1793 = vrot.lane.b32.xlu0 %v1778, 17
      %v1794 = vpop.permute.xlu0 %1793
      %1795 = vrot.lane.b32.xlu0 %v1779, 17
      %v1796 = vpop.permute.xlu0 %1795
      %1797 = vrot.lane.b32.xlu0 %v1780, 17
      %v1798 = vpop.permute.xlu0 %1797
      %1799 = vrot.lane.b32.xlu0 %v1781, 17
      %v1800 = vpop.permute.xlu0 %1799
      %v1801 = vsel %vm264, %v1794, %v1796
      %v1802 = vsel %vm264, %v1798, %v1800
      %vm1809 = vcmask 1047688
      %1810 = vst.msk [vmem:[#allocation3] sm:$0xff] %vm1809, %v1794
      %1811 = vst [vmem:[#allocation3 + $0x8] sm:$0xff] %v1801
      %1812 = vst.msk [vmem:[#allocation3 + $0x10] sm:$0xff] %vm264, %v1796
      %vm1813 = vcmask 1043592
      %1814 = vst.msk [vmem:[#allocation3 + $0x18] sm:$0xf] %vm1813, %v1798
      %1815 = vst [vmem:[#allocation3 + $0x20] sm:$0xf] %v1802
      %1816 = vst.msk [vmem:[#allocation3 + $0x28] sm:$0xf] %vm1783, %v1800
      %v1817 = vld [vmem:[%s4] sm:$0xf]
      %1819 = vset.pattern.permute.xlu0 0
      %1820 = vperm.xlu0 %1819, %v1817
      %v1821 = vpop.permute.xlu0 %1820
      %v1823 = vadd.f32 %v1821, 0.0
      %v1824 = vld [vmem:[#allocation3] ss:$8 sm:$0x3]
      %v1825 = vmul.f32 %v1824, %v252
      %v1826 = vld [vmem:[%s3] sm:$0xf]
      %1828 = vset.pattern.permute.xlu0 0
      %1829 = vperm.xlu0 %1828, %v1826
      %v1830 = vpop.permute.xlu0 %1829
      %v1833 = vlaneseq
      %v1834 = vshrl.u32 %v1833, 7
      %v1835 = vsub.s32 0, %v1834
      %v1836 = vrot.slane %v1825, %v1835
      %v1837 = vlaneseq
      %v1838 = vshrl.u32 %v1837, 7
      %v1839 = vsub.s32 1, %v1838
      %v1840 = vrot.slane %v1825, %v1839
      %v1843 = vmul.f32 %v1830, %v1836
      %v1844 = vmul.f32 %v1830, %v1840
      %v1845 = vadd.f32 %v1823, %v1843
      %v1846 = vadd.f32 %v1823, %v1844
      %v1847 = vld [vmem:[#allocation3] ss:$8 sm:$0x7]
      %1848 = vset.pattern.permute.xlu0 1
      %1849 = vperm.xlu0 %1848, %v1826
      %v1850 = vpop.permute.xlu0 %1849
      %v1853 = vlaneseq
      %v1854 = vshrl.u32 %v1853, 7
      %v1855 = vsub.s32 0, %v1854
      %v1856 = vrot.slane %v1847, %v1855
      %v1857 = vlaneseq
      %v1858 = vshrl.u32 %v1857, 7
      %v1859 = vsub.s32 1, %v1858
      %v1860 = vrot.slane %v1847, %v1859
      %v1861 = vlaneseq
      %v1862 = vshrl.u32 %v1861, 7
      %v1863 = vsub.s32 2, %v1862
      %v1864 = vrot.slane %v1847, %v1863
      %v1868 = vmul.f32 %v1850, %v1856
      %v1869 = vmul.f32 %v1850, %v1860
      %v1870 = vmul.f32 %v1850, %v1864
      %1874 = vrot.lane.b32.xlu0 %v1868, 127
      %v1875 = vpop.permute.xlu0 %1874
      %1876 = vrot.lane.b32.xlu0 %v1869, 127
      %v1877 = vpop.permute.xlu0 %1876
      %1878 = vrot.lane.b32.xlu0 %v1870, 127
      %v1879 = vpop.permute.xlu0 %1878
      %v1880 = vsel %vm369, %v1875, %v1877
      %v1881 = vsel %vm369, %v1877, %v1879
      %v1884 = vadd.f32 %v1845, %v1880
      %v1885 = vadd.f32 %v1846, %v1881
      %v1886 = vmul.f32 %v1847, %v387
      %1887 = vset.pattern.permute.xlu0 2
      %1888 = vperm.xlu0 %1887, %v1826
      %v1889 = vpop.permute.xlu0 %1888
      %v1892 = vlaneseq
      %v1893 = vshrl.u32 %v1892, 7
      %v1894 = vsub.s32 0, %v1893
      %v1895 = vrot.slane %v1886, %v1894
      %v1896 = vlaneseq
      %v1897 = vshrl.u32 %v1896, 7
      %v1898 = vsub.s32 1, %v1897
      %v1899 = vrot.slane %v1886, %v1898
      %v1900 = vlaneseq
      %v1901 = vshrl.u32 %v1900, 7
      %v1902 = vsub.s32 2, %v1901
      %v1903 = vrot.slane %v1886, %v1902
      %v1907 = vmul.f32 %v1889, %v1895
      %v1908 = vmul.f32 %v1889, %v1899
      %v1909 = vmul.f32 %v1889, %v1903
      %1913 = vrot.lane.b32.xlu0 %v1907, 126
      %v1914 = vpop.permute.xlu0 %1913
      %1915 = vrot.lane.b32.xlu0 %v1908, 126
      %v1916 = vpop.permute.xlu0 %1915
      %1917 = vrot.lane.b32.xlu0 %v1909, 126
      %v1918 = vpop.permute.xlu0 %1917
      %v1919 = vsel %vm438, %v1914, %v1916
      %v1920 = vsel %vm438, %v1916, %v1918
      %v1923 = vadd.f32 %v1884, %v1919
      %v1924 = vadd.f32 %v1885, %v1920
      %v1925 = vmul.f32 %v1847, %v456
      %1926 = vset.pattern.permute.xlu0 3
      %1927 = vperm.xlu0 %1926, %v1826
      %v1928 = vpop.permute.xlu0 %1927
      %v1931 = vlaneseq
      %v1932 = vshrl.u32 %v1931, 7
      %v1933 = vsub.s32 0, %v1932
      %v1934 = vrot.slane %v1925, %v1933
      %v1935 = vlaneseq
      %v1936 = vshrl.u32 %v1935, 7
      %v1937 = vsub.s32 1, %v1936
      %v1938 = vrot.slane %v1925, %v1937
      %v1939 = vlaneseq
      %v1940 = vshrl.u32 %v1939, 7
      %v1941 = vsub.s32 2, %v1940
      %v1942 = vrot.slane %v1925, %v1941
      %v1946 = vmul.f32 %v1928, %v1934
      %v1947 = vmul.f32 %v1928, %v1938
      %v1948 = vmul.f32 %v1928, %v1942
      %1952 = vrot.lane.b32.xlu0 %v1946, 112
      %v1953 = vpop.permute.xlu0 %1952
      %1954 = vrot.lane.b32.xlu0 %v1947, 112
      %v1955 = vpop.permute.xlu0 %1954
      %1956 = vrot.lane.b32.xlu0 %v1948, 112
      %v1957 = vpop.permute.xlu0 %1956
      %v1958 = vsel %vm507, %v1953, %v1955
      %v1959 = vsel %vm507, %v1955, %v1957
      %v1962 = vadd.f32 %v1923, %v1958
      %v1963 = vadd.f32 %v1924, %v1959
      %1964 = vset.pattern.permute.xlu0 4
      %1965 = vperm.xlu0 %1964, %v1826
      %v1966 = vpop.permute.xlu0 %1965
      %v1968 = vmul.f32 %v1966, %v1856
      %v1969 = vmul.f32 %v1966, %v1860
      %v1970 = vmul.f32 %v1966, %v1864
      %1974 = vrot.lane.b32.xlu0 %v1968, 111
      %v1975 = vpop.permute.xlu0 %1974
      %1976 = vrot.lane.b32.xlu0 %v1969, 111
      %v1977 = vpop.permute.xlu0 %1976
      %1978 = vrot.lane.b32.xlu0 %v1970, 111
      %v1979 = vpop.permute.xlu0 %1978
      %v1980 = vsel %vm552, %v1975, %v1977
      %v1981 = vsel %vm552, %v1977, %v1979
      %v1984 = vadd.f32 %v1962, %v1980
      %v1985 = vadd.f32 %v1963, %v1981
      %v1986 = vmul.f32 %v1847, %v569
      %1987 = vset.pattern.permute.xlu0 5
      %1988 = vperm.xlu0 %1987, %v1826
      %v1989 = vpop.permute.xlu0 %1988
      %v1992 = vlaneseq
      %v1993 = vshrl.u32 %v1992, 7
      %v1994 = vsub.s32 0, %v1993
      %v1995 = vrot.slane %v1986, %v1994
      %v1996 = vlaneseq
      %v1997 = vshrl.u32 %v1996, 7
      %v1998 = vsub.s32 1, %v1997
      %v1999 = vrot.slane %v1986, %v1998
      %v2000 = vlaneseq
      %v2001 = vshrl.u32 %v2000, 7
      %v2002 = vsub.s32 2, %v2001
      %v2003 = vrot.slane %v1986, %v2002
      %v2007 = vmul.f32 %v1989, %v1995
      %v2008 = vmul.f32 %v1989, %v1999
      %v2009 = vmul.f32 %v1989, %v2003
      %2013 = vrot.lane.b32.xlu0 %v2007, 110
      %v2014 = vpop.permute.xlu0 %2013
      %2015 = vrot.lane.b32.xlu0 %v2008, 110
      %v2016 = vpop.permute.xlu0 %2015
      %2017 = vrot.lane.b32.xlu0 %v2009, 110
      %v2018 = vpop.permute.xlu0 %2017
      %v2019 = vsel %vm620, %v2014, %v2016
      %v2020 = vsel %vm620, %v2016, %v2018
      %v2023 = vadd.f32 %v1984, %v2019
      %v2024 = vadd.f32 %v1985, %v2020
      %v2025 = vmul.f32 %v1847, %v637
      %2026 = vset.pattern.permute.xlu0 6
      %2027 = vperm.xlu0 %2026, %v1826
      %v2028 = vpop.permute.xlu0 %2027
      %v2031 = vlaneseq
      %v2032 = vshrl.u32 %v2031, 7
      %v2033 = vsub.s32 0, %v2032
      %v2034 = vrot.slane %v2025, %v2033
      %v2035 = vlaneseq
      %v2036 = vshrl.u32 %v2035, 7
      %v2037 = vsub.s32 1, %v2036
      %v2038 = vrot.slane %v2025, %v2037
      %v2039 = vlaneseq
      %v2040 = vshrl.u32 %v2039, 7
      %v2041 = vsub.s32 2, %v2040
      %v2042 = vrot.slane %v2025, %v2041
      %v2046 = vmul.f32 %v2028, %v2034
      %v2047 = vmul.f32 %v2028, %v2038
      %v2048 = vmul.f32 %v2028, %v2042
      %2052 = vrot.lane.b32.xlu0 %v2046, 96
      %v2053 = vpop.permute.xlu0 %2052
      %2054 = vrot.lane.b32.xlu0 %v2047, 96
      %v2055 = vpop.permute.xlu0 %2054
      %2056 = vrot.lane.b32.xlu0 %v2048, 96
      %v2057 = vpop.permute.xlu0 %2056
      %v2058 = vsel %vm688, %v2053, %v2055
      %v2059 = vsel %vm688, %v2055, %v2057
      %v2062 = vadd.f32 %v2023, %v2058
      %v2063 = vadd.f32 %v2024, %v2059
      %2064 = vset.pattern.permute.xlu0 7
      %2065 = vperm.xlu0 %2064, %v1826
      %v2066 = vpop.permute.xlu0 %2065
      %v2068 = vmul.f32 %v2066, %v1856
      %v2069 = vmul.f32 %v2066, %v1860
      %v2070 = vmul.f32 %v2066, %v1864
      %2074 = vrot.lane.b32.xlu0 %v2068, 95
      %v2075 = vpop.permute.xlu0 %2074
      %2076 = vrot.lane.b32.xlu0 %v2069, 95
      %v2077 = vpop.permute.xlu0 %2076
      %2078 = vrot.lane.b32.xlu0 %v2070, 95
      %v2079 = vpop.permute.xlu0 %2078
      %v2080 = vsel %vm733, %v2075, %v2077
      %v2081 = vsel %vm733, %v2077, %v2079
      %v2084 = vadd.f32 %v2062, %v2080
      %v2085 = vadd.f32 %v2063, %v2081
      %v2086 = vmul.f32 %v1847, %v750
      %2087 = vset.pattern.permute.xlu0 8
      %2088 = vperm.xlu0 %2087, %v1826
      %v2089 = vpop.permute.xlu0 %2088
      %v2092 = vlaneseq
      %v2093 = vshrl.u32 %v2092, 7
      %v2094 = vsub.s32 0, %v2093
      %v2095 = vrot.slane %v2086, %v2094
      %v2096 = vlaneseq
      %v2097 = vshrl.u32 %v2096, 7
      %v2098 = vsub.s32 1, %v2097
      %v2099 = vrot.slane %v2086, %v2098
      %v2100 = vlaneseq
      %v2101 = vshrl.u32 %v2100, 7
      %v2102 = vsub.s32 2, %v2101
      %v2103 = vrot.slane %v2086, %v2102
      %v2107 = vmul.f32 %v2089, %v2095
      %v2108 = vmul.f32 %v2089, %v2099
      %v2109 = vmul.f32 %v2089, %v2103
      %2113 = vrot.lane.b32.xlu0 %v2107, 94
      %v2114 = vpop.permute.xlu0 %2113
      %2115 = vrot.lane.b32.xlu0 %v2108, 94
      %v2116 = vpop.permute.xlu0 %2115
      %2117 = vrot.lane.b32.xlu0 %v2109, 94
      %v2118 = vpop.permute.xlu0 %2117
      %v2119 = vsel %vm801, %v2114, %v2116
      %v2120 = vsel %vm801, %v2116, %v2118
      %v2123 = vadd.f32 %v2084, %v2119
      %v2124 = vadd.f32 %v2085, %v2120
      %s2125 = scalar_lea.vmem [#allocation3], 1
      %v2126 = vld [vmem:[%s2125] ss:$8 sm:$0x3]
      %v2127 = vmul.f32 %v2126, %v252
      %2128 = vset.pattern.permute.xlu0 9
      %2129 = vperm.xlu0 %2128, %v1826
      %v2130 = vpop.permute.xlu0 %2129
      %v2133 = vlaneseq
      %v2134 = vshrl.u32 %v2133, 7
      %v2135 = vsub.s32 0, %v2134
      %v2136 = vrot.slane %v2127, %v2135
      %v2137 = vlaneseq
      %v2138 = vshrl.u32 %v2137, 7
      %v2139 = vsub.s32 1, %v2138
      %v2140 = vrot.slane %v2127, %v2139
      %v2143 = vmul.f32 %v2130, %v2136
      %v2144 = vmul.f32 %v2130, %v2140
      %v2145 = vadd.f32 %v2123, %v2143
      %v2146 = vadd.f32 %v2124, %v2144
      %v2147 = vld [vmem:[%s2125] ss:$8 sm:$0x7]
      %2148 = vset.pattern.permute.xlu0 10
      %2149 = vperm.xlu0 %2148, %v1826
      %v2150 = vpop.permute.xlu0 %2149
      %v2153 = vlaneseq
      %v2154 = vshrl.u32 %v2153, 7
      %v2155 = vsub.s32 0, %v2154
      %v2156 = vrot.slane %v2147, %v2155
      %v2157 = vlaneseq
      %v2158 = vshrl.u32 %v2157, 7
      %v2159 = vsub.s32 1, %v2158
      %v2160 = vrot.slane %v2147, %v2159
      %v2161 = vlaneseq
      %v2162 = vshrl.u32 %v2161, 7
      %v2163 = vsub.s32 2, %v2162
      %v2164 = vrot.slane %v2147, %v2163
      %v2168 = vmul.f32 %v2150, %v2156
      %v2169 = vmul.f32 %v2150, %v2160
      %v2170 = vmul.f32 %v2150, %v2164
      %2174 = vrot.lane.b32.xlu0 %v2168, 127
      %v2175 = vpop.permute.xlu0 %2174
      %2176 = vrot.lane.b32.xlu0 %v2169, 127
      %v2177 = vpop.permute.xlu0 %2176
      %2178 = vrot.lane.b32.xlu0 %v2170, 127
      %v2179 = vpop.permute.xlu0 %2178
      %v2180 = vsel %vm369, %v2175, %v2177
      %v2181 = vsel %vm369, %v2177, %v2179
      %v2184 = vadd.f32 %v2145, %v2180
      %v2185 = vadd.f32 %v2146, %v2181
      %v2186 = vmul.f32 %v2147, %v387
      %2187 = vset.pattern.permute.xlu0 11
      %2188 = vperm.xlu0 %2187, %v1826
      %v2189 = vpop.permute.xlu0 %2188
      %v2192 = vlaneseq
      %v2193 = vshrl.u32 %v2192, 7
      %v2194 = vsub.s32 0, %v2193
      %v2195 = vrot.slane %v2186, %v2194
      %v2196 = vlaneseq
      %v2197 = vshrl.u32 %v2196, 7
      %v2198 = vsub.s32 1, %v2197
      %v2199 = vrot.slane %v2186, %v2198
      %v2200 = vlaneseq
      %v2201 = vshrl.u32 %v2200, 7
      %v2202 = vsub.s32 2, %v2201
      %v2203 = vrot.slane %v2186, %v2202
      %v2207 = vmul.f32 %v2189, %v2195
      %v2208 = vmul.f32 %v2189, %v2199
      %v2209 = vmul.f32 %v2189, %v2203
      %2213 = vrot.lane.b32.xlu0 %v2207, 126
      %v2214 = vpop.permute.xlu0 %2213
      %2215 = vrot.lane.b32.xlu0 %v2208, 126
      %v2216 = vpop.permute.xlu0 %2215
      %2217 = vrot.lane.b32.xlu0 %v2209, 126
      %v2218 = vpop.permute.xlu0 %2217
      %v2219 = vsel %vm438, %v2214, %v2216
      %v2220 = vsel %vm438, %v2216, %v2218
      %v2223 = vadd.f32 %v2184, %v2219
      %v2224 = vadd.f32 %v2185, %v2220
      %v2225 = vmul.f32 %v2147, %v456
      %2226 = vset.pattern.permute.xlu0 12
      %2227 = vperm.xlu0 %2226, %v1826
      %v2228 = vpop.permute.xlu0 %2227
      %v2231 = vlaneseq
      %v2232 = vshrl.u32 %v2231, 7
      %v2233 = vsub.s32 0, %v2232
      %v2234 = vrot.slane %v2225, %v2233
      %v2235 = vlaneseq
      %v2236 = vshrl.u32 %v2235, 7
      %v2237 = vsub.s32 1, %v2236
      %v2238 = vrot.slane %v2225, %v2237
      %v2239 = vlaneseq
      %v2240 = vshrl.u32 %v2239, 7
      %v2241 = vsub.s32 2, %v2240
      %v2242 = vrot.slane %v2225, %v2241
      %v2246 = vmul.f32 %v2228, %v2234
      %v2247 = vmul.f32 %v2228, %v2238
      %v2248 = vmul.f32 %v2228, %v2242
      %2252 = vrot.lane.b32.xlu0 %v2246, 112
      %v2253 = vpop.permute.xlu0 %2252
      %2254 = vrot.lane.b32.xlu0 %v2247, 112
      %v2255 = vpop.permute.xlu0 %2254
      %2256 = vrot.lane.b32.xlu0 %v2248, 112
      %v2257 = vpop.permute.xlu0 %2256
      %v2258 = vsel %vm507, %v2253, %v2255
      %v2259 = vsel %vm507, %v2255, %v2257
      %v2262 = vadd.f32 %v2223, %v2258
      %v2263 = vadd.f32 %v2224, %v2259
      %2264 = vset.pattern.permute.xlu0 13
      %2265 = vperm.xlu0 %2264, %v1826
      %v2266 = vpop.permute.xlu0 %2265
      %v2268 = vmul.f32 %v2266, %v2156
      %v2269 = vmul.f32 %v2266, %v2160
      %v2270 = vmul.f32 %v2266, %v2164
      %2274 = vrot.lane.b32.xlu0 %v2268, 111
      %v2275 = vpop.permute.xlu0 %2274
      %2276 = vrot.lane.b32.xlu0 %v2269, 111
      %v2277 = vpop.permute.xlu0 %2276
      %2278 = vrot.lane.b32.xlu0 %v2270, 111
      %v2279 = vpop.permute.xlu0 %2278
      %v2280 = vsel %vm552, %v2275, %v2277
      %v2281 = vsel %vm552, %v2277, %v2279
      %v2284 = vadd.f32 %v2262, %v2280
      %v2285 = vadd.f32 %v2263, %v2281
      %v2286 = vmul.f32 %v2147, %v569
      %2287 = vset.pattern.permute.xlu0 14
      %2288 = vperm.xlu0 %2287, %v1826
      %v2289 = vpop.permute.xlu0 %2288
      %v2292 = vlaneseq
      %v2293 = vshrl.u32 %v2292, 7
      %v2294 = vsub.s32 0, %v2293
      %v2295 = vrot.slane %v2286, %v2294
      %v2296 = vlaneseq
      %v2297 = vshrl.u32 %v2296, 7
      %v2298 = vsub.s32 1, %v2297
      %v2299 = vrot.slane %v2286, %v2298
      %v2300 = vlaneseq
      %v2301 = vshrl.u32 %v2300, 7
      %v2302 = vsub.s32 2, %v2301
      %v2303 = vrot.slane %v2286, %v2302
      %v2307 = vmul.f32 %v2289, %v2295
      %v2308 = vmul.f32 %v2289, %v2299
      %v2309 = vmul.f32 %v2289, %v2303
      %2313 = vrot.lane.b32.xlu0 %v2307, 110
      %v2314 = vpop.permute.xlu0 %2313
      %2315 = vrot.lane.b32.xlu0 %v2308, 110
      %v2316 = vpop.permute.xlu0 %2315
      %2317 = vrot.lane.b32.xlu0 %v2309, 110
      %v2318 = vpop.permute.xlu0 %2317
      %v2319 = vsel %vm620, %v2314, %v2316
      %v2320 = vsel %vm620, %v2316, %v2318
      %v2323 = vadd.f32 %v2284, %v2319
      %v2324 = vadd.f32 %v2285, %v2320
      %v2325 = vmul.f32 %v2147, %v637
      %2326 = vset.pattern.permute.xlu0 15
      %2327 = vperm.xlu0 %2326, %v1826
      %v2328 = vpop.permute.xlu0 %2327
      %v2331 = vlaneseq
      %v2332 = vshrl.u32 %v2331, 7
      %v2333 = vsub.s32 0, %v2332
      %v2334 = vrot.slane %v2325, %v2333
      %v2335 = vlaneseq
      %v2336 = vshrl.u32 %v2335, 7
      %v2337 = vsub.s32 1, %v2336
      %v2338 = vrot.slane %v2325, %v2337
      %v2339 = vlaneseq
      %v2340 = vshrl.u32 %v2339, 7
      %v2341 = vsub.s32 2, %v2340
      %v2342 = vrot.slane %v2325, %v2341
      %v2346 = vmul.f32 %v2328, %v2334
      %v2347 = vmul.f32 %v2328, %v2338
      %v2348 = vmul.f32 %v2328, %v2342
      %2352 = vrot.lane.b32.xlu0 %v2346, 96
      %v2353 = vpop.permute.xlu0 %2352
      %2354 = vrot.lane.b32.xlu0 %v2347, 96
      %v2355 = vpop.permute.xlu0 %2354
      %2356 = vrot.lane.b32.xlu0 %v2348, 96
      %v2357 = vpop.permute.xlu0 %2356
      %v2358 = vsel %vm688, %v2353, %v2355
      %v2359 = vsel %vm688, %v2355, %v2357
      %v2362 = vadd.f32 %v2323, %v2358
      %v2363 = vadd.f32 %v2324, %v2359
      %2364 = vset.pattern.permute.xlu0 16
      %2365 = vperm.xlu0 %2364, %v1826
      %v2366 = vpop.permute.xlu0 %2365
      %v2368 = vmul.f32 %v2366, %v2156
      %v2369 = vmul.f32 %v2366, %v2160
      %v2370 = vmul.f32 %v2366, %v2164
      %2374 = vrot.lane.b32.xlu0 %v2368, 95
      %v2375 = vpop.permute.xlu0 %2374
      %2376 = vrot.lane.b32.xlu0 %v2369, 95
      %v2377 = vpop.permute.xlu0 %2376
      %2378 = vrot.lane.b32.xlu0 %v2370, 95
      %v2379 = vpop.permute.xlu0 %2378
      %v2380 = vsel %vm733, %v2375, %v2377
      %v2381 = vsel %vm733, %v2377, %v2379
      %v2384 = vadd.f32 %v2362, %v2380
      %v2385 = vadd.f32 %v2363, %v2381
      %v2386 = vmul.f32 %v2147, %v750
      %2387 = vset.pattern.permute.xlu0 17
      %2388 = vperm.xlu0 %2387, %v1826
      %v2389 = vpop.permute.xlu0 %2388
      %v2392 = vlaneseq
      %v2393 = vshrl.u32 %v2392, 7
      %v2394 = vsub.s32 0, %v2393
      %v2395 = vrot.slane %v2386, %v2394
      %v2396 = vlaneseq
      %v2397 = vshrl.u32 %v2396, 7
      %v2398 = vsub.s32 1, %v2397
      %v2399 = vrot.slane %v2386, %v2398
      %v2400 = vlaneseq
      %v2401 = vshrl.u32 %v2400, 7
      %v2402 = vsub.s32 2, %v2401
      %v2403 = vrot.slane %v2386, %v2402
      %v2407 = vmul.f32 %v2389, %v2395
      %v2408 = vmul.f32 %v2389, %v2399
      %v2409 = vmul.f32 %v2389, %v2403
      %2413 = vrot.lane.b32.xlu0 %v2407, 94
      %v2414 = vpop.permute.xlu0 %2413
      %2415 = vrot.lane.b32.xlu0 %v2408, 94
      %v2416 = vpop.permute.xlu0 %2415
      %2417 = vrot.lane.b32.xlu0 %v2409, 94
      %v2418 = vpop.permute.xlu0 %2417
      %v2419 = vsel %vm801, %v2414, %v2416
      %v2420 = vsel %vm801, %v2416, %v2418
      %v2423 = vadd.f32 %v2384, %v2419
      %v2424 = vadd.f32 %v2385, %v2420
      %s2425 = scalar_lea.vmem [#allocation3], 2
      %v2426 = vld [vmem:[%s2425] ss:$8 sm:$0x3]
      %v2427 = vmul.f32 %v2426, %v252
      %2428 = vset.pattern.permute.xlu0 18
      %2429 = vperm.xlu0 %2428, %v1826
      %v2430 = vpop.permute.xlu0 %2429
      %v2433 = vlaneseq
      %v2434 = vshrl.u32 %v2433, 7
      %v2435 = vsub.s32 0, %v2434
      %v2436 = vrot.slane %v2427, %v2435
      %v2437 = vlaneseq
      %v2438 = vshrl.u32 %v2437, 7
      %v2439 = vsub.s32 1, %v2438
      %v2440 = vrot.slane %v2427, %v2439
      %v2443 = vmul.f32 %v2430, %v2436
      %v2444 = vmul.f32 %v2430, %v2440
      %v2445 = vadd.f32 %v2423, %v2443
      %v2446 = vadd.f32 %v2424, %v2444
      %v2447 = vld [vmem:[%s2425] ss:$8 sm:$0x7]
      %2448 = vset.pattern.permute.xlu0 19
      %2449 = vperm.xlu0 %2448, %v1826
      %v2450 = vpop.permute.xlu0 %2449
      %v2453 = vlaneseq
      %v2454 = vshrl.u32 %v2453, 7
      %v2455 = vsub.s32 0, %v2454
      %v2456 = vrot.slane %v2447, %v2455
      %v2457 = vlaneseq
      %v2458 = vshrl.u32 %v2457, 7
      %v2459 = vsub.s32 1, %v2458
      %v2460 = vrot.slane %v2447, %v2459
      %v2461 = vlaneseq
      %v2462 = vshrl.u32 %v2461, 7
      %v2463 = vsub.s32 2, %v2462
      %v2464 = vrot.slane %v2447, %v2463
      %v2468 = vmul.f32 %v2450, %v2456
      %v2469 = vmul.f32 %v2450, %v2460
      %v2470 = vmul.f32 %v2450, %v2464
      %2474 = vrot.lane.b32.xlu0 %v2468, 127
      %v2475 = vpop.permute.xlu0 %2474
      %2476 = vrot.lane.b32.xlu0 %v2469, 127
      %v2477 = vpop.permute.xlu0 %2476
      %2478 = vrot.lane.b32.xlu0 %v2470, 127
      %v2479 = vpop.permute.xlu0 %2478
      %v2480 = vsel %vm369, %v2475, %v2477
      %v2481 = vsel %vm369, %v2477, %v2479
      %v2484 = vadd.f32 %v2445, %v2480
      %v2485 = vadd.f32 %v2446, %v2481
      %v2486 = vmul.f32 %v2447, %v387
      %2487 = vset.pattern.permute.xlu0 20
      %2488 = vperm.xlu0 %2487, %v1826
      %v2489 = vpop.permute.xlu0 %2488
      %v2492 = vlaneseq
      %v2493 = vshrl.u32 %v2492, 7
      %v2494 = vsub.s32 0, %v2493
      %v2495 = vrot.slane %v2486, %v2494
      %v2496 = vlaneseq
      %v2497 = vshrl.u32 %v2496, 7
      %v2498 = vsub.s32 1, %v2497
      %v2499 = vrot.slane %v2486, %v2498
      %v2500 = vlaneseq
      %v2501 = vshrl.u32 %v2500, 7
      %v2502 = vsub.s32 2, %v2501
      %v2503 = vrot.slane %v2486, %v2502
      %v2507 = vmul.f32 %v2489, %v2495
      %v2508 = vmul.f32 %v2489, %v2499
      %v2509 = vmul.f32 %v2489, %v2503
      %2513 = vrot.lane.b32.xlu0 %v2507, 126
      %v2514 = vpop.permute.xlu0 %2513
      %2515 = vrot.lane.b32.xlu0 %v2508, 126
      %v2516 = vpop.permute.xlu0 %2515
      %2517 = vrot.lane.b32.xlu0 %v2509, 126
      %v2518 = vpop.permute.xlu0 %2517
      %v2519 = vsel %vm438, %v2514, %v2516
      %v2520 = vsel %vm438, %v2516, %v2518
      %v2523 = vadd.f32 %v2484, %v2519
      %v2524 = vadd.f32 %v2485, %v2520
      %v2525 = vmul.f32 %v2447, %v456
      %2526 = vset.pattern.permute.xlu0 21
      %2527 = vperm.xlu0 %2526, %v1826
      %v2528 = vpop.permute.xlu0 %2527
      %v2531 = vlaneseq
      %v2532 = vshrl.u32 %v2531, 7
      %v2533 = vsub.s32 0, %v2532
      %v2534 = vrot.slane %v2525, %v2533
      %v2535 = vlaneseq
      %v2536 = vshrl.u32 %v2535, 7
      %v2537 = vsub.s32 1, %v2536
      %v2538 = vrot.slane %v2525, %v2537
      %v2539 = vlaneseq
      %v2540 = vshrl.u32 %v2539, 7
      %v2541 = vsub.s32 2, %v2540
      %v2542 = vrot.slane %v2525, %v2541
      %v2546 = vmul.f32 %v2528, %v2534
      %v2547 = vmul.f32 %v2528, %v2538
      %v2548 = vmul.f32 %v2528, %v2542
      %2552 = vrot.lane.b32.xlu0 %v2546, 112
      %v2553 = vpop.permute.xlu0 %2552
      %2554 = vrot.lane.b32.xlu0 %v2547, 112
      %v2555 = vpop.permute.xlu0 %2554
      %2556 = vrot.lane.b32.xlu0 %v2548, 112
      %v2557 = vpop.permute.xlu0 %2556
      %v2558 = vsel %vm507, %v2553, %v2555
      %v2559 = vsel %vm507, %v2555, %v2557
      %v2562 = vadd.f32 %v2523, %v2558
      %v2563 = vadd.f32 %v2524, %v2559
      %2564 = vset.pattern.permute.xlu0 22
      %2565 = vperm.xlu0 %2564, %v1826
      %v2566 = vpop.permute.xlu0 %2565
      %v2568 = vmul.f32 %v2566, %v2456
      %v2569 = vmul.f32 %v2566, %v2460
      %v2570 = vmul.f32 %v2566, %v2464
      %2574 = vrot.lane.b32.xlu0 %v2568, 111
      %v2575 = vpop.permute.xlu0 %2574
      %2576 = vrot.lane.b32.xlu0 %v2569, 111
      %v2577 = vpop.permute.xlu0 %2576
      %2578 = vrot.lane.b32.xlu0 %v2570, 111
      %v2579 = vpop.permute.xlu0 %2578
      %v2580 = vsel %vm552, %v2575, %v2577
      %v2581 = vsel %vm552, %v2577, %v2579
      %v2584 = vadd.f32 %v2562, %v2580
      %v2585 = vadd.f32 %v2563, %v2581
      %v2586 = vmul.f32 %v2447, %v569
      %2587 = vset.pattern.permute.xlu0 23
      %2588 = vperm.xlu0 %2587, %v1826
      %v2589 = vpop.permute.xlu0 %2588
      %v2592 = vlaneseq
      %v2593 = vshrl.u32 %v2592, 7
      %v2594 = vsub.s32 0, %v2593
      %v2595 = vrot.slane %v2586, %v2594
      %v2596 = vlaneseq
      %v2597 = vshrl.u32 %v2596, 7
      %v2598 = vsub.s32 1, %v2597
      %v2599 = vrot.slane %v2586, %v2598
      %v2600 = vlaneseq
      %v2601 = vshrl.u32 %v2600, 7
      %v2602 = vsub.s32 2, %v2601
      %v2603 = vrot.slane %v2586, %v2602
      %v2607 = vmul.f32 %v2589, %v2595
      %v2608 = vmul.f32 %v2589, %v2599
      %v2609 = vmul.f32 %v2589, %v2603
      %2613 = vrot.lane.b32.xlu0 %v2607, 110
      %v2614 = vpop.permute.xlu0 %2613
      %2615 = vrot.lane.b32.xlu0 %v2608, 110
      %v2616 = vpop.permute.xlu0 %2615
      %2617 = vrot.lane.b32.xlu0 %v2609, 110
      %v2618 = vpop.permute.xlu0 %2617
      %v2619 = vsel %vm620, %v2614, %v2616
      %v2620 = vsel %vm620, %v2616, %v2618
      %v2623 = vadd.f32 %v2584, %v2619
      %v2624 = vadd.f32 %v2585, %v2620
      %v2625 = vmul.f32 %v2447, %v637
      %2626 = vset.pattern.permute.xlu0 24
      %2627 = vperm.xlu0 %2626, %v1826
      %v2628 = vpop.permute.xlu0 %2627
      %v2631 = vlaneseq
      %v2632 = vshrl.u32 %v2631, 7
      %v2633 = vsub.s32 0, %v2632
      %v2634 = vrot.slane %v2625, %v2633
      %v2635 = vlaneseq
      %v2636 = vshrl.u32 %v2635, 7
      %v2637 = vsub.s32 1, %v2636
      %v2638 = vrot.slane %v2625, %v2637
      %v2639 = vlaneseq
      %v2640 = vshrl.u32 %v2639, 7
      %v2641 = vsub.s32 2, %v2640
      %v2642 = vrot.slane %v2625, %v2641
      %v2646 = vmul.f32 %v2628, %v2634
      %v2647 = vmul.f32 %v2628, %v2638
      %v2648 = vmul.f32 %v2628, %v2642
      %2652 = vrot.lane.b32.xlu0 %v2646, 96
      %v2653 = vpop.permute.xlu0 %2652
      %2654 = vrot.lane.b32.xlu0 %v2647, 96
      %v2655 = vpop.permute.xlu0 %2654
      %2656 = vrot.lane.b32.xlu0 %v2648, 96
      %v2657 = vpop.permute.xlu0 %2656
      %v2658 = vsel %vm688, %v2653, %v2655
      %v2659 = vsel %vm688, %v2655, %v2657
      %v2662 = vadd.f32 %v2623, %v2658
      %v2663 = vadd.f32 %v2624, %v2659
      %2664 = vset.pattern.permute.xlu0 25
      %2665 = vperm.xlu0 %2664, %v1826
      %v2666 = vpop.permute.xlu0 %2665
      %v2668 = vmul.f32 %v2666, %v2456
      %v2669 = vmul.f32 %v2666, %v2460
      %v2670 = vmul.f32 %v2666, %v2464
      %2674 = vrot.lane.b32.xlu0 %v2668, 95
      %v2675 = vpop.permute.xlu0 %2674
      %2676 = vrot.lane.b32.xlu0 %v2669, 95
      %v2677 = vpop.permute.xlu0 %2676
      %2678 = vrot.lane.b32.xlu0 %v2670, 95
      %v2679 = vpop.permute.xlu0 %2678
      %v2680 = vsel %vm733, %v2675, %v2677
      %v2681 = vsel %vm733, %v2677, %v2679
      %v2684 = vadd.f32 %v2662, %v2680
      %v2685 = vadd.f32 %v2663, %v2681
      %v2686 = vmul.f32 %v2447, %v750
      %2687 = vset.pattern.permute.xlu0 26
      %2688 = vperm.xlu0 %2687, %v1826
      %v2689 = vpop.permute.xlu0 %2688
      %v2692 = vlaneseq
      %v2693 = vshrl.u32 %v2692, 7
      %v2694 = vsub.s32 0, %v2693
      %v2695 = vrot.slane %v2686, %v2694
      %v2696 = vlaneseq
      %v2697 = vshrl.u32 %v2696, 7
      %v2698 = vsub.s32 1, %v2697
      %v2699 = vrot.slane %v2686, %v2698
      %v2700 = vlaneseq
      %v2701 = vshrl.u32 %v2700, 7
      %v2702 = vsub.s32 2, %v2701
      %v2703 = vrot.slane %v2686, %v2702
      %v2707 = vmul.f32 %v2689, %v2695
      %v2708 = vmul.f32 %v2689, %v2699
      %v2709 = vmul.f32 %v2689, %v2703
      %2713 = vrot.lane.b32.xlu0 %v2707, 94
      %v2714 = vpop.permute.xlu0 %2713
      %2715 = vrot.lane.b32.xlu0 %v2708, 94
      %v2716 = vpop.permute.xlu0 %2715
      %2717 = vrot.lane.b32.xlu0 %v2709, 94
      %v2718 = vpop.permute.xlu0 %2717
      %v2719 = vsel %vm801, %v2714, %v2716
      %v2720 = vsel %vm801, %v2716, %v2718
      %v2723 = vadd.f32 %v2684, %v2719
      %v2724 = vadd.f32 %v2685, %v2720
      %s2725 = scalar_lea.vmem [#allocation3], 3
      %v2726 = vld [vmem:[%s2725] ss:$8 sm:$0x3]
      %v2727 = vmul.f32 %v2726, %v252
      %2728 = vset.pattern.permute.xlu0 27
      %2729 = vperm.xlu0 %2728, %v1826
      %v2730 = vpop.permute.xlu0 %2729
      %v2733 = vlaneseq
      %v2734 = vshrl.u32 %v2733, 7
      %v2735 = vsub.s32 0, %v2734
      %v2736 = vrot.slane %v2727, %v2735
      %v2737 = vlaneseq
      %v2738 = vshrl.u32 %v2737, 7
      %v2739 = vsub.s32 1, %v2738
      %v2740 = vrot.slane %v2727, %v2739
      %v2743 = vmul.f32 %v2730, %v2736
      %v2744 = vmul.f32 %v2730, %v2740
      %v2745 = vadd.f32 %v2723, %v2743
      %v2746 = vadd.f32 %v2724, %v2744
      %v2747 = vld [vmem:[%s2725] ss:$8 sm:$0x7]
      %2748 = vset.pattern.permute.xlu0 28
      %2749 = vperm.xlu0 %2748, %v1826
      %v2750 = vpop.permute.xlu0 %2749
      %v2753 = vlaneseq
      %v2754 = vshrl.u32 %v2753, 7
      %v2755 = vsub.s32 0, %v2754
      %v2756 = vrot.slane %v2747, %v2755
      %v2757 = vlaneseq
      %v2758 = vshrl.u32 %v2757, 7
      %v2759 = vsub.s32 1, %v2758
      %v2760 = vrot.slane %v2747, %v2759
      %v2761 = vlaneseq
      %v2762 = vshrl.u32 %v2761, 7
      %v2763 = vsub.s32 2, %v2762
      %v2764 = vrot.slane %v2747, %v2763
      %v2768 = vmul.f32 %v2750, %v2756
      %v2769 = vmul.f32 %v2750, %v2760
      %v2770 = vmul.f32 %v2750, %v2764
      %2774 = vrot.lane.b32.xlu0 %v2768, 127
      %v2775 = vpop.permute.xlu0 %2774
      %2776 = vrot.lane.b32.xlu0 %v2769, 127
      %v2777 = vpop.permute.xlu0 %2776
      %2778 = vrot.lane.b32.xlu0 %v2770, 127
      %v2779 = vpop.permute.xlu0 %2778
      %v2780 = vsel %vm369, %v2775, %v2777
      %v2781 = vsel %vm369, %v2777, %v2779
      %v2784 = vadd.f32 %v2745, %v2780
      %v2785 = vadd.f32 %v2746, %v2781
      %v2786 = vmul.f32 %v2747, %v387
      %2787 = vset.pattern.permute.xlu0 29
      %2788 = vperm.xlu0 %2787, %v1826
      %v2789 = vpop.permute.xlu0 %2788
      %v2792 = vlaneseq
      %v2793 = vshrl.u32 %v2792, 7
      %v2794 = vsub.s32 0, %v2793
      %v2795 = vrot.slane %v2786, %v2794
      %v2796 = vlaneseq
      %v2797 = vshrl.u32 %v2796, 7
      %v2798 = vsub.s32 1, %v2797
      %v2799 = vrot.slane %v2786, %v2798
      %v2800 = vlaneseq
      %v2801 = vshrl.u32 %v2800, 7
      %v2802 = vsub.s32 2, %v2801
      %v2803 = vrot.slane %v2786, %v2802
      %v2807 = vmul.f32 %v2789, %v2795
      %v2808 = vmul.f32 %v2789, %v2799
      %v2809 = vmul.f32 %v2789, %v2803
      %2813 = vrot.lane.b32.xlu0 %v2807, 126
      %v2814 = vpop.permute.xlu0 %2813
      %2815 = vrot.lane.b32.xlu0 %v2808, 126
      %v2816 = vpop.permute.xlu0 %2815
      %2817 = vrot.lane.b32.xlu0 %v2809, 126
      %v2818 = vpop.permute.xlu0 %2817
      %v2819 = vsel %vm438, %v2814, %v2816
      %v2820 = vsel %vm438, %v2816, %v2818
      %v2823 = vadd.f32 %v2784, %v2819
      %v2824 = vadd.f32 %v2785, %v2820
      %v2825 = vmul.f32 %v2747, %v456
      %2826 = vset.pattern.permute.xlu0 30
      %2827 = vperm.xlu0 %2826, %v1826
      %v2828 = vpop.permute.xlu0 %2827
      %v2831 = vlaneseq
      %v2832 = vshrl.u32 %v2831, 7
      %v2833 = vsub.s32 0, %v2832
      %v2834 = vrot.slane %v2825, %v2833
      %v2835 = vlaneseq
      %v2836 = vshrl.u32 %v2835, 7
      %v2837 = vsub.s32 1, %v2836
      %v2838 = vrot.slane %v2825, %v2837
      %v2839 = vlaneseq
      %v2840 = vshrl.u32 %v2839, 7
      %v2841 = vsub.s32 2, %v2840
      %v2842 = vrot.slane %v2825, %v2841
      %v2846 = vmul.f32 %v2828, %v2834
      %v2847 = vmul.f32 %v2828, %v2838
      %v2848 = vmul.f32 %v2828, %v2842
      %2852 = vrot.lane.b32.xlu0 %v2846, 112
      %v2853 = vpop.permute.xlu0 %2852
      %2854 = vrot.lane.b32.xlu0 %v2847, 112
      %v2855 = vpop.permute.xlu0 %2854
      %2856 = vrot.lane.b32.xlu0 %v2848, 112
      %v2857 = vpop.permute.xlu0 %2856
      %v2858 = vsel %vm507, %v2853, %v2855
      %v2859 = vsel %vm507, %v2855, %v2857
      %v2862 = vadd.f32 %v2823, %v2858
      %v2863 = vadd.f32 %v2824, %v2859
      %2864 = vset.pattern.permute.xlu0 31
      %2865 = vperm.xlu0 %2864, %v1826
      %v2866 = vpop.permute.xlu0 %2865
      %v2868 = vmul.f32 %v2866, %v2756
      %v2869 = vmul.f32 %v2866, %v2760
      %v2870 = vmul.f32 %v2866, %v2764
      %2874 = vrot.lane.b32.xlu0 %v2868, 111
      %v2875 = vpop.permute.xlu0 %2874
      %2876 = vrot.lane.b32.xlu0 %v2869, 111
      %v2877 = vpop.permute.xlu0 %2876
      %2878 = vrot.lane.b32.xlu0 %v2870, 111
      %v2879 = vpop.permute.xlu0 %2878
      %v2880 = vsel %vm552, %v2875, %v2877
      %v2881 = vsel %vm552, %v2877, %v2879
      %v2884 = vadd.f32 %v2862, %v2880
      %v2885 = vadd.f32 %v2863, %v2881
      %v2886 = vmul.f32 %v2747, %v569
      %2887 = vset.pattern.permute.xlu0 32
      %2888 = vperm.xlu0 %2887, %v1826
      %v2889 = vpop.permute.xlu0 %2888
      %v2892 = vlaneseq
      %v2893 = vshrl.u32 %v2892, 7
      %v2894 = vsub.s32 0, %v2893
      %v2895 = vrot.slane %v2886, %v2894
      %v2896 = vlaneseq
      %v2897 = vshrl.u32 %v2896, 7
      %v2898 = vsub.s32 1, %v2897
      %v2899 = vrot.slane %v2886, %v2898
      %v2900 = vlaneseq
      %v2901 = vshrl.u32 %v2900, 7
      %v2902 = vsub.s32 2, %v2901
      %v2903 = vrot.slane %v2886, %v2902
      %v2907 = vmul.f32 %v2889, %v2895
      %v2908 = vmul.f32 %v2889, %v2899
      %v2909 = vmul.f32 %v2889, %v2903
      %2913 = vrot.lane.b32.xlu0 %v2907, 110
      %v2914 = vpop.permute.xlu0 %2913
      %2915 = vrot.lane.b32.xlu0 %v2908, 110
      %v2916 = vpop.permute.xlu0 %2915
      %2917 = vrot.lane.b32.xlu0 %v2909, 110
      %v2918 = vpop.permute.xlu0 %2917
      %v2919 = vsel %vm620, %v2914, %v2916
      %v2920 = vsel %vm620, %v2916, %v2918
      %v2923 = vadd.f32 %v2884, %v2919
      %v2924 = vadd.f32 %v2885, %v2920
      %v2925 = vmul.f32 %v2747, %v637
      %2926 = vset.pattern.permute.xlu0 33
      %2927 = vperm.xlu0 %2926, %v1826
      %v2928 = vpop.permute.xlu0 %2927
      %v2931 = vlaneseq
      %v2932 = vshrl.u32 %v2931, 7
      %v2933 = vsub.s32 0, %v2932
      %v2934 = vrot.slane %v2925, %v2933
      %v2935 = vlaneseq
      %v2936 = vshrl.u32 %v2935, 7
      %v2937 = vsub.s32 1, %v2936
      %v2938 = vrot.slane %v2925, %v2937
      %v2939 = vlaneseq
      %v2940 = vshrl.u32 %v2939, 7
      %v2941 = vsub.s32 2, %v2940
      %v2942 = vrot.slane %v2925, %v2941
      %v2946 = vmul.f32 %v2928, %v2934
      %v2947 = vmul.f32 %v2928, %v2938
      %v2948 = vmul.f32 %v2928, %v2942
      %2952 = vrot.lane.b32.xlu0 %v2946, 96
      %v2953 = vpop.permute.xlu0 %2952
      %2954 = vrot.lane.b32.xlu0 %v2947, 96
      %v2955 = vpop.permute.xlu0 %2954
      %2956 = vrot.lane.b32.xlu0 %v2948, 96
      %v2957 = vpop.permute.xlu0 %2956
      %v2958 = vsel %vm688, %v2953, %v2955
      %v2959 = vsel %vm688, %v2955, %v2957
      %v2962 = vadd.f32 %v2923, %v2958
      %v2963 = vadd.f32 %v2924, %v2959
      %2964 = vset.pattern.permute.xlu0 34
      %2965 = vperm.xlu0 %2964, %v1826
      %v2966 = vpop.permute.xlu0 %2965
      %v2968 = vmul.f32 %v2966, %v2756
      %v2969 = vmul.f32 %v2966, %v2760
      %v2970 = vmul.f32 %v2966, %v2764
      %2974 = vrot.lane.b32.xlu0 %v2968, 95
      %v2975 = vpop.permute.xlu0 %2974
      %2976 = vrot.lane.b32.xlu0 %v2969, 95
      %v2977 = vpop.permute.xlu0 %2976
      %2978 = vrot.lane.b32.xlu0 %v2970, 95
      %v2979 = vpop.permute.xlu0 %2978
      %v2980 = vsel %vm733, %v2975, %v2977
      %v2981 = vsel %vm733, %v2977, %v2979
      %v2984 = vadd.f32 %v2962, %v2980
      %v2985 = vadd.f32 %v2963, %v2981
      %v2986 = vmul.f32 %v2747, %v750
      %2987 = vset.pattern.permute.xlu0 35
      %2988 = vperm.xlu0 %2987, %v1826
      %v2989 = vpop.permute.xlu0 %2988
      %v2992 = vlaneseq
      %v2993 = vshrl.u32 %v2992, 7
      %v2994 = vsub.s32 0, %v2993
      %v2995 = vrot.slane %v2986, %v2994
      %v2996 = vlaneseq
      %v2997 = vshrl.u32 %v2996, 7
      %v2998 = vsub.s32 1, %v2997
      %v2999 = vrot.slane %v2986, %v2998
      %v3000 = vlaneseq
      %v3001 = vshrl.u32 %v3000, 7
      %v3002 = vsub.s32 2, %v3001
      %v3003 = vrot.slane %v2986, %v3002
      %v3007 = vmul.f32 %v2989, %v2995
      %v3008 = vmul.f32 %v2989, %v2999
      %v3009 = vmul.f32 %v2989, %v3003
      %3013 = vrot.lane.b32.xlu0 %v3007, 94
      %v3014 = vpop.permute.xlu0 %3013
      %3015 = vrot.lane.b32.xlu0 %v3008, 94
      %v3016 = vpop.permute.xlu0 %3015
      %3017 = vrot.lane.b32.xlu0 %v3009, 94
      %v3018 = vpop.permute.xlu0 %3017
      %v3019 = vsel %vm801, %v3014, %v3016
      %v3020 = vsel %vm801, %v3016, %v3018
      %v3023 = vadd.f32 %v2984, %v3019
      %v3024 = vadd.f32 %v2985, %v3020
      %s3025 = scalar_lea.vmem [#allocation3], 4
      %v3026 = vld [vmem:[%s3025] ss:$8 sm:$0x3]
      %v3027 = vmul.f32 %v3026, %v252
      %3028 = vset.pattern.permute.xlu0 36
      %3029 = vperm.xlu0 %3028, %v1826
      %v3030 = vpop.permute.xlu0 %3029
      %v3033 = vlaneseq
      %v3034 = vshrl.u32 %v3033, 7
      %v3035 = vsub.s32 0, %v3034
      %v3036 = vrot.slane %v3027, %v3035
      %v3037 = vlaneseq
      %v3038 = vshrl.u32 %v3037, 7
      %v3039 = vsub.s32 1, %v3038
      %v3040 = vrot.slane %v3027, %v3039
      %v3043 = vmul.f32 %v3030, %v3036
      %v3044 = vmul.f32 %v3030, %v3040
      %v3045 = vadd.f32 %v3023, %v3043
      %v3046 = vadd.f32 %v3024, %v3044
      %v3047 = vld [vmem:[%s3025] ss:$8 sm:$0x7]
      %3048 = vset.pattern.permute.xlu0 37
      %3049 = vperm.xlu0 %3048, %v1826
      %v3050 = vpop.permute.xlu0 %3049
      %v3053 = vlaneseq
      %v3054 = vshrl.u32 %v3053, 7
      %v3055 = vsub.s32 0, %v3054
      %v3056 = vrot.slane %v3047, %v3055
      %v3057 = vlaneseq
      %v3058 = vshrl.u32 %v3057, 7
      %v3059 = vsub.s32 1, %v3058
      %v3060 = vrot.slane %v3047, %v3059
      %v3061 = vlaneseq
      %v3062 = vshrl.u32 %v3061, 7
      %v3063 = vsub.s32 2, %v3062
      %v3064 = vrot.slane %v3047, %v3063
      %v3068 = vmul.f32 %v3050, %v3056
      %v3069 = vmul.f32 %v3050, %v3060
      %v3070 = vmul.f32 %v3050, %v3064
      %3074 = vrot.lane.b32.xlu0 %v3068, 127
      %v3075 = vpop.permute.xlu0 %3074
      %3076 = vrot.lane.b32.xlu0 %v3069, 127
      %v3077 = vpop.permute.xlu0 %3076
      %3078 = vrot.lane.b32.xlu0 %v3070, 127
      %v3079 = vpop.permute.xlu0 %3078
      %v3080 = vsel %vm369, %v3075, %v3077
      %v3081 = vsel %vm369, %v3077, %v3079
      %v3084 = vadd.f32 %v3045, %v3080
      %v3085 = vadd.f32 %v3046, %v3081
      %v3086 = vmul.f32 %v3047, %v387
      %3087 = vset.pattern.permute.xlu0 38
      %3088 = vperm.xlu0 %3087, %v1826
      %v3089 = vpop.permute.xlu0 %3088
      %v3092 = vlaneseq
      %v3093 = vshrl.u32 %v3092, 7
      %v3094 = vsub.s32 0, %v3093
      %v3095 = vrot.slane %v3086, %v3094
      %v3096 = vlaneseq
      %v3097 = vshrl.u32 %v3096, 7
      %v3098 = vsub.s32 1, %v3097
      %v3099 = vrot.slane %v3086, %v3098
      %v3100 = vlaneseq
      %v3101 = vshrl.u32 %v3100, 7
      %v3102 = vsub.s32 2, %v3101
      %v3103 = vrot.slane %v3086, %v3102
      %v3107 = vmul.f32 %v3089, %v3095
      %v3108 = vmul.f32 %v3089, %v3099
      %v3109 = vmul.f32 %v3089, %v3103
      %3113 = vrot.lane.b32.xlu0 %v3107, 126
      %v3114 = vpop.permute.xlu0 %3113
      %3115 = vrot.lane.b32.xlu0 %v3108, 126
      %v3116 = vpop.permute.xlu0 %3115
      %3117 = vrot.lane.b32.xlu0 %v3109, 126
      %v3118 = vpop.permute.xlu0 %3117
      %v3119 = vsel %vm438, %v3114, %v3116
      %v3120 = vsel %vm438, %v3116, %v3118
      %v3123 = vadd.f32 %v3084, %v3119
      %v3124 = vadd.f32 %v3085, %v3120
      %v3125 = vmul.f32 %v3047, %v456
      %3126 = vset.pattern.permute.xlu0 39
      %3127 = vperm.xlu0 %3126, %v1826
      %v3128 = vpop.permute.xlu0 %3127
      %v3131 = vlaneseq
      %v3132 = vshrl.u32 %v3131, 7
      %v3133 = vsub.s32 0, %v3132
      %v3134 = vrot.slane %v3125, %v3133
      %v3135 = vlaneseq
      %v3136 = vshrl.u32 %v3135, 7
      %v3137 = vsub.s32 1, %v3136
      %v3138 = vrot.slane %v3125, %v3137
      %v3139 = vlaneseq
      %v3140 = vshrl.u32 %v3139, 7
      %v3141 = vsub.s32 2, %v3140
      %v3142 = vrot.slane %v3125, %v3141
      %v3146 = vmul.f32 %v3128, %v3134
      %v3147 = vmul.f32 %v3128, %v3138
      %v3148 = vmul.f32 %v3128, %v3142
      %3152 = vrot.lane.b32.xlu0 %v3146, 112
      %v3153 = vpop.permute.xlu0 %3152
      %3154 = vrot.lane.b32.xlu0 %v3147, 112
      %v3155 = vpop.permute.xlu0 %3154
      %3156 = vrot.lane.b32.xlu0 %v3148, 112
      %v3157 = vpop.permute.xlu0 %3156
      %v3158 = vsel %vm507, %v3153, %v3155
      %v3159 = vsel %vm507, %v3155, %v3157
      %v3162 = vadd.f32 %v3123, %v3158
      %v3163 = vadd.f32 %v3124, %v3159
      %3164 = vset.pattern.permute.xlu0 40
      %3165 = vperm.xlu0 %3164, %v1826
      %v3166 = vpop.permute.xlu0 %3165
      %v3168 = vmul.f32 %v3166, %v3056
      %v3169 = vmul.f32 %v3166, %v3060
      %v3170 = vmul.f32 %v3166, %v3064
      %3174 = vrot.lane.b32.xlu0 %v3168, 111
      %v3175 = vpop.permute.xlu0 %3174
      %3176 = vrot.lane.b32.xlu0 %v3169, 111
      %v3177 = vpop.permute.xlu0 %3176
      %3178 = vrot.lane.b32.xlu0 %v3170, 111
      %v3179 = vpop.permute.xlu0 %3178
      %v3180 = vsel %vm552, %v3175, %v3177
      %v3181 = vsel %vm552, %v3177, %v3179
      %v3184 = vadd.f32 %v3162, %v3180
      %v3185 = vadd.f32 %v3163, %v3181
      %v3186 = vmul.f32 %v3047, %v569
      %3187 = vset.pattern.permute.xlu0 41
      %3188 = vperm.xlu0 %3187, %v1826
      %v3189 = vpop.permute.xlu0 %3188
      %v3192 = vlaneseq
      %v3193 = vshrl.u32 %v3192, 7
      %v3194 = vsub.s32 0, %v3193
      %v3195 = vrot.slane %v3186, %v3194
      %v3196 = vlaneseq
      %v3197 = vshrl.u32 %v3196, 7
      %v3198 = vsub.s32 1, %v3197
      %v3199 = vrot.slane %v3186, %v3198
      %v3200 = vlaneseq
      %v3201 = vshrl.u32 %v3200, 7
      %v3202 = vsub.s32 2, %v3201
      %v3203 = vrot.slane %v3186, %v3202
      %v3207 = vmul.f32 %v3189, %v3195
      %v3208 = vmul.f32 %v3189, %v3199
      %v3209 = vmul.f32 %v3189, %v3203
      %3213 = vrot.lane.b32.xlu0 %v3207, 110
      %v3214 = vpop.permute.xlu0 %3213
      %3215 = vrot.lane.b32.xlu0 %v3208, 110
      %v3216 = vpop.permute.xlu0 %3215
      %3217 = vrot.lane.b32.xlu0 %v3209, 110
      %v3218 = vpop.permute.xlu0 %3217
      %v3219 = vsel %vm620, %v3214, %v3216
      %v3220 = vsel %vm620, %v3216, %v3218
      %v3223 = vadd.f32 %v3184, %v3219
      %v3224 = vadd.f32 %v3185, %v3220
      %v3225 = vmul.f32 %v3047, %v637
      %3226 = vset.pattern.permute.xlu0 42
      %3227 = vperm.xlu0 %3226, %v1826
      %v3228 = vpop.permute.xlu0 %3227
      %v3231 = vlaneseq
      %v3232 = vshrl.u32 %v3231, 7
      %v3233 = vsub.s32 0, %v3232
      %v3234 = vrot.slane %v3225, %v3233
      %v3235 = vlaneseq
      %v3236 = vshrl.u32 %v3235, 7
      %v3237 = vsub.s32 1, %v3236
      %v3238 = vrot.slane %v3225, %v3237
      %v3239 = vlaneseq
      %v3240 = vshrl.u32 %v3239, 7
      %v3241 = vsub.s32 2, %v3240
      %v3242 = vrot.slane %v3225, %v3241
      %v3246 = vmul.f32 %v3228, %v3234
      %v3247 = vmul.f32 %v3228, %v3238
      %v3248 = vmul.f32 %v3228, %v3242
      %3252 = vrot.lane.b32.xlu0 %v3246, 96
      %v3253 = vpop.permute.xlu0 %3252
      %3254 = vrot.lane.b32.xlu0 %v3247, 96
      %v3255 = vpop.permute.xlu0 %3254
      %3256 = vrot.lane.b32.xlu0 %v3248, 96
      %v3257 = vpop.permute.xlu0 %3256
      %v3258 = vsel %vm688, %v3253, %v3255
      %v3259 = vsel %vm688, %v3255, %v3257
      %v3262 = vadd.f32 %v3223, %v3258
      %v3263 = vadd.f32 %v3224, %v3259
      %3264 = vset.pattern.permute.xlu0 43
      %3265 = vperm.xlu0 %3264, %v1826
      %v3266 = vpop.permute.xlu0 %3265
      %v3268 = vmul.f32 %v3266, %v3056
      %v3269 = vmul.f32 %v3266, %v3060
      %v3270 = vmul.f32 %v3266, %v3064
      %3274 = vrot.lane.b32.xlu0 %v3268, 95
      %v3275 = vpop.permute.xlu0 %3274
      %3276 = vrot.lane.b32.xlu0 %v3269, 95
      %v3277 = vpop.permute.xlu0 %3276
      %3278 = vrot.lane.b32.xlu0 %v3270, 95
      %v3279 = vpop.permute.xlu0 %3278
      %v3280 = vsel %vm733, %v3275, %v3277
      %v3281 = vsel %vm733, %v3277, %v3279
      %v3284 = vadd.f32 %v3262, %v3280
      %v3285 = vadd.f32 %v3263, %v3281
      %v3286 = vmul.f32 %v3047, %v750
      %3287 = vset.pattern.permute.xlu0 44
      %3288 = vperm.xlu0 %3287, %v1826
      %v3289 = vpop.permute.xlu0 %3288
      %v3292 = vlaneseq
      %v3293 = vshrl.u32 %v3292, 7
      %v3294 = vsub.s32 0, %v3293
      %v3295 = vrot.slane %v3286, %v3294
      %v3296 = vlaneseq
      %v3297 = vshrl.u32 %v3296, 7
      %v3298 = vsub.s32 1, %v3297
      %v3299 = vrot.slane %v3286, %v3298
      %v3300 = vlaneseq
      %v3301 = vshrl.u32 %v3300, 7
      %v3302 = vsub.s32 2, %v3301
      %v3303 = vrot.slane %v3286, %v3302
      %v3307 = vmul.f32 %v3289, %v3295
      %v3308 = vmul.f32 %v3289, %v3299
      %v3309 = vmul.f32 %v3289, %v3303
      %3313 = vrot.lane.b32.xlu0 %v3307, 94
      %v3314 = vpop.permute.xlu0 %3313
      %3315 = vrot.lane.b32.xlu0 %v3308, 94
      %v3316 = vpop.permute.xlu0 %3315
      %3317 = vrot.lane.b32.xlu0 %v3309, 94
      %v3318 = vpop.permute.xlu0 %3317
      %v3319 = vsel %vm801, %v3314, %v3316
      %v3320 = vsel %vm801, %v3316, %v3318
      %v3323 = vadd.f32 %v3284, %v3319
      %v3324 = vadd.f32 %v3285, %v3320
      %s3325 = scalar_lea.vmem [#allocation3], 5
      %v3326 = vld [vmem:[%s3325] ss:$8 sm:$0x3]
      %v3327 = vmul.f32 %v3326, %v252
      %3328 = vset.pattern.permute.xlu0 45
      %3329 = vperm.xlu0 %3328, %v1826
      %v3330 = vpop.permute.xlu0 %3329
      %v3333 = vlaneseq
      %v3334 = vshrl.u32 %v3333, 7
      %v3335 = vsub.s32 0, %v3334
      %v3336 = vrot.slane %v3327, %v3335
      %v3337 = vlaneseq
      %v3338 = vshrl.u32 %v3337, 7
      %v3339 = vsub.s32 1, %v3338
      %v3340 = vrot.slane %v3327, %v3339
      %v3343 = vmul.f32 %v3330, %v3336
      %v3344 = vmul.f32 %v3330, %v3340
      %v3345 = vadd.f32 %v3323, %v3343
      %v3346 = vadd.f32 %v3324, %v3344
      %v3347 = vld [vmem:[%s3325] ss:$8 sm:$0x7]
      %3348 = vset.pattern.permute.xlu0 46
      %3349 = vperm.xlu0 %3348, %v1826
      %v3350 = vpop.permute.xlu0 %3349
      %v3353 = vlaneseq
      %v3354 = vshrl.u32 %v3353, 7
      %v3355 = vsub.s32 0, %v3354
      %v3356 = vrot.slane %v3347, %v3355
      %v3357 = vlaneseq
      %v3358 = vshrl.u32 %v3357, 7
      %v3359 = vsub.s32 1, %v3358
      %v3360 = vrot.slane %v3347, %v3359
      %v3361 = vlaneseq
      %v3362 = vshrl.u32 %v3361, 7
      %v3363 = vsub.s32 2, %v3362
      %v3364 = vrot.slane %v3347, %v3363
      %v3368 = vmul.f32 %v3350, %v3356
      %v3369 = vmul.f32 %v3350, %v3360
      %v3370 = vmul.f32 %v3350, %v3364
      %3374 = vrot.lane.b32.xlu0 %v3368, 127
      %v3375 = vpop.permute.xlu0 %3374
      %3376 = vrot.lane.b32.xlu0 %v3369, 127
      %v3377 = vpop.permute.xlu0 %3376
      %3378 = vrot.lane.b32.xlu0 %v3370, 127
      %v3379 = vpop.permute.xlu0 %3378
      %v3380 = vsel %vm369, %v3375, %v3377
      %v3381 = vsel %vm369, %v3377, %v3379
      %v3384 = vadd.f32 %v3345, %v3380
      %v3385 = vadd.f32 %v3346, %v3381
      %v3386 = vmul.f32 %v3347, %v387
      %3387 = vset.pattern.permute.xlu0 47
      %3388 = vperm.xlu0 %3387, %v1826
      %v3389 = vpop.permute.xlu0 %3388
      %v3392 = vlaneseq
      %v3393 = vshrl.u32 %v3392, 7
      %v3394 = vsub.s32 0, %v3393
      %v3395 = vrot.slane %v3386, %v3394
      %v3396 = vlaneseq
      %v3397 = vshrl.u32 %v3396, 7
      %v3398 = vsub.s32 1, %v3397
      %v3399 = vrot.slane %v3386, %v3398
      %v3400 = vlaneseq
      %v3401 = vshrl.u32 %v3400, 7
      %v3402 = vsub.s32 2, %v3401
      %v3403 = vrot.slane %v3386, %v3402
      %v3407 = vmul.f32 %v3389, %v3395
      %v3408 = vmul.f32 %v3389, %v3399
      %v3409 = vmul.f32 %v3389, %v3403
      %3413 = vrot.lane.b32.xlu0 %v3407, 126
      %v3414 = vpop.permute.xlu0 %3413
      %3415 = vrot.lane.b32.xlu0 %v3408, 126
      %v3416 = vpop.permute.xlu0 %3415
      %3417 = vrot.lane.b32.xlu0 %v3409, 126
      %v3418 = vpop.permute.xlu0 %3417
      %v3419 = vsel %vm438, %v3414, %v3416
      %v3420 = vsel %vm438, %v3416, %v3418
      %v3423 = vadd.f32 %v3384, %v3419
      %v3424 = vadd.f32 %v3385, %v3420
      %v3425 = vmul.f32 %v3347, %v456
      %3426 = vset.pattern.permute.xlu0 48
      %3427 = vperm.xlu0 %3426, %v1826
      %v3428 = vpop.permute.xlu0 %3427
      %v3431 = vlaneseq
      %v3432 = vshrl.u32 %v3431, 7
      %v3433 = vsub.s32 0, %v3432
      %v3434 = vrot.slane %v3425, %v3433
      %v3435 = vlaneseq
      %v3436 = vshrl.u32 %v3435, 7
      %v3437 = vsub.s32 1, %v3436
      %v3438 = vrot.slane %v3425, %v3437
      %v3439 = vlaneseq
      %v3440 = vshrl.u32 %v3439, 7
      %v3441 = vsub.s32 2, %v3440
      %v3442 = vrot.slane %v3425, %v3441
      %v3446 = vmul.f32 %v3428, %v3434
      %v3447 = vmul.f32 %v3428, %v3438
      %v3448 = vmul.f32 %v3428, %v3442
      %3452 = vrot.lane.b32.xlu0 %v3446, 112
      %v3453 = vpop.permute.xlu0 %3452
      %3454 = vrot.lane.b32.xlu0 %v3447, 112
      %v3455 = vpop.permute.xlu0 %3454
      %3456 = vrot.lane.b32.xlu0 %v3448, 112
      %v3457 = vpop.permute.xlu0 %3456
      %v3458 = vsel %vm507, %v3453, %v3455
      %v3459 = vsel %vm507, %v3455, %v3457
      %v3462 = vadd.f32 %v3423, %v3458
      %v3463 = vadd.f32 %v3424, %v3459
      %3464 = vset.pattern.permute.xlu0 49
      %3465 = vperm.xlu0 %3464, %v1826
      %v3466 = vpop.permute.xlu0 %3465
      %v3468 = vmul.f32 %v3466, %v3356
      %v3469 = vmul.f32 %v3466, %v3360
      %v3470 = vmul.f32 %v3466, %v3364
      %3474 = vrot.lane.b32.xlu0 %v3468, 111
      %v3475 = vpop.permute.xlu0 %3474
      %3476 = vrot.lane.b32.xlu0 %v3469, 111
      %v3477 = vpop.permute.xlu0 %3476
      %3478 = vrot.lane.b32.xlu0 %v3470, 111
      %v3479 = vpop.permute.xlu0 %3478
      %v3480 = vsel %vm552, %v3475, %v3477
      %v3481 = vsel %vm552, %v3477, %v3479
      %v3484 = vadd.f32 %v3462, %v3480
      %v3485 = vadd.f32 %v3463, %v3481
      %v3486 = vmul.f32 %v3347, %v569
      %3487 = vset.pattern.permute.xlu0 50
      %3488 = vperm.xlu0 %3487, %v1826
      %v3489 = vpop.permute.xlu0 %3488
      %v3492 = vlaneseq
      %v3493 = vshrl.u32 %v3492, 7
      %v3494 = vsub.s32 0, %v3493
      %v3495 = vrot.slane %v3486, %v3494
      %v3496 = vlaneseq
      %v3497 = vshrl.u32 %v3496, 7
      %v3498 = vsub.s32 1, %v3497
      %v3499 = vrot.slane %v3486, %v3498
      %v3500 = vlaneseq
      %v3501 = vshrl.u32 %v3500, 7
      %v3502 = vsub.s32 2, %v3501
      %v3503 = vrot.slane %v3486, %v3502
      %v3507 = vmul.f32 %v3489, %v3495
      %v3508 = vmul.f32 %v3489, %v3499
      %v3509 = vmul.f32 %v3489, %v3503
      %3513 = vrot.lane.b32.xlu0 %v3507, 110
      %v3514 = vpop.permute.xlu0 %3513
      %3515 = vrot.lane.b32.xlu0 %v3508, 110
      %v3516 = vpop.permute.xlu0 %3515
      %3517 = vrot.lane.b32.xlu0 %v3509, 110
      %v3518 = vpop.permute.xlu0 %3517
      %v3519 = vsel %vm620, %v3514, %v3516
      %v3520 = vsel %vm620, %v3516, %v3518
      %v3523 = vadd.f32 %v3484, %v3519
      %v3524 = vadd.f32 %v3485, %v3520
      %v3525 = vmul.f32 %v3347, %v637
      %3526 = vset.pattern.permute.xlu0 51
      %3527 = vperm.xlu0 %3526, %v1826
      %v3528 = vpop.permute.xlu0 %3527
      %v3531 = vlaneseq
      %v3532 = vshrl.u32 %v3531, 7
      %v3533 = vsub.s32 0, %v3532
      %v3534 = vrot.slane %v3525, %v3533
      %v3535 = vlaneseq
      %v3536 = vshrl.u32 %v3535, 7
      %v3537 = vsub.s32 1, %v3536
      %v3538 = vrot.slane %v3525, %v3537
      %v3539 = vlaneseq
      %v3540 = vshrl.u32 %v3539, 7
      %v3541 = vsub.s32 2, %v3540
      %v3542 = vrot.slane %v3525, %v3541
      %v3546 = vmul.f32 %v3528, %v3534
      %v3547 = vmul.f32 %v3528, %v3538
      %v3548 = vmul.f32 %v3528, %v3542
      %3552 = vrot.lane.b32.xlu0 %v3546, 96
      %v3553 = vpop.permute.xlu0 %3552
      %3554 = vrot.lane.b32.xlu0 %v3547, 96
      %v3555 = vpop.permute.xlu0 %3554
      %3556 = vrot.lane.b32.xlu0 %v3548, 96
      %v3557 = vpop.permute.xlu0 %3556
      %v3558 = vsel %vm688, %v3553, %v3555
      %v3559 = vsel %vm688, %v3555, %v3557
      %v3562 = vadd.f32 %v3523, %v3558
      %v3563 = vadd.f32 %v3524, %v3559
      %3564 = vset.pattern.permute.xlu0 52
      %3565 = vperm.xlu0 %3564, %v1826
      %v3566 = vpop.permute.xlu0 %3565
      %v3568 = vmul.f32 %v3566, %v3356
      %v3569 = vmul.f32 %v3566, %v3360
      %v3570 = vmul.f32 %v3566, %v3364
      %3574 = vrot.lane.b32.xlu0 %v3568, 95
      %v3575 = vpop.permute.xlu0 %3574
      %3576 = vrot.lane.b32.xlu0 %v3569, 95
      %v3577 = vpop.permute.xlu0 %3576
      %3578 = vrot.lane.b32.xlu0 %v3570, 95
      %v3579 = vpop.permute.xlu0 %3578
      %v3580 = vsel %vm733, %v3575, %v3577
      %v3581 = vsel %vm733, %v3577, %v3579
      %v3584 = vadd.f32 %v3562, %v3580
      %v3585 = vadd.f32 %v3563, %v3581
      %v3586 = vmul.f32 %v3347, %v750
      %3587 = vset.pattern.permute.xlu0 53
      %3588 = vperm.xlu0 %3587, %v1826
      %v3589 = vpop.permute.xlu0 %3588
      %v3592 = vlaneseq
      %v3593 = vshrl.u32 %v3592, 7
      %v3594 = vsub.s32 0, %v3593
      %v3595 = vrot.slane %v3586, %v3594
      %v3596 = vlaneseq
      %v3597 = vshrl.u32 %v3596, 7
      %v3598 = vsub.s32 1, %v3597
      %v3599 = vrot.slane %v3586, %v3598
      %v3600 = vlaneseq
      %v3601 = vshrl.u32 %v3600, 7
      %v3602 = vsub.s32 2, %v3601
      %v3603 = vrot.slane %v3586, %v3602
      %v3607 = vmul.f32 %v3589, %v3595
      %v3608 = vmul.f32 %v3589, %v3599
      %v3609 = vmul.f32 %v3589, %v3603
      %3613 = vrot.lane.b32.xlu0 %v3607, 94
      %v3614 = vpop.permute.xlu0 %3613
      %3615 = vrot.lane.b32.xlu0 %v3608, 94
      %v3616 = vpop.permute.xlu0 %3615
      %3617 = vrot.lane.b32.xlu0 %v3609, 94
      %v3618 = vpop.permute.xlu0 %3617
      %v3619 = vsel %vm801, %v3614, %v3616
      %v3620 = vsel %vm801, %v3616, %v3618
      %v3623 = vadd.f32 %v3584, %v3619
      %v3624 = vadd.f32 %v3585, %v3620
      %s3625 = scalar_lea.vmem [#allocation3], 6
      %v3626 = vld [vmem:[%s3625] ss:$8 sm:$0x3]
      %v3627 = vmul.f32 %v3626, %v252
      %3628 = vset.pattern.permute.xlu0 54
      %3629 = vperm.xlu0 %3628, %v1826
      %v3630 = vpop.permute.xlu0 %3629
      %v3633 = vlaneseq
      %v3634 = vshrl.u32 %v3633, 7
      %v3635 = vsub.s32 0, %v3634
      %v3636 = vrot.slane %v3627, %v3635
      %v3637 = vlaneseq
      %v3638 = vshrl.u32 %v3637, 7
      %v3639 = vsub.s32 1, %v3638
      %v3640 = vrot.slane %v3627, %v3639
      %v3643 = vmul.f32 %v3630, %v3636
      %v3644 = vmul.f32 %v3630, %v3640
      %v3645 = vadd.f32 %v3623, %v3643
      %v3646 = vadd.f32 %v3624, %v3644
      %v3647 = vld [vmem:[%s3625] ss:$8 sm:$0x7]
      %3648 = vset.pattern.permute.xlu0 55
      %3649 = vperm.xlu0 %3648, %v1826
      %v3650 = vpop.permute.xlu0 %3649
      %v3653 = vlaneseq
      %v3654 = vshrl.u32 %v3653, 7
      %v3655 = vsub.s32 0, %v3654
      %v3656 = vrot.slane %v3647, %v3655
      %v3657 = vlaneseq
      %v3658 = vshrl.u32 %v3657, 7
      %v3659 = vsub.s32 1, %v3658
      %v3660 = vrot.slane %v3647, %v3659
      %v3661 = vlaneseq
      %v3662 = vshrl.u32 %v3661, 7
      %v3663 = vsub.s32 2, %v3662
      %v3664 = vrot.slane %v3647, %v3663
      %v3668 = vmul.f32 %v3650, %v3656
      %v3669 = vmul.f32 %v3650, %v3660
      %v3670 = vmul.f32 %v3650, %v3664
      %3674 = vrot.lane.b32.xlu0 %v3668, 127
      %v3675 = vpop.permute.xlu0 %3674
      %3676 = vrot.lane.b32.xlu0 %v3669, 127
      %v3677 = vpop.permute.xlu0 %3676
      %3678 = vrot.lane.b32.xlu0 %v3670, 127
      %v3679 = vpop.permute.xlu0 %3678
      %v3680 = vsel %vm369, %v3675, %v3677
      %v3681 = vsel %vm369, %v3677, %v3679
      %v3684 = vadd.f32 %v3645, %v3680
      %v3685 = vadd.f32 %v3646, %v3681
      %v3686 = vmul.f32 %v3647, %v387
      %3687 = vset.pattern.permute.xlu0 56
      %3688 = vperm.xlu0 %3687, %v1826
      %v3689 = vpop.permute.xlu0 %3688
      %v3692 = vlaneseq
      %v3693 = vshrl.u32 %v3692, 7
      %v3694 = vsub.s32 0, %v3693
      %v3695 = vrot.slane %v3686, %v3694
      %v3696 = vlaneseq
      %v3697 = vshrl.u32 %v3696, 7
      %v3698 = vsub.s32 1, %v3697
      %v3699 = vrot.slane %v3686, %v3698
      %v3700 = vlaneseq
      %v3701 = vshrl.u32 %v3700, 7
      %v3702 = vsub.s32 2, %v3701
      %v3703 = vrot.slane %v3686, %v3702
      %v3707 = vmul.f32 %v3689, %v3695
      %v3708 = vmul.f32 %v3689, %v3699
      %v3709 = vmul.f32 %v3689, %v3703
      %3713 = vrot.lane.b32.xlu0 %v3707, 126
      %v3714 = vpop.permute.xlu0 %3713
      %3715 = vrot.lane.b32.xlu0 %v3708, 126
      %v3716 = vpop.permute.xlu0 %3715
      %3717 = vrot.lane.b32.xlu0 %v3709, 126
      %v3718 = vpop.permute.xlu0 %3717
      %v3719 = vsel %vm438, %v3714, %v3716
      %v3720 = vsel %vm438, %v3716, %v3718
      %v3723 = vadd.f32 %v3684, %v3719
      %v3724 = vadd.f32 %v3685, %v3720
      %v3725 = vmul.f32 %v3647, %v456
      %3726 = vset.pattern.permute.xlu0 57
      %3727 = vperm.xlu0 %3726, %v1826
      %v3728 = vpop.permute.xlu0 %3727
      %v3731 = vlaneseq
      %v3732 = vshrl.u32 %v3731, 7
      %v3733 = vsub.s32 0, %v3732
      %v3734 = vrot.slane %v3725, %v3733
      %v3735 = vlaneseq
      %v3736 = vshrl.u32 %v3735, 7
      %v3737 = vsub.s32 1, %v3736
      %v3738 = vrot.slane %v3725, %v3737
      %v3739 = vlaneseq
      %v3740 = vshrl.u32 %v3739, 7
      %v3741 = vsub.s32 2, %v3740
      %v3742 = vrot.slane %v3725, %v3741
      %v3746 = vmul.f32 %v3728, %v3734
      %v3747 = vmul.f32 %v3728, %v3738
      %v3748 = vmul.f32 %v3728, %v3742
      %3752 = vrot.lane.b32.xlu0 %v3746, 112
      %v3753 = vpop.permute.xlu0 %3752
      %3754 = vrot.lane.b32.xlu0 %v3747, 112
      %v3755 = vpop.permute.xlu0 %3754
      %3756 = vrot.lane.b32.xlu0 %v3748, 112
      %v3757 = vpop.permute.xlu0 %3756
      %v3758 = vsel %vm507, %v3753, %v3755
      %v3759 = vsel %vm507, %v3755, %v3757
      %v3762 = vadd.f32 %v3723, %v3758
      %v3763 = vadd.f32 %v3724, %v3759
      %3764 = vset.pattern.permute.xlu0 58
      %3765 = vperm.xlu0 %3764, %v1826
      %v3766 = vpop.permute.xlu0 %3765
      %v3768 = vmul.f32 %v3766, %v3656
      %v3769 = vmul.f32 %v3766, %v3660
      %v3770 = vmul.f32 %v3766, %v3664
      %3774 = vrot.lane.b32.xlu0 %v3768, 111
      %v3775 = vpop.permute.xlu0 %3774
      %3776 = vrot.lane.b32.xlu0 %v3769, 111
      %v3777 = vpop.permute.xlu0 %3776
      %3778 = vrot.lane.b32.xlu0 %v3770, 111
      %v3779 = vpop.permute.xlu0 %3778
      %v3780 = vsel %vm552, %v3775, %v3777
      %v3781 = vsel %vm552, %v3777, %v3779
      %v3784 = vadd.f32 %v3762, %v3780
      %v3785 = vadd.f32 %v3763, %v3781
      %v3786 = vmul.f32 %v3647, %v569
      %3787 = vset.pattern.permute.xlu0 59
      %3788 = vperm.xlu0 %3787, %v1826
      %v3789 = vpop.permute.xlu0 %3788
      %v3792 = vlaneseq
      %v3793 = vshrl.u32 %v3792, 7
      %v3794 = vsub.s32 0, %v3793
      %v3795 = vrot.slane %v3786, %v3794
      %v3796 = vlaneseq
      %v3797 = vshrl.u32 %v3796, 7
      %v3798 = vsub.s32 1, %v3797
      %v3799 = vrot.slane %v3786, %v3798
      %v3800 = vlaneseq
      %v3801 = vshrl.u32 %v3800, 7
      %v3802 = vsub.s32 2, %v3801
      %v3803 = vrot.slane %v3786, %v3802
      %v3807 = vmul.f32 %v3789, %v3795
      %v3808 = vmul.f32 %v3789, %v3799
      %v3809 = vmul.f32 %v3789, %v3803
      %3813 = vrot.lane.b32.xlu0 %v3807, 110
      %v3814 = vpop.permute.xlu0 %3813
      %3815 = vrot.lane.b32.xlu0 %v3808, 110
      %v3816 = vpop.permute.xlu0 %3815
      %3817 = vrot.lane.b32.xlu0 %v3809, 110
      %v3818 = vpop.permute.xlu0 %3817
      %v3819 = vsel %vm620, %v3814, %v3816
      %v3820 = vsel %vm620, %v3816, %v3818
      %v3823 = vadd.f32 %v3784, %v3819
      %v3824 = vadd.f32 %v3785, %v3820
      %v3825 = vmul.f32 %v3647, %v637
      %3826 = vset.pattern.permute.xlu0 60
      %3827 = vperm.xlu0 %3826, %v1826
      %v3828 = vpop.permute.xlu0 %3827
      %v3831 = vlaneseq
      %v3832 = vshrl.u32 %v3831, 7
      %v3833 = vsub.s32 0, %v3832
      %v3834 = vrot.slane %v3825, %v3833
      %v3835 = vlaneseq
      %v3836 = vshrl.u32 %v3835, 7
      %v3837 = vsub.s32 1, %v3836
      %v3838 = vrot.slane %v3825, %v3837
      %v3839 = vlaneseq
      %v3840 = vshrl.u32 %v3839, 7
      %v3841 = vsub.s32 2, %v3840
      %v3842 = vrot.slane %v3825, %v3841
      %v3846 = vmul.f32 %v3828, %v3834
      %v3847 = vmul.f32 %v3828, %v3838
      %v3848 = vmul.f32 %v3828, %v3842
      %3852 = vrot.lane.b32.xlu0 %v3846, 96
      %v3853 = vpop.permute.xlu0 %3852
      %3854 = vrot.lane.b32.xlu0 %v3847, 96
      %v3855 = vpop.permute.xlu0 %3854
      %3856 = vrot.lane.b32.xlu0 %v3848, 96
      %v3857 = vpop.permute.xlu0 %3856
      %v3858 = vsel %vm688, %v3853, %v3855
      %v3859 = vsel %vm688, %v3855, %v3857
      %v3862 = vadd.f32 %v3823, %v3858
      %v3863 = vadd.f32 %v3824, %v3859
      %3864 = vset.pattern.permute.xlu0 61
      %3865 = vperm.xlu0 %3864, %v1826
      %v3866 = vpop.permute.xlu0 %3865
      %v3868 = vmul.f32 %v3866, %v3656
      %v3869 = vmul.f32 %v3866, %v3660
      %v3870 = vmul.f32 %v3866, %v3664
      %3874 = vrot.lane.b32.xlu0 %v3868, 95
      %v3875 = vpop.permute.xlu0 %3874
      %3876 = vrot.lane.b32.xlu0 %v3869, 95
      %v3877 = vpop.permute.xlu0 %3876
      %3878 = vrot.lane.b32.xlu0 %v3870, 95
      %v3879 = vpop.permute.xlu0 %3878
      %v3880 = vsel %vm733, %v3875, %v3877
      %v3881 = vsel %vm733, %v3877, %v3879
      %v3884 = vadd.f32 %v3862, %v3880
      %v3885 = vadd.f32 %v3863, %v3881
      %v3886 = vmul.f32 %v3647, %v750
      %3887 = vset.pattern.permute.xlu0 62
      %3888 = vperm.xlu0 %3887, %v1826
      %v3889 = vpop.permute.xlu0 %3888
      %v3892 = vlaneseq
      %v3893 = vshrl.u32 %v3892, 7
      %v3894 = vsub.s32 0, %v3893
      %v3895 = vrot.slane %v3886, %v3894
      %v3896 = vlaneseq
      %v3897 = vshrl.u32 %v3896, 7
      %v3898 = vsub.s32 1, %v3897
      %v3899 = vrot.slane %v3886, %v3898
      %v3900 = vlaneseq
      %v3901 = vshrl.u32 %v3900, 7
      %v3902 = vsub.s32 2, %v3901
      %v3903 = vrot.slane %v3886, %v3902
      %v3907 = vmul.f32 %v3889, %v3895
      %v3908 = vmul.f32 %v3889, %v3899
      %v3909 = vmul.f32 %v3889, %v3903
      %3913 = vrot.lane.b32.xlu0 %v3907, 94
      %v3914 = vpop.permute.xlu0 %3913
      %3915 = vrot.lane.b32.xlu0 %v3908, 94
      %v3916 = vpop.permute.xlu0 %3915
      %3917 = vrot.lane.b32.xlu0 %v3909, 94
      %v3918 = vpop.permute.xlu0 %3917
      %v3919 = vsel %vm801, %v3914, %v3916
      %v3920 = vsel %vm801, %v3916, %v3918
      %v3923 = vadd.f32 %v3884, %v3919
      %v3924 = vadd.f32 %v3885, %v3920
      %s3925 = scalar_lea.vmem [#allocation3], 7
      %v3926 = vld [vmem:[%s3925] ss:$8 sm:$0x3]
      %v3927 = vmul.f32 %v3926, %v252
      %3928 = vset.pattern.permute.xlu0 63
      %3929 = vperm.xlu0 %3928, %v1826
      %v3930 = vpop.permute.xlu0 %3929
      %v3933 = vlaneseq
      %v3934 = vshrl.u32 %v3933, 7
      %v3935 = vsub.s32 0, %v3934
      %v3936 = vrot.slane %v3927, %v3935
      %v3937 = vlaneseq
      %v3938 = vshrl.u32 %v3937, 7
      %v3939 = vsub.s32 1, %v3938
      %v3940 = vrot.slane %v3927, %v3939
      %v3943 = vmul.f32 %v3930, %v3936
      %v3944 = vmul.f32 %v3930, %v3940
      %v3945 = vadd.f32 %v3923, %v3943
      %v3946 = vadd.f32 %v3924, %v3944
      %v3947 = vld [vmem:[%s3925] ss:$8 sm:$0x7]
      %3948 = vset.pattern.permute.xlu0 64
      %3949 = vperm.xlu0 %3948, %v1826
      %v3950 = vpop.permute.xlu0 %3949
      %v3953 = vlaneseq
      %v3954 = vshrl.u32 %v3953, 7
      %v3955 = vsub.s32 0, %v3954
      %v3956 = vrot.slane %v3947, %v3955
      %v3957 = vlaneseq
      %v3958 = vshrl.u32 %v3957, 7
      %v3959 = vsub.s32 1, %v3958
      %v3960 = vrot.slane %v3947, %v3959
      %v3961 = vlaneseq
      %v3962 = vshrl.u32 %v3961, 7
      %v3963 = vsub.s32 2, %v3962
      %v3964 = vrot.slane %v3947, %v3963
      %v3968 = vmul.f32 %v3950, %v3956
      %v3969 = vmul.f32 %v3950, %v3960
      %v3970 = vmul.f32 %v3950, %v3964
      %3974 = vrot.lane.b32.xlu0 %v3968, 127
      %v3975 = vpop.permute.xlu0 %3974
      %3976 = vrot.lane.b32.xlu0 %v3969, 127
      %v3977 = vpop.permute.xlu0 %3976
      %3978 = vrot.lane.b32.xlu0 %v3970, 127
      %v3979 = vpop.permute.xlu0 %3978
      %v3980 = vsel %vm369, %v3975, %v3977
      %v3981 = vsel %vm369, %v3977, %v3979
      %v3984 = vadd.f32 %v3945, %v3980
      %v3985 = vadd.f32 %v3946, %v3981
      %v3986 = vmul.f32 %v3947, %v387
      %3987 = vset.pattern.permute.xlu0 65
      %3988 = vperm.xlu0 %3987, %v1826
      %v3989 = vpop.permute.xlu0 %3988
      %v3992 = vlaneseq
      %v3993 = vshrl.u32 %v3992, 7
      %v3994 = vsub.s32 0, %v3993
      %v3995 = vrot.slane %v3986, %v3994
      %v3996 = vlaneseq
      %v3997 = vshrl.u32 %v3996, 7
      %v3998 = vsub.s32 1, %v3997
      %v3999 = vrot.slane %v3986, %v3998
      %v4000 = vlaneseq
      %v4001 = vshrl.u32 %v4000, 7
      %v4002 = vsub.s32 2, %v4001
      %v4003 = vrot.slane %v3986, %v4002
      %v4007 = vmul.f32 %v3989, %v3995
      %v4008 = vmul.f32 %v3989, %v3999
      %v4009 = vmul.f32 %v3989, %v4003
      %4013 = vrot.lane.b32.xlu0 %v4007, 126
      %v4014 = vpop.permute.xlu0 %4013
      %4015 = vrot.lane.b32.xlu0 %v4008, 126
      %v4016 = vpop.permute.xlu0 %4015
      %4017 = vrot.lane.b32.xlu0 %v4009, 126
      %v4018 = vpop.permute.xlu0 %4017
      %v4019 = vsel %vm438, %v4014, %v4016
      %v4020 = vsel %vm438, %v4016, %v4018
      %v4023 = vadd.f32 %v3984, %v4019
      %v4024 = vadd.f32 %v3985, %v4020
      %v4025 = vmul.f32 %v3947, %v456
      %4026 = vset.pattern.permute.xlu0 66
      %4027 = vperm.xlu0 %4026, %v1826
      %v4028 = vpop.permute.xlu0 %4027
      %v4031 = vlaneseq
      %v4032 = vshrl.u32 %v4031, 7
      %v4033 = vsub.s32 0, %v4032
      %v4034 = vrot.slane %v4025, %v4033
      %v4035 = vlaneseq
      %v4036 = vshrl.u32 %v4035, 7
      %v4037 = vsub.s32 1, %v4036
      %v4038 = vrot.slane %v4025, %v4037
      %v4039 = vlaneseq
      %v4040 = vshrl.u32 %v4039, 7
      %v4041 = vsub.s32 2, %v4040
      %v4042 = vrot.slane %v4025, %v4041
      %v4046 = vmul.f32 %v4028, %v4034
      %v4047 = vmul.f32 %v4028, %v4038
      %v4048 = vmul.f32 %v4028, %v4042
      %4052 = vrot.lane.b32.xlu0 %v4046, 112
      %v4053 = vpop.permute.xlu0 %4052
      %4054 = vrot.lane.b32.xlu0 %v4047, 112
      %v4055 = vpop.permute.xlu0 %4054
      %4056 = vrot.lane.b32.xlu0 %v4048, 112
      %v4057 = vpop.permute.xlu0 %4056
      %v4058 = vsel %vm507, %v4053, %v4055
      %v4059 = vsel %vm507, %v4055, %v4057
      %v4062 = vadd.f32 %v4023, %v4058
      %v4063 = vadd.f32 %v4024, %v4059
      %4064 = vset.pattern.permute.xlu0 67
      %4065 = vperm.xlu0 %4064, %v1826
      %v4066 = vpop.permute.xlu0 %4065
      %v4068 = vmul.f32 %v4066, %v3956
      %v4069 = vmul.f32 %v4066, %v3960
      %v4070 = vmul.f32 %v4066, %v3964
      %4074 = vrot.lane.b32.xlu0 %v4068, 111
      %v4075 = vpop.permute.xlu0 %4074
      %4076 = vrot.lane.b32.xlu0 %v4069, 111
      %v4077 = vpop.permute.xlu0 %4076
      %4078 = vrot.lane.b32.xlu0 %v4070, 111
      %v4079 = vpop.permute.xlu0 %4078
      %v4080 = vsel %vm552, %v4075, %v4077
      %v4081 = vsel %vm552, %v4077, %v4079
      %v4084 = vadd.f32 %v4062, %v4080
      %v4085 = vadd.f32 %v4063, %v4081
      %v4086 = vmul.f32 %v3947, %v569
      %4087 = vset.pattern.permute.xlu0 68
      %4088 = vperm.xlu0 %4087, %v1826
      %v4089 = vpop.permute.xlu0 %4088
      %v4092 = vlaneseq
      %v4093 = vshrl.u32 %v4092, 7
      %v4094 = vsub.s32 0, %v4093
      %v4095 = vrot.slane %v4086, %v4094
      %v4096 = vlaneseq
      %v4097 = vshrl.u32 %v4096, 7
      %v4098 = vsub.s32 1, %v4097
      %v4099 = vrot.slane %v4086, %v4098
      %v4100 = vlaneseq
      %v4101 = vshrl.u32 %v4100, 7
      %v4102 = vsub.s32 2, %v4101
      %v4103 = vrot.slane %v4086, %v4102
      %v4107 = vmul.f32 %v4089, %v4095
      %v4108 = vmul.f32 %v4089, %v4099
      %v4109 = vmul.f32 %v4089, %v4103
      %4113 = vrot.lane.b32.xlu0 %v4107, 110
      %v4114 = vpop.permute.xlu0 %4113
      %4115 = vrot.lane.b32.xlu0 %v4108, 110
      %v4116 = vpop.permute.xlu0 %4115
      %4117 = vrot.lane.b32.xlu0 %v4109, 110
      %v4118 = vpop.permute.xlu0 %4117
      %v4119 = vsel %vm620, %v4114, %v4116
      %v4120 = vsel %vm620, %v4116, %v4118
      %v4123 = vadd.f32 %v4084, %v4119
      %v4124 = vadd.f32 %v4085, %v4120
      %v4125 = vmul.f32 %v3947, %v637
      %4126 = vset.pattern.permute.xlu0 69
      %4127 = vperm.xlu0 %4126, %v1826
      %v4128 = vpop.permute.xlu0 %4127
      %v4131 = vlaneseq
      %v4132 = vshrl.u32 %v4131, 7
      %v4133 = vsub.s32 0, %v4132
      %v4134 = vrot.slane %v4125, %v4133
      %v4135 = vlaneseq
      %v4136 = vshrl.u32 %v4135, 7
      %v4137 = vsub.s32 1, %v4136
      %v4138 = vrot.slane %v4125, %v4137
      %v4139 = vlaneseq
      %v4140 = vshrl.u32 %v4139, 7
      %v4141 = vsub.s32 2, %v4140
      %v4142 = vrot.slane %v4125, %v4141
      %v4146 = vmul.f32 %v4128, %v4134
      %v4147 = vmul.f32 %v4128, %v4138
      %v4148 = vmul.f32 %v4128, %v4142
      %4152 = vrot.lane.b32.xlu0 %v4146, 96
      %v4153 = vpop.permute.xlu0 %4152
      %4154 = vrot.lane.b32.xlu0 %v4147, 96
      %v4155 = vpop.permute.xlu0 %4154
      %4156 = vrot.lane.b32.xlu0 %v4148, 96
      %v4157 = vpop.permute.xlu0 %4156
      %v4158 = vsel %vm688, %v4153, %v4155
      %v4159 = vsel %vm688, %v4155, %v4157
      %v4162 = vadd.f32 %v4123, %v4158
      %v4163 = vadd.f32 %v4124, %v4159
      %4164 = vset.pattern.permute.xlu0 70
      %4165 = vperm.xlu0 %4164, %v1826
      %v4166 = vpop.permute.xlu0 %4165
      %v4168 = vmul.f32 %v4166, %v3956
      %v4169 = vmul.f32 %v4166, %v3960
      %v4170 = vmul.f32 %v4166, %v3964
      %4174 = vrot.lane.b32.xlu0 %v4168, 95
      %v4175 = vpop.permute.xlu0 %4174
      %4176 = vrot.lane.b32.xlu0 %v4169, 95
      %v4177 = vpop.permute.xlu0 %4176
      %4178 = vrot.lane.b32.xlu0 %v4170, 95
      %v4179 = vpop.permute.xlu0 %4178
      %v4180 = vsel %vm733, %v4175, %v4177
      %v4181 = vsel %vm733, %v4177, %v4179
      %v4184 = vadd.f32 %v4162, %v4180
      %v4185 = vadd.f32 %v4163, %v4181
      %v4186 = vmul.f32 %v3947, %v750
      %4187 = vset.pattern.permute.xlu0 71
      %4188 = vperm.xlu0 %4187, %v1826
      %v4189 = vpop.permute.xlu0 %4188
      %v4192 = vlaneseq
      %v4193 = vshrl.u32 %v4192, 7
      %v4194 = vsub.s32 0, %v4193
      %v4195 = vrot.slane %v4186, %v4194
      %v4196 = vlaneseq
      %v4197 = vshrl.u32 %v4196, 7
      %v4198 = vsub.s32 1, %v4197
      %v4199 = vrot.slane %v4186, %v4198
      %v4200 = vlaneseq
      %v4201 = vshrl.u32 %v4200, 7
      %v4202 = vsub.s32 2, %v4201
      %v4203 = vrot.slane %v4186, %v4202
      %v4207 = vmul.f32 %v4189, %v4195
      %v4208 = vmul.f32 %v4189, %v4199
      %v4209 = vmul.f32 %v4189, %v4203
      %4213 = vrot.lane.b32.xlu0 %v4207, 94
      %v4214 = vpop.permute.xlu0 %4213
      %4215 = vrot.lane.b32.xlu0 %v4208, 94
      %v4216 = vpop.permute.xlu0 %4215
      %4217 = vrot.lane.b32.xlu0 %v4209, 94
      %v4218 = vpop.permute.xlu0 %4217
      %v4219 = vsel %vm801, %v4214, %v4216
      %v4220 = vsel %vm801, %v4216, %v4218
      %v4223 = vadd.f32 %v4184, %v4219
      %v4224 = vadd.f32 %v4185, %v4220
      %s4225 = scalar_lea.vmem [#allocation3], 24
      %v4226 = vld [vmem:[%s4225] ss:$8 sm:$0x3]
      %v4227 = vmul.f32 %v4226, %v252
      %4228 = vset.pattern.permute.xlu0 72
      %4229 = vperm.xlu0 %4228, %v1826
      %v4230 = vpop.permute.xlu0 %4229
      %v4233 = vlaneseq
      %v4234 = vshrl.u32 %v4233, 7
      %v4235 = vsub.s32 0, %v4234
      %v4236 = vrot.slane %v4227, %v4235
      %v4237 = vlaneseq
      %v4238 = vshrl.u32 %v4237, 7
      %v4239 = vsub.s32 1, %v4238
      %v4240 = vrot.slane %v4227, %v4239
      %v4243 = vmul.f32 %v4230, %v4236
      %v4244 = vmul.f32 %v4230, %v4240
      %v4245 = vadd.f32 %v4223, %v4243
      %v4246 = vadd.f32 %v4224, %v4244
      %v4247 = vld [vmem:[%s4225] ss:$8 sm:$0x7]
      %4248 = vset.pattern.permute.xlu0 73
      %4249 = vperm.xlu0 %4248, %v1826
      %v4250 = vpop.permute.xlu0 %4249
      %v4253 = vlaneseq
      %v4254 = vshrl.u32 %v4253, 7
      %v4255 = vsub.s32 0, %v4254
      %v4256 = vrot.slane %v4247, %v4255
      %v4257 = vlaneseq
      %v4258 = vshrl.u32 %v4257, 7
      %v4259 = vsub.s32 1, %v4258
      %v4260 = vrot.slane %v4247, %v4259
      %v4261 = vlaneseq
      %v4262 = vshrl.u32 %v4261, 7
      %v4263 = vsub.s32 2, %v4262
      %v4264 = vrot.slane %v4247, %v4263
      %v4268 = vmul.f32 %v4250, %v4256
      %v4269 = vmul.f32 %v4250, %v4260
      %v4270 = vmul.f32 %v4250, %v4264
      %4274 = vrot.lane.b32.xlu0 %v4268, 127
      %v4275 = vpop.permute.xlu0 %4274
      %4276 = vrot.lane.b32.xlu0 %v4269, 127
      %v4277 = vpop.permute.xlu0 %4276
      %4278 = vrot.lane.b32.xlu0 %v4270, 127
      %v4279 = vpop.permute.xlu0 %4278
      %v4280 = vsel %vm369, %v4275, %v4277
      %v4281 = vsel %vm369, %v4277, %v4279
      %v4284 = vadd.f32 %v4245, %v4280
      %v4285 = vadd.f32 %v4246, %v4281
      %v4286 = vmul.f32 %v4247, %v387
      %4287 = vset.pattern.permute.xlu0 74
      %4288 = vperm.xlu0 %4287, %v1826
      %v4289 = vpop.permute.xlu0 %4288
      %v4292 = vlaneseq
      %v4293 = vshrl.u32 %v4292, 7
      %v4294 = vsub.s32 0, %v4293
      %v4295 = vrot.slane %v4286, %v4294
      %v4296 = vlaneseq
      %v4297 = vshrl.u32 %v4296, 7
      %v4298 = vsub.s32 1, %v4297
      %v4299 = vrot.slane %v4286, %v4298
      %v4300 = vlaneseq
      %v4301 = vshrl.u32 %v4300, 7
      %v4302 = vsub.s32 2, %v4301
      %v4303 = vrot.slane %v4286, %v4302
      %v4307 = vmul.f32 %v4289, %v4295
      %v4308 = vmul.f32 %v4289, %v4299
      %v4309 = vmul.f32 %v4289, %v4303
      %4313 = vrot.lane.b32.xlu0 %v4307, 126
      %v4314 = vpop.permute.xlu0 %4313
      %4315 = vrot.lane.b32.xlu0 %v4308, 126
      %v4316 = vpop.permute.xlu0 %4315
      %4317 = vrot.lane.b32.xlu0 %v4309, 126
      %v4318 = vpop.permute.xlu0 %4317
      %v4319 = vsel %vm438, %v4314, %v4316
      %v4320 = vsel %vm438, %v4316, %v4318
      %v4323 = vadd.f32 %v4284, %v4319
      %v4324 = vadd.f32 %v4285, %v4320
      %v4325 = vmul.f32 %v4247, %v456
      %4326 = vset.pattern.permute.xlu0 75
      %4327 = vperm.xlu0 %4326, %v1826
      %v4328 = vpop.permute.xlu0 %4327
      %v4331 = vlaneseq
      %v4332 = vshrl.u32 %v4331, 7
      %v4333 = vsub.s32 0, %v4332
      %v4334 = vrot.slane %v4325, %v4333
      %v4335 = vlaneseq
      %v4336 = vshrl.u32 %v4335, 7
      %v4337 = vsub.s32 1, %v4336
      %v4338 = vrot.slane %v4325, %v4337
      %v4339 = vlaneseq
      %v4340 = vshrl.u32 %v4339, 7
      %v4341 = vsub.s32 2, %v4340
      %v4342 = vrot.slane %v4325, %v4341
      %v4346 = vmul.f32 %v4328, %v4334
      %v4347 = vmul.f32 %v4328, %v4338
      %v4348 = vmul.f32 %v4328, %v4342
      %4352 = vrot.lane.b32.xlu0 %v4346, 112
      %v4353 = vpop.permute.xlu0 %4352
      %4354 = vrot.lane.b32.xlu0 %v4347, 112
      %v4355 = vpop.permute.xlu0 %4354
      %4356 = vrot.lane.b32.xlu0 %v4348, 112
      %v4357 = vpop.permute.xlu0 %4356
      %v4358 = vsel %vm507, %v4353, %v4355
      %v4359 = vsel %vm507, %v4355, %v4357
      %v4362 = vadd.f32 %v4323, %v4358
      %v4363 = vadd.f32 %v4324, %v4359
      %4364 = vset.pattern.permute.xlu0 76
      %4365 = vperm.xlu0 %4364, %v1826
      %v4366 = vpop.permute.xlu0 %4365
      %v4368 = vmul.f32 %v4366, %v4256
      %v4369 = vmul.f32 %v4366, %v4260
      %v4370 = vmul.f32 %v4366, %v4264
      %4374 = vrot.lane.b32.xlu0 %v4368, 111
      %v4375 = vpop.permute.xlu0 %4374
      %4376 = vrot.lane.b32.xlu0 %v4369, 111
      %v4377 = vpop.permute.xlu0 %4376
      %4378 = vrot.lane.b32.xlu0 %v4370, 111
      %v4379 = vpop.permute.xlu0 %4378
      %v4380 = vsel %vm552, %v4375, %v4377
      %v4381 = vsel %vm552, %v4377, %v4379
      %v4384 = vadd.f32 %v4362, %v4380
      %v4385 = vadd.f32 %v4363, %v4381
      %v4386 = vmul.f32 %v4247, %v569
      %4387 = vset.pattern.permute.xlu0 77
      %4388 = vperm.xlu0 %4387, %v1826
      %v4389 = vpop.permute.xlu0 %4388
      %v4392 = vlaneseq
      %v4393 = vshrl.u32 %v4392, 7
      %v4394 = vsub.s32 0, %v4393
      %v4395 = vrot.slane %v4386, %v4394
      %v4396 = vlaneseq
      %v4397 = vshrl.u32 %v4396, 7
      %v4398 = vsub.s32 1, %v4397
      %v4399 = vrot.slane %v4386, %v4398
      %v4400 = vlaneseq
      %v4401 = vshrl.u32 %v4400, 7
      %v4402 = vsub.s32 2, %v4401
      %v4403 = vrot.slane %v4386, %v4402
      %v4407 = vmul.f32 %v4389, %v4395
      %v4408 = vmul.f32 %v4389, %v4399
      %v4409 = vmul.f32 %v4389, %v4403
      %4413 = vrot.lane.b32.xlu0 %v4407, 110
      %v4414 = vpop.permute.xlu0 %4413
      %4415 = vrot.lane.b32.xlu0 %v4408, 110
      %v4416 = vpop.permute.xlu0 %4415
      %4417 = vrot.lane.b32.xlu0 %v4409, 110
      %v4418 = vpop.permute.xlu0 %4417
      %v4419 = vsel %vm620, %v4414, %v4416
      %v4420 = vsel %vm620, %v4416, %v4418
      %v4423 = vadd.f32 %v4384, %v4419
      %v4424 = vadd.f32 %v4385, %v4420
      %v4425 = vmul.f32 %v4247, %v637
      %4426 = vset.pattern.permute.xlu0 78
      %4427 = vperm.xlu0 %4426, %v1826
      %v4428 = vpop.permute.xlu0 %4427
      %v4431 = vlaneseq
      %v4432 = vshrl.u32 %v4431, 7
      %v4433 = vsub.s32 0, %v4432
      %v4434 = vrot.slane %v4425, %v4433
      %v4435 = vlaneseq
      %v4436 = vshrl.u32 %v4435, 7
      %v4437 = vsub.s32 1, %v4436
      %v4438 = vrot.slane %v4425, %v4437
      %v4439 = vlaneseq
      %v4440 = vshrl.u32 %v4439, 7
      %v4441 = vsub.s32 2, %v4440
      %v4442 = vrot.slane %v4425, %v4441
      %v4446 = vmul.f32 %v4428, %v4434
      %v4447 = vmul.f32 %v4428, %v4438
      %v4448 = vmul.f32 %v4428, %v4442
      %4452 = vrot.lane.b32.xlu0 %v4446, 96
      %v4453 = vpop.permute.xlu0 %4452
      %4454 = vrot.lane.b32.xlu0 %v4447, 96
      %v4455 = vpop.permute.xlu0 %4454
      %4456 = vrot.lane.b32.xlu0 %v4448, 96
      %v4457 = vpop.permute.xlu0 %4456
      %v4458 = vsel %vm688, %v4453, %v4455
      %v4459 = vsel %vm688, %v4455, %v4457
      %v4462 = vadd.f32 %v4423, %v4458
      %v4463 = vadd.f32 %v4424, %v4459
      %4464 = vset.pattern.permute.xlu0 79
      %4465 = vperm.xlu0 %4464, %v1826
      %v4466 = vpop.permute.xlu0 %4465
      %v4468 = vmul.f32 %v4466, %v4256
      %v4469 = vmul.f32 %v4466, %v4260
      %v4470 = vmul.f32 %v4466, %v4264
      %4474 = vrot.lane.b32.xlu0 %v4468, 95
      %v4475 = vpop.permute.xlu0 %4474
      %4476 = vrot.lane.b32.xlu0 %v4469, 95
      %v4477 = vpop.permute.xlu0 %4476
      %4478 = vrot.lane.b32.xlu0 %v4470, 95
      %v4479 = vpop.permute.xlu0 %4478
      %v4480 = vsel %vm733, %v4475, %v4477
      %v4481 = vsel %vm733, %v4477, %v4479
      %v4484 = vadd.f32 %v4462, %v4480
      %v4485 = vadd.f32 %v4463, %v4481
      %v4486 = vmul.f32 %v4247, %v750
      %4487 = vset.pattern.permute.xlu0 80
      %4488 = vperm.xlu0 %4487, %v1826
      %v4489 = vpop.permute.xlu0 %4488
      %v4492 = vlaneseq
      %v4493 = vshrl.u32 %v4492, 7
      %v4494 = vsub.s32 0, %v4493
      %v4495 = vrot.slane %v4486, %v4494
      %v4496 = vlaneseq
      %v4497 = vshrl.u32 %v4496, 7
      %v4498 = vsub.s32 1, %v4497
      %v4499 = vrot.slane %v4486, %v4498
      %v4500 = vlaneseq
      %v4501 = vshrl.u32 %v4500, 7
      %v4502 = vsub.s32 2, %v4501
      %v4503 = vrot.slane %v4486, %v4502
      %v4507 = vmul.f32 %v4489, %v4495
      %v4508 = vmul.f32 %v4489, %v4499
      %v4509 = vmul.f32 %v4489, %v4503
      %4513 = vrot.lane.b32.xlu0 %v4507, 94
      %v4514 = vpop.permute.xlu0 %4513
      %4515 = vrot.lane.b32.xlu0 %v4508, 94
      %v4516 = vpop.permute.xlu0 %4515
      %4517 = vrot.lane.b32.xlu0 %v4509, 94
      %v4518 = vpop.permute.xlu0 %4517
      %v4519 = vsel %vm801, %v4514, %v4516
      %v4520 = vsel %vm801, %v4516, %v4518
      %v4523 = vadd.f32 %v4484, %v4519
      %v4524 = vadd.f32 %v4485, %v4520
      %s4525 = scalar_lea.vmem [#allocation3], 25
      %v4526 = vld [vmem:[%s4525] ss:$8 sm:$0x3]
      %v4527 = vmul.f32 %v4526, %v252
      %4528 = vset.pattern.permute.xlu0 81
      %4529 = vperm.xlu0 %4528, %v1826
      %v4530 = vpop.permute.xlu0 %4529
      %v4533 = vlaneseq
      %v4534 = vshrl.u32 %v4533, 7
      %v4535 = vsub.s32 0, %v4534
      %v4536 = vrot.slane %v4527, %v4535
      %v4537 = vlaneseq
      %v4538 = vshrl.u32 %v4537, 7
      %v4539 = vsub.s32 1, %v4538
      %v4540 = vrot.slane %v4527, %v4539
      %v4543 = vmul.f32 %v4530, %v4536
      %v4544 = vmul.f32 %v4530, %v4540
      %v4545 = vadd.f32 %v4523, %v4543
      %v4546 = vadd.f32 %v4524, %v4544
      %v4547 = vld [vmem:[%s4525] ss:$8 sm:$0x7]
      %4548 = vset.pattern.permute.xlu0 82
      %4549 = vperm.xlu0 %4548, %v1826
      %v4550 = vpop.permute.xlu0 %4549
      %v4553 = vlaneseq
      %v4554 = vshrl.u32 %v4553, 7
      %v4555 = vsub.s32 0, %v4554
      %v4556 = vrot.slane %v4547, %v4555
      %v4557 = vlaneseq
      %v4558 = vshrl.u32 %v4557, 7
      %v4559 = vsub.s32 1, %v4558
      %v4560 = vrot.slane %v4547, %v4559
      %v4561 = vlaneseq
      %v4562 = vshrl.u32 %v4561, 7
      %v4563 = vsub.s32 2, %v4562
      %v4564 = vrot.slane %v4547, %v4563
      %v4568 = vmul.f32 %v4550, %v4556
      %v4569 = vmul.f32 %v4550, %v4560
      %v4570 = vmul.f32 %v4550, %v4564
      %4574 = vrot.lane.b32.xlu0 %v4568, 127
      %v4575 = vpop.permute.xlu0 %4574
      %4576 = vrot.lane.b32.xlu0 %v4569, 127
      %v4577 = vpop.permute.xlu0 %4576
      %4578 = vrot.lane.b32.xlu0 %v4570, 127
      %v4579 = vpop.permute.xlu0 %4578
      %v4580 = vsel %vm369, %v4575, %v4577
      %v4581 = vsel %vm369, %v4577, %v4579
      %v4584 = vadd.f32 %v4545, %v4580
      %v4585 = vadd.f32 %v4546, %v4581
      %v4586 = vmul.f32 %v4547, %v387
      %4587 = vset.pattern.permute.xlu0 83
      %4588 = vperm.xlu0 %4587, %v1826
      %v4589 = vpop.permute.xlu0 %4588
      %v4592 = vlaneseq
      %v4593 = vshrl.u32 %v4592, 7
      %v4594 = vsub.s32 0, %v4593
      %v4595 = vrot.slane %v4586, %v4594
      %v4596 = vlaneseq
      %v4597 = vshrl.u32 %v4596, 7
      %v4598 = vsub.s32 1, %v4597
      %v4599 = vrot.slane %v4586, %v4598
      %v4600 = vlaneseq
      %v4601 = vshrl.u32 %v4600, 7
      %v4602 = vsub.s32 2, %v4601
      %v4603 = vrot.slane %v4586, %v4602
      %v4607 = vmul.f32 %v4589, %v4595
      %v4608 = vmul.f32 %v4589, %v4599
      %v4609 = vmul.f32 %v4589, %v4603
      %4613 = vrot.lane.b32.xlu0 %v4607, 126
      %v4614 = vpop.permute.xlu0 %4613
      %4615 = vrot.lane.b32.xlu0 %v4608, 126
      %v4616 = vpop.permute.xlu0 %4615
      %4617 = vrot.lane.b32.xlu0 %v4609, 126
      %v4618 = vpop.permute.xlu0 %4617
      %v4619 = vsel %vm438, %v4614, %v4616
      %v4620 = vsel %vm438, %v4616, %v4618
      %v4623 = vadd.f32 %v4584, %v4619
      %v4624 = vadd.f32 %v4585, %v4620
      %v4625 = vmul.f32 %v4547, %v456
      %4626 = vset.pattern.permute.xlu0 84
      %4627 = vperm.xlu0 %4626, %v1826
      %v4628 = vpop.permute.xlu0 %4627
      %v4631 = vlaneseq
      %v4632 = vshrl.u32 %v4631, 7
      %v4633 = vsub.s32 0, %v4632
      %v4634 = vrot.slane %v4625, %v4633
      %v4635 = vlaneseq
      %v4636 = vshrl.u32 %v4635, 7
      %v4637 = vsub.s32 1, %v4636
      %v4638 = vrot.slane %v4625, %v4637
      %v4639 = vlaneseq
      %v4640 = vshrl.u32 %v4639, 7
      %v4641 = vsub.s32 2, %v4640
      %v4642 = vrot.slane %v4625, %v4641
      %v4646 = vmul.f32 %v4628, %v4634
      %v4647 = vmul.f32 %v4628, %v4638
      %v4648 = vmul.f32 %v4628, %v4642
      %4652 = vrot.lane.b32.xlu0 %v4646, 112
      %v4653 = vpop.permute.xlu0 %4652
      %4654 = vrot.lane.b32.xlu0 %v4647, 112
      %v4655 = vpop.permute.xlu0 %4654
      %4656 = vrot.lane.b32.xlu0 %v4648, 112
      %v4657 = vpop.permute.xlu0 %4656
      %v4658 = vsel %vm507, %v4653, %v4655
      %v4659 = vsel %vm507, %v4655, %v4657
      %v4662 = vadd.f32 %v4623, %v4658
      %v4663 = vadd.f32 %v4624, %v4659
      %4664 = vset.pattern.permute.xlu0 85
      %4665 = vperm.xlu0 %4664, %v1826
      %v4666 = vpop.permute.xlu0 %4665
      %v4668 = vmul.f32 %v4666, %v4556
      %v4669 = vmul.f32 %v4666, %v4560
      %v4670 = vmul.f32 %v4666, %v4564
      %4674 = vrot.lane.b32.xlu0 %v4668, 111
      %v4675 = vpop.permute.xlu0 %4674
      %4676 = vrot.lane.b32.xlu0 %v4669, 111
      %v4677 = vpop.permute.xlu0 %4676
      %4678 = vrot.lane.b32.xlu0 %v4670, 111
      %v4679 = vpop.permute.xlu0 %4678
      %v4680 = vsel %vm552, %v4675, %v4677
      %v4681 = vsel %vm552, %v4677, %v4679
      %v4684 = vadd.f32 %v4662, %v4680
      %v4685 = vadd.f32 %v4663, %v4681
      %v4686 = vmul.f32 %v4547, %v569
      %4687 = vset.pattern.permute.xlu0 86
      %4688 = vperm.xlu0 %4687, %v1826
      %v4689 = vpop.permute.xlu0 %4688
      %v4692 = vlaneseq
      %v4693 = vshrl.u32 %v4692, 7
      %v4694 = vsub.s32 0, %v4693
      %v4695 = vrot.slane %v4686, %v4694
      %v4696 = vlaneseq
      %v4697 = vshrl.u32 %v4696, 7
      %v4698 = vsub.s32 1, %v4697
      %v4699 = vrot.slane %v4686, %v4698
      %v4700 = vlaneseq
      %v4701 = vshrl.u32 %v4700, 7
      %v4702 = vsub.s32 2, %v4701
      %v4703 = vrot.slane %v4686, %v4702
      %v4707 = vmul.f32 %v4689, %v4695
      %v4708 = vmul.f32 %v4689, %v4699
      %v4709 = vmul.f32 %v4689, %v4703
      %4713 = vrot.lane.b32.xlu0 %v4707, 110
      %v4714 = vpop.permute.xlu0 %4713
      %4715 = vrot.lane.b32.xlu0 %v4708, 110
      %v4716 = vpop.permute.xlu0 %4715
      %4717 = vrot.lane.b32.xlu0 %v4709, 110
      %v4718 = vpop.permute.xlu0 %4717
      %v4719 = vsel %vm620, %v4714, %v4716
      %v4720 = vsel %vm620, %v4716, %v4718
      %v4723 = vadd.f32 %v4684, %v4719
      %v4724 = vadd.f32 %v4685, %v4720
      %v4725 = vmul.f32 %v4547, %v637
      %4726 = vset.pattern.permute.xlu0 87
      %4727 = vperm.xlu0 %4726, %v1826
      %v4728 = vpop.permute.xlu0 %4727
      %v4731 = vlaneseq
      %v4732 = vshrl.u32 %v4731, 7
      %v4733 = vsub.s32 0, %v4732
      %v4734 = vrot.slane %v4725, %v4733
      %v4735 = vlaneseq
      %v4736 = vshrl.u32 %v4735, 7
      %v4737 = vsub.s32 1, %v4736
      %v4738 = vrot.slane %v4725, %v4737
      %v4739 = vlaneseq
      %v4740 = vshrl.u32 %v4739, 7
      %v4741 = vsub.s32 2, %v4740
      %v4742 = vrot.slane %v4725, %v4741
      %v4746 = vmul.f32 %v4728, %v4734
      %v4747 = vmul.f32 %v4728, %v4738
      %v4748 = vmul.f32 %v4728, %v4742
      %4752 = vrot.lane.b32.xlu0 %v4746, 96
      %v4753 = vpop.permute.xlu0 %4752
      %4754 = vrot.lane.b32.xlu0 %v4747, 96
      %v4755 = vpop.permute.xlu0 %4754
      %4756 = vrot.lane.b32.xlu0 %v4748, 96
      %v4757 = vpop.permute.xlu0 %4756
      %v4758 = vsel %vm688, %v4753, %v4755
      %v4759 = vsel %vm688, %v4755, %v4757
      %v4762 = vadd.f32 %v4723, %v4758
      %v4763 = vadd.f32 %v4724, %v4759
      %4764 = vset.pattern.permute.xlu0 88
      %4765 = vperm.xlu0 %4764, %v1826
      %v4766 = vpop.permute.xlu0 %4765
      %v4768 = vmul.f32 %v4766, %v4556
      %v4769 = vmul.f32 %v4766, %v4560
      %v4770 = vmul.f32 %v4766, %v4564
      %4774 = vrot.lane.b32.xlu0 %v4768, 95
      %v4775 = vpop.permute.xlu0 %4774
      %4776 = vrot.lane.b32.xlu0 %v4769, 95
      %v4777 = vpop.permute.xlu0 %4776
      %4778 = vrot.lane.b32.xlu0 %v4770, 95
      %v4779 = vpop.permute.xlu0 %4778
      %v4780 = vsel %vm733, %v4775, %v4777
      %v4781 = vsel %vm733, %v4777, %v4779
      %v4784 = vadd.f32 %v4762, %v4780
      %v4785 = vadd.f32 %v4763, %v4781
      %v4786 = vmul.f32 %v4547, %v750
      %4787 = vset.pattern.permute.xlu0 89
      %4788 = vperm.xlu0 %4787, %v1826
      %v4789 = vpop.permute.xlu0 %4788
      %v4792 = vlaneseq
      %v4793 = vshrl.u32 %v4792, 7
      %v4794 = vsub.s32 0, %v4793
      %v4795 = vrot.slane %v4786, %v4794
      %v4796 = vlaneseq
      %v4797 = vshrl.u32 %v4796, 7
      %v4798 = vsub.s32 1, %v4797
      %v4799 = vrot.slane %v4786, %v4798
      %v4800 = vlaneseq
      %v4801 = vshrl.u32 %v4800, 7
      %v4802 = vsub.s32 2, %v4801
      %v4803 = vrot.slane %v4786, %v4802
      %v4807 = vmul.f32 %v4789, %v4795
      %v4808 = vmul.f32 %v4789, %v4799
      %v4809 = vmul.f32 %v4789, %v4803
      %4813 = vrot.lane.b32.xlu0 %v4807, 94
      %v4814 = vpop.permute.xlu0 %4813
      %4815 = vrot.lane.b32.xlu0 %v4808, 94
      %v4816 = vpop.permute.xlu0 %4815
      %4817 = vrot.lane.b32.xlu0 %v4809, 94
      %v4818 = vpop.permute.xlu0 %4817
      %v4819 = vsel %vm801, %v4814, %v4816
      %v4820 = vsel %vm801, %v4816, %v4818
      %v4823 = vadd.f32 %v4784, %v4819
      %v4824 = vadd.f32 %v4785, %v4820
      %s4825 = scalar_lea.vmem [#allocation3], 26
      %v4826 = vld [vmem:[%s4825] ss:$8 sm:$0x3]
      %v4827 = vmul.f32 %v4826, %v252
      %4828 = vset.pattern.permute.xlu0 90
      %4829 = vperm.xlu0 %4828, %v1826
      %v4830 = vpop.permute.xlu0 %4829
      %v4833 = vlaneseq
      %v4834 = vshrl.u32 %v4833, 7
      %v4835 = vsub.s32 0, %v4834
      %v4836 = vrot.slane %v4827, %v4835
      %v4837 = vlaneseq
      %v4838 = vshrl.u32 %v4837, 7
      %v4839 = vsub.s32 1, %v4838
      %v4840 = vrot.slane %v4827, %v4839
      %v4843 = vmul.f32 %v4830, %v4836
      %v4844 = vmul.f32 %v4830, %v4840
      %v4845 = vadd.f32 %v4823, %v4843
      %v4846 = vadd.f32 %v4824, %v4844
      %v4847 = vld [vmem:[%s4825] ss:$8 sm:$0x7]
      %4848 = vset.pattern.permute.xlu0 91
      %4849 = vperm.xlu0 %4848, %v1826
      %v4850 = vpop.permute.xlu0 %4849
      %v4853 = vlaneseq
      %v4854 = vshrl.u32 %v4853, 7
      %v4855 = vsub.s32 0, %v4854
      %v4856 = vrot.slane %v4847, %v4855
      %v4857 = vlaneseq
      %v4858 = vshrl.u32 %v4857, 7
      %v4859 = vsub.s32 1, %v4858
      %v4860 = vrot.slane %v4847, %v4859
      %v4861 = vlaneseq
      %v4862 = vshrl.u32 %v4861, 7
      %v4863 = vsub.s32 2, %v4862
      %v4864 = vrot.slane %v4847, %v4863
      %v4868 = vmul.f32 %v4850, %v4856
      %v4869 = vmul.f32 %v4850, %v4860
      %v4870 = vmul.f32 %v4850, %v4864
      %4874 = vrot.lane.b32.xlu0 %v4868, 127
      %v4875 = vpop.permute.xlu0 %4874
      %4876 = vrot.lane.b32.xlu0 %v4869, 127
      %v4877 = vpop.permute.xlu0 %4876
      %4878 = vrot.lane.b32.xlu0 %v4870, 127
      %v4879 = vpop.permute.xlu0 %4878
      %v4880 = vsel %vm369, %v4875, %v4877
      %v4881 = vsel %vm369, %v4877, %v4879
      %v4884 = vadd.f32 %v4845, %v4880
      %v4885 = vadd.f32 %v4846, %v4881
      %v4886 = vmul.f32 %v4847, %v387
      %4887 = vset.pattern.permute.xlu0 92
      %4888 = vperm.xlu0 %4887, %v1826
      %v4889 = vpop.permute.xlu0 %4888
      %v4892 = vlaneseq
      %v4893 = vshrl.u32 %v4892, 7
      %v4894 = vsub.s32 0, %v4893
      %v4895 = vrot.slane %v4886, %v4894
      %v4896 = vlaneseq
      %v4897 = vshrl.u32 %v4896, 7
      %v4898 = vsub.s32 1, %v4897
      %v4899 = vrot.slane %v4886, %v4898
      %v4900 = vlaneseq
      %v4901 = vshrl.u32 %v4900, 7
      %v4902 = vsub.s32 2, %v4901
      %v4903 = vrot.slane %v4886, %v4902
      %v4907 = vmul.f32 %v4889, %v4895
      %v4908 = vmul.f32 %v4889, %v4899
      %v4909 = vmul.f32 %v4889, %v4903
      %4913 = vrot.lane.b32.xlu0 %v4907, 126
      %v4914 = vpop.permute.xlu0 %4913
      %4915 = vrot.lane.b32.xlu0 %v4908, 126
      %v4916 = vpop.permute.xlu0 %4915
      %4917 = vrot.lane.b32.xlu0 %v4909, 126
      %v4918 = vpop.permute.xlu0 %4917
      %v4919 = vsel %vm438, %v4914, %v4916
      %v4920 = vsel %vm438, %v4916, %v4918
      %v4923 = vadd.f32 %v4884, %v4919
      %v4924 = vadd.f32 %v4885, %v4920
      %v4925 = vmul.f32 %v4847, %v456
      %4926 = vset.pattern.permute.xlu0 93
      %4927 = vperm.xlu0 %4926, %v1826
      %v4928 = vpop.permute.xlu0 %4927
      %v4931 = vlaneseq
      %v4932 = vshrl.u32 %v4931, 7
      %v4933 = vsub.s32 0, %v4932
      %v4934 = vrot.slane %v4925, %v4933
      %v4935 = vlaneseq
      %v4936 = vshrl.u32 %v4935, 7
      %v4937 = vsub.s32 1, %v4936
      %v4938 = vrot.slane %v4925, %v4937
      %v4939 = vlaneseq
      %v4940 = vshrl.u32 %v4939, 7
      %v4941 = vsub.s32 2, %v4940
      %v4942 = vrot.slane %v4925, %v4941
      %v4946 = vmul.f32 %v4928, %v4934
      %v4947 = vmul.f32 %v4928, %v4938
      %v4948 = vmul.f32 %v4928, %v4942
      %4952 = vrot.lane.b32.xlu0 %v4946, 112
      %v4953 = vpop.permute.xlu0 %4952
      %4954 = vrot.lane.b32.xlu0 %v4947, 112
      %v4955 = vpop.permute.xlu0 %4954
      %4956 = vrot.lane.b32.xlu0 %v4948, 112
      %v4957 = vpop.permute.xlu0 %4956
      %v4958 = vsel %vm507, %v4953, %v4955
      %v4959 = vsel %vm507, %v4955, %v4957
      %v4962 = vadd.f32 %v4923, %v4958
      %v4963 = vadd.f32 %v4924, %v4959
      %4964 = vset.pattern.permute.xlu0 94
      %4965 = vperm.xlu0 %4964, %v1826
      %v4966 = vpop.permute.xlu0 %4965
      %v4968 = vmul.f32 %v4966, %v4856
      %v4969 = vmul.f32 %v4966, %v4860
      %v4970 = vmul.f32 %v4966, %v4864
      %4974 = vrot.lane.b32.xlu0 %v4968, 111
      %v4975 = vpop.permute.xlu0 %4974
      %4976 = vrot.lane.b32.xlu0 %v4969, 111
      %v4977 = vpop.permute.xlu0 %4976
      %4978 = vrot.lane.b32.xlu0 %v4970, 111
      %v4979 = vpop.permute.xlu0 %4978
      %v4980 = vsel %vm552, %v4975, %v4977
      %v4981 = vsel %vm552, %v4977, %v4979
      %v4984 = vadd.f32 %v4962, %v4980
      %v4985 = vadd.f32 %v4963, %v4981
      %v4986 = vmul.f32 %v4847, %v569
      %4987 = vset.pattern.permute.xlu0 95
      %4988 = vperm.xlu0 %4987, %v1826
      %v4989 = vpop.permute.xlu0 %4988
      %v4992 = vlaneseq
      %v4993 = vshrl.u32 %v4992, 7
      %v4994 = vsub.s32 0, %v4993
      %v4995 = vrot.slane %v4986, %v4994
      %v4996 = vlaneseq
      %v4997 = vshrl.u32 %v4996, 7
      %v4998 = vsub.s32 1, %v4997
      %v4999 = vrot.slane %v4986, %v4998
      %v5000 = vlaneseq
      %v5001 = vshrl.u32 %v5000, 7
      %v5002 = vsub.s32 2, %v5001
      %v5003 = vrot.slane %v4986, %v5002
      %v5007 = vmul.f32 %v4989, %v4995
      %v5008 = vmul.f32 %v4989, %v4999
      %v5009 = vmul.f32 %v4989, %v5003
      %5013 = vrot.lane.b32.xlu0 %v5007, 110
      %v5014 = vpop.permute.xlu0 %5013
      %5015 = vrot.lane.b32.xlu0 %v5008, 110
      %v5016 = vpop.permute.xlu0 %5015
      %5017 = vrot.lane.b32.xlu0 %v5009, 110
      %v5018 = vpop.permute.xlu0 %5017
      %v5019 = vsel %vm620, %v5014, %v5016
      %v5020 = vsel %vm620, %v5016, %v5018
      %v5023 = vadd.f32 %v4984, %v5019
      %v5024 = vadd.f32 %v4985, %v5020
      %v5025 = vmul.f32 %v4847, %v637
      %5026 = vset.pattern.permute.xlu0 96
      %5027 = vperm.xlu0 %5026, %v1826
      %v5028 = vpop.permute.xlu0 %5027
      %v5031 = vlaneseq
      %v5032 = vshrl.u32 %v5031, 7
      %v5033 = vsub.s32 0, %v5032
      %v5034 = vrot.slane %v5025, %v5033
      %v5035 = vlaneseq
      %v5036 = vshrl.u32 %v5035, 7
      %v5037 = vsub.s32 1, %v5036
      %v5038 = vrot.slane %v5025, %v5037
      %v5039 = vlaneseq
      %v5040 = vshrl.u32 %v5039, 7
      %v5041 = vsub.s32 2, %v5040
      %v5042 = vrot.slane %v5025, %v5041
      %v5046 = vmul.f32 %v5028, %v5034
      %v5047 = vmul.f32 %v5028, %v5038
      %v5048 = vmul.f32 %v5028, %v5042
      %5052 = vrot.lane.b32.xlu0 %v5046, 96
      %v5053 = vpop.permute.xlu0 %5052
      %5054 = vrot.lane.b32.xlu0 %v5047, 96
      %v5055 = vpop.permute.xlu0 %5054
      %5056 = vrot.lane.b32.xlu0 %v5048, 96
      %v5057 = vpop.permute.xlu0 %5056
      %v5058 = vsel %vm688, %v5053, %v5055
      %v5059 = vsel %vm688, %v5055, %v5057
      %v5062 = vadd.f32 %v5023, %v5058
      %v5063 = vadd.f32 %v5024, %v5059
      %5064 = vset.pattern.permute.xlu0 97
      %5065 = vperm.xlu0 %5064, %v1826
      %v5066 = vpop.permute.xlu0 %5065
      %v5068 = vmul.f32 %v5066, %v4856
      %v5069 = vmul.f32 %v5066, %v4860
      %v5070 = vmul.f32 %v5066, %v4864
      %5074 = vrot.lane.b32.xlu0 %v5068, 95
      %v5075 = vpop.permute.xlu0 %5074
      %5076 = vrot.lane.b32.xlu0 %v5069, 95
      %v5077 = vpop.permute.xlu0 %5076
      %5078 = vrot.lane.b32.xlu0 %v5070, 95
      %v5079 = vpop.permute.xlu0 %5078
      %v5080 = vsel %vm733, %v5075, %v5077
      %v5081 = vsel %vm733, %v5077, %v5079
      %v5084 = vadd.f32 %v5062, %v5080
      %v5085 = vadd.f32 %v5063, %v5081
      %v5086 = vmul.f32 %v4847, %v750
      %5087 = vset.pattern.permute.xlu0 98
      %5088 = vperm.xlu0 %5087, %v1826
      %v5089 = vpop.permute.xlu0 %5088
      %v5092 = vlaneseq
      %v5093 = vshrl.u32 %v5092, 7
      %v5094 = vsub.s32 0, %v5093
      %v5095 = vrot.slane %v5086, %v5094
      %v5096 = vlaneseq
      %v5097 = vshrl.u32 %v5096, 7
      %v5098 = vsub.s32 1, %v5097
      %v5099 = vrot.slane %v5086, %v5098
      %v5100 = vlaneseq
      %v5101 = vshrl.u32 %v5100, 7
      %v5102 = vsub.s32 2, %v5101
      %v5103 = vrot.slane %v5086, %v5102
      %v5107 = vmul.f32 %v5089, %v5095
      %v5108 = vmul.f32 %v5089, %v5099
      %v5109 = vmul.f32 %v5089, %v5103
      %5113 = vrot.lane.b32.xlu0 %v5107, 94
      %v5114 = vpop.permute.xlu0 %5113
      %5115 = vrot.lane.b32.xlu0 %v5108, 94
      %v5116 = vpop.permute.xlu0 %5115
      %5117 = vrot.lane.b32.xlu0 %v5109, 94
      %v5118 = vpop.permute.xlu0 %5117
      %v5119 = vsel %vm801, %v5114, %v5116
      %v5120 = vsel %vm801, %v5116, %v5118
      %v5123 = vadd.f32 %v5084, %v5119
      %v5124 = vadd.f32 %v5085, %v5120
      %s5125 = scalar_lea.vmem [#allocation3], 27
      %v5126 = vld [vmem:[%s5125] ss:$8 sm:$0x3]
      %v5127 = vmul.f32 %v5126, %v252
      %5128 = vset.pattern.permute.xlu0 99
      %5129 = vperm.xlu0 %5128, %v1826
      %v5130 = vpop.permute.xlu0 %5129
      %v5133 = vlaneseq
      %v5134 = vshrl.u32 %v5133, 7
      %v5135 = vsub.s32 0, %v5134
      %v5136 = vrot.slane %v5127, %v5135
      %v5137 = vlaneseq
      %v5138 = vshrl.u32 %v5137, 7
      %v5139 = vsub.s32 1, %v5138
      %v5140 = vrot.slane %v5127, %v5139
      %v5143 = vmul.f32 %v5130, %v5136
      %v5144 = vmul.f32 %v5130, %v5140
      %v5145 = vadd.f32 %v5123, %v5143
      %v5146 = vadd.f32 %v5124, %v5144
      %v5147 = vld [vmem:[%s5125] ss:$8 sm:$0x7]
      %5148 = vset.pattern.permute.xlu0 100
      %5149 = vperm.xlu0 %5148, %v1826
      %v5150 = vpop.permute.xlu0 %5149
      %v5153 = vlaneseq
      %v5154 = vshrl.u32 %v5153, 7
      %v5155 = vsub.s32 0, %v5154
      %v5156 = vrot.slane %v5147, %v5155
      %v5157 = vlaneseq
      %v5158 = vshrl.u32 %v5157, 7
      %v5159 = vsub.s32 1, %v5158
      %v5160 = vrot.slane %v5147, %v5159
      %v5161 = vlaneseq
      %v5162 = vshrl.u32 %v5161, 7
      %v5163 = vsub.s32 2, %v5162
      %v5164 = vrot.slane %v5147, %v5163
      %v5168 = vmul.f32 %v5150, %v5156
      %v5169 = vmul.f32 %v5150, %v5160
      %v5170 = vmul.f32 %v5150, %v5164
      %5174 = vrot.lane.b32.xlu0 %v5168, 127
      %v5175 = vpop.permute.xlu0 %5174
      %5176 = vrot.lane.b32.xlu0 %v5169, 127
      %v5177 = vpop.permute.xlu0 %5176
      %5178 = vrot.lane.b32.xlu0 %v5170, 127
      %v5179 = vpop.permute.xlu0 %5178
      %v5180 = vsel %vm369, %v5175, %v5177
      %v5181 = vsel %vm369, %v5177, %v5179
      %v5184 = vadd.f32 %v5145, %v5180
      %v5185 = vadd.f32 %v5146, %v5181
      %v5186 = vmul.f32 %v5147, %v387
      %5187 = vset.pattern.permute.xlu0 101
      %5188 = vperm.xlu0 %5187, %v1826
      %v5189 = vpop.permute.xlu0 %5188
      %v5192 = vlaneseq
      %v5193 = vshrl.u32 %v5192, 7
      %v5194 = vsub.s32 0, %v5193
      %v5195 = vrot.slane %v5186, %v5194
      %v5196 = vlaneseq
      %v5197 = vshrl.u32 %v5196, 7
      %v5198 = vsub.s32 1, %v5197
      %v5199 = vrot.slane %v5186, %v5198
      %v5200 = vlaneseq
      %v5201 = vshrl.u32 %v5200, 7
      %v5202 = vsub.s32 2, %v5201
      %v5203 = vrot.slane %v5186, %v5202
      %v5207 = vmul.f32 %v5189, %v5195
      %v5208 = vmul.f32 %v5189, %v5199
      %v5209 = vmul.f32 %v5189, %v5203
      %5213 = vrot.lane.b32.xlu0 %v5207, 126
      %v5214 = vpop.permute.xlu0 %5213
      %5215 = vrot.lane.b32.xlu0 %v5208, 126
      %v5216 = vpop.permute.xlu0 %5215
      %5217 = vrot.lane.b32.xlu0 %v5209, 126
      %v5218 = vpop.permute.xlu0 %5217
      %v5219 = vsel %vm438, %v5214, %v5216
      %v5220 = vsel %vm438, %v5216, %v5218
      %v5223 = vadd.f32 %v5184, %v5219
      %v5224 = vadd.f32 %v5185, %v5220
      %v5225 = vmul.f32 %v5147, %v456
      %5226 = vset.pattern.permute.xlu0 102
      %5227 = vperm.xlu0 %5226, %v1826
      %v5228 = vpop.permute.xlu0 %5227
      %v5231 = vlaneseq
      %v5232 = vshrl.u32 %v5231, 7
      %v5233 = vsub.s32 0, %v5232
      %v5234 = vrot.slane %v5225, %v5233
      %v5235 = vlaneseq
      %v5236 = vshrl.u32 %v5235, 7
      %v5237 = vsub.s32 1, %v5236
      %v5238 = vrot.slane %v5225, %v5237
      %v5239 = vlaneseq
      %v5240 = vshrl.u32 %v5239, 7
      %v5241 = vsub.s32 2, %v5240
      %v5242 = vrot.slane %v5225, %v5241
      %v5246 = vmul.f32 %v5228, %v5234
      %v5247 = vmul.f32 %v5228, %v5238
      %v5248 = vmul.f32 %v5228, %v5242
      %5252 = vrot.lane.b32.xlu0 %v5246, 112
      %v5253 = vpop.permute.xlu0 %5252
      %5254 = vrot.lane.b32.xlu0 %v5247, 112
      %v5255 = vpop.permute.xlu0 %5254
      %5256 = vrot.lane.b32.xlu0 %v5248, 112
      %v5257 = vpop.permute.xlu0 %5256
      %v5258 = vsel %vm507, %v5253, %v5255
      %v5259 = vsel %vm507, %v5255, %v5257
      %v5262 = vadd.f32 %v5223, %v5258
      %v5263 = vadd.f32 %v5224, %v5259
      %5264 = vset.pattern.permute.xlu0 103
      %5265 = vperm.xlu0 %5264, %v1826
      %v5266 = vpop.permute.xlu0 %5265
      %v5268 = vmul.f32 %v5266, %v5156
      %v5269 = vmul.f32 %v5266, %v5160
      %v5270 = vmul.f32 %v5266, %v5164
      %5274 = vrot.lane.b32.xlu0 %v5268, 111
      %v5275 = vpop.permute.xlu0 %5274
      %5276 = vrot.lane.b32.xlu0 %v5269, 111
      %v5277 = vpop.permute.xlu0 %5276
      %5278 = vrot.lane.b32.xlu0 %v5270, 111
      %v5279 = vpop.permute.xlu0 %5278
      %v5280 = vsel %vm552, %v5275, %v5277
      %v5281 = vsel %vm552, %v5277, %v5279
      %v5284 = vadd.f32 %v5262, %v5280
      %v5285 = vadd.f32 %v5263, %v5281
      %v5286 = vmul.f32 %v5147, %v569
      %5287 = vset.pattern.permute.xlu0 104
      %5288 = vperm.xlu0 %5287, %v1826
      %v5289 = vpop.permute.xlu0 %5288
      %v5292 = vlaneseq
      %v5293 = vshrl.u32 %v5292, 7
      %v5294 = vsub.s32 0, %v5293
      %v5295 = vrot.slane %v5286, %v5294
      %v5296 = vlaneseq
      %v5297 = vshrl.u32 %v5296, 7
      %v5298 = vsub.s32 1, %v5297
      %v5299 = vrot.slane %v5286, %v5298
      %v5300 = vlaneseq
      %v5301 = vshrl.u32 %v5300, 7
      %v5302 = vsub.s32 2, %v5301
      %v5303 = vrot.slane %v5286, %v5302
      %v5307 = vmul.f32 %v5289, %v5295
      %v5308 = vmul.f32 %v5289, %v5299
      %v5309 = vmul.f32 %v5289, %v5303
      %5313 = vrot.lane.b32.xlu0 %v5307, 110
      %v5314 = vpop.permute.xlu0 %5313
      %5315 = vrot.lane.b32.xlu0 %v5308, 110
      %v5316 = vpop.permute.xlu0 %5315
      %5317 = vrot.lane.b32.xlu0 %v5309, 110
      %v5318 = vpop.permute.xlu0 %5317
      %v5319 = vsel %vm620, %v5314, %v5316
      %v5320 = vsel %vm620, %v5316, %v5318
      %v5323 = vadd.f32 %v5284, %v5319
      %v5324 = vadd.f32 %v5285, %v5320
      %v5325 = vmul.f32 %v5147, %v637
      %5326 = vset.pattern.permute.xlu0 105
      %5327 = vperm.xlu0 %5326, %v1826
      %v5328 = vpop.permute.xlu0 %5327
      %v5331 = vlaneseq
      %v5332 = vshrl.u32 %v5331, 7
      %v5333 = vsub.s32 0, %v5332
      %v5334 = vrot.slane %v5325, %v5333
      %v5335 = vlaneseq
      %v5336 = vshrl.u32 %v5335, 7
      %v5337 = vsub.s32 1, %v5336
      %v5338 = vrot.slane %v5325, %v5337
      %v5339 = vlaneseq
      %v5340 = vshrl.u32 %v5339, 7
      %v5341 = vsub.s32 2, %v5340
      %v5342 = vrot.slane %v5325, %v5341
      %v5346 = vmul.f32 %v5328, %v5334
      %v5347 = vmul.f32 %v5328, %v5338
      %v5348 = vmul.f32 %v5328, %v5342
      %5352 = vrot.lane.b32.xlu0 %v5346, 96
      %v5353 = vpop.permute.xlu0 %5352
      %5354 = vrot.lane.b32.xlu0 %v5347, 96
      %v5355 = vpop.permute.xlu0 %5354
      %5356 = vrot.lane.b32.xlu0 %v5348, 96
      %v5357 = vpop.permute.xlu0 %5356
      %v5358 = vsel %vm688, %v5353, %v5355
      %v5359 = vsel %vm688, %v5355, %v5357
      %v5362 = vadd.f32 %v5323, %v5358
      %v5363 = vadd.f32 %v5324, %v5359
      %5364 = vset.pattern.permute.xlu0 106
      %5365 = vperm.xlu0 %5364, %v1826
      %v5366 = vpop.permute.xlu0 %5365
      %v5368 = vmul.f32 %v5366, %v5156
      %v5369 = vmul.f32 %v5366, %v5160
      %v5370 = vmul.f32 %v5366, %v5164
      %5374 = vrot.lane.b32.xlu0 %v5368, 95
      %v5375 = vpop.permute.xlu0 %5374
      %5376 = vrot.lane.b32.xlu0 %v5369, 95
      %v5377 = vpop.permute.xlu0 %5376
      %5378 = vrot.lane.b32.xlu0 %v5370, 95
      %v5379 = vpop.permute.xlu0 %5378
      %v5380 = vsel %vm733, %v5375, %v5377
      %v5381 = vsel %vm733, %v5377, %v5379
      %v5384 = vadd.f32 %v5362, %v5380
      %v5385 = vadd.f32 %v5363, %v5381
      %v5386 = vmul.f32 %v5147, %v750
      %5387 = vset.pattern.permute.xlu0 107
      %5388 = vperm.xlu0 %5387, %v1826
      %v5389 = vpop.permute.xlu0 %5388
      %v5392 = vlaneseq
      %v5393 = vshrl.u32 %v5392, 7
      %v5394 = vsub.s32 0, %v5393
      %v5395 = vrot.slane %v5386, %v5394
      %v5396 = vlaneseq
      %v5397 = vshrl.u32 %v5396, 7
      %v5398 = vsub.s32 1, %v5397
      %v5399 = vrot.slane %v5386, %v5398
      %v5400 = vlaneseq
      %v5401 = vshrl.u32 %v5400, 7
      %v5402 = vsub.s32 2, %v5401
      %v5403 = vrot.slane %v5386, %v5402
      %v5407 = vmul.f32 %v5389, %v5395
      %v5408 = vmul.f32 %v5389, %v5399
      %v5409 = vmul.f32 %v5389, %v5403
      %5413 = vrot.lane.b32.xlu0 %v5407, 94
      %v5414 = vpop.permute.xlu0 %5413
      %5415 = vrot.lane.b32.xlu0 %v5408, 94
      %v5416 = vpop.permute.xlu0 %5415
      %5417 = vrot.lane.b32.xlu0 %v5409, 94
      %v5418 = vpop.permute.xlu0 %5417
      %v5419 = vsel %vm801, %v5414, %v5416
      %v5420 = vsel %vm801, %v5416, %v5418
      %v5423 = vadd.f32 %v5384, %v5419
      %v5424 = vadd.f32 %v5385, %v5420
      %v5425 = vmax.f32 %v5423, 0.3
      %v5426 = vmax.f32 %v5424, 0.3
      %v5427 = vmin.f32 %v5425, 0.4
      %v5428 = vmin.f32 %v5426, 0.4
      %v5431 = vcombine.low %v5427, %v5428
      %5433 = vst [vmem:[%s251] sm:$0xff] %v5431
      %p5434 = scmp.lt.s32.totalorder %s17, 1
      %s5435 = scalar_select %p5434, %s17, 1
      %s5436 = smul.addr %s5435, 2
      %s5437 = smul.addr %s5436, 4
      %s5438 = scalar_lea.vmem %s6, %s5437
      // Predicated region
      $region45: #{model_forward.1} parent=43 // pred_check
        %p5439 = pneg %p166
      $region46: #{model_forward.1} parent=43 // pred_check_branch
        %5441 = sbr.rel (%p5439) target = $region48
      $region47: #{model_forward.1} parent=43 // pred_region
        _
      $region48: #{model_forward.1} parent=43 // pred_fallthru
        _
    $region44: #{model_forward.1} parent=5 // pred_fallthru
      _
    %p5442 = scmp.le.s32.totalorder 2, %s12
    // Predicated region
    $region49: #{model_forward.1} parent=5 // pred_check
      %p5443 = pneg %p5442
    $region50: #{model_forward.1} parent=5 // pred_check_branch
      %5445 = sbr.rel (%p5443) target = $region52
    $region51: #{model_forward.1} parent=5 // pred_region
      %s5446 = ssub.s32 %s12, 2
      // Predicated region
      $region53: #{model_forward.1} parent=51 // pred_check
        %p5447 = pneg %p172
      $region54: #{model_forward.1} parent=51 // pred_check_branch
        %5449 = sbr.rel (%p5447) target = $region56
      $region55: #{model_forward.1} parent=51 // pred_region
        %p5450 = scmp.lt.s32.totalorder %s18, 1
        %s5451 = scalar_select %p5450, %s18, 1
        %s5452 = smul.addr %s5451, 2
        %s5453 = smul.addr %s5452, 4
        %s5454 = scalar_lea.vmem %s6, %s5453
      $region56: #{model_forward.1} parent=51 // pred_fallthru
        _
    $region52: #{model_forward.1} parent=5 // pred_fallthru
      _
  $region6: #{model_forward.1} parent=0 // loop_footer
    %s16 = sadd.s32 1, %s12
  $region7: #{model_forward.1} parent=0 // loop_footer_branch
    %11 = sbr.rel target = $region3
  $region8: #{model_forward.1} parent=0 // loop_exit
    _

</llo_original>
